<compile_context>
chip_gen: v7x
topology: tpu7x:2x2x1
jax: 0.10.0
libtpu: 0.0.40
codegen_flags: <defaults>
</compile_context>

<pallas_src>
import functools

import jax
import jax.numpy as jnp
from jax import lax
from jax.experimental import pallas as pl
from jax.experimental.pallas import tpu as pltpu


# ------------------------------ helpers --------------------------------------

def _round_up(x, m):
    return ((x + m - 1) // m) * m


def _pick_time_chunk(seq, max_chunk=128):
    """Prefer a divisor of seq close to max_chunk; otherwise use max_chunk with a
    masked tail chunk (never degrade to chunk=1 for awkward seq lengths)."""
    if seq <= max_chunk:
        return seq
    for c in range(max_chunk, max_chunk // 2, -1):
        if seq % c == 0:
            return c
    return max_chunk


def _pad_to(a, axis, size):
    pad = size - a.shape[axis]
    if pad <= 0:
        return a
    widths = [(0, 0)] * a.ndim
    widths[axis] = (0, pad)
    return jnp.pad(a, widths)


# ----------------------------- Pallas kernel ---------------------------------

def _fused_lstm_kernel(*refs, num_layers, t_chunk, batch_p, hidden, h_lane,
                       gate_w, seq_len, mm_dtype, loop_unroll):
    """All layers, one time-chunk per grid step (grid axis 0 = time, sequential).

    refs = [x, h0, c0,
            wx0, wh0, b0,                       # layer 0 (input proj hoisted)
            (w_fused_l, b_l) for l in 1..L-1,   # [Wx_l; Wh_l] stacked along K
            y, h_n, c_n,                        # outputs
            xp_sc, h_sc, c_sc]                  # scratch
    """
    n_in = 6 + 2 * (num_layers - 1)
    x_ref, h0_ref, c0_ref = refs[0], refs[1], refs[2]
    wx0_ref, wh0_ref, b0_ref = refs[3], refs[4], refs[5]
    hi_refs = [(refs[6 + 2 * l], refs[7 + 2 * l]) for l in range(num_layers - 1)]
    y_ref, hn_ref, cn_ref = refs[n_in], refs[n_in + 1], refs[n_in + 2]
    xp_sc, h_sc, c_sc = refs[n_in + 3], refs[n_in + 4], refs[n_in + 5]

    chunk = pl.program_id(0)
    last_chunk = pl.num_programs(0) - 1

    @pl.when(chunk == 0)
    def _():
        h_sc[...] = h0_ref[...].astype(jnp.float32)
        c_sc[...] = c0_ref[...].astype(jnp.float32)

    # ---- Hoisted layer-0 input projection: one MXU matmul per chunk ----------
    f_p = x_ref.shape[-1]
    x2d = x_ref[...].reshape(t_chunk * batch_p, f_p).astype(mm_dtype)
    xp = jnp.dot(x2d, wx0_ref[...], preferred_element_type=jnp.float32)
    xp_sc[...] = (xp + b0_ref[...].astype(jnp.float32)).reshape(
        t_chunk, batch_p, gate_w)

    # ---- Loop-invariant values hoisted out of the unrolled time loop ---------
    # (JAX does not CSE broadcast_in_dim; keep broadcasts out of the loop body.)
    biases = [jnp.broadcast_to(b_ref[...].astype(jnp.float32), (batch_p, gate_w))
              for (_, b_ref) in hi_refs]
    lane = lax.broadcasted_iota(jnp.int32, (batch_p, gate_w), 1)
    sig_mask = lane < 3 * hidden      # lanes [0,3H): i,f,o sigmoid; [3H,4H): g tanh
    mask_tail = (seq_len % t_chunk) != 0   # static Python bool

    def narrow(a):                    # packed-gate block -> h/c lane block
        return a if gate_w == h_lane else a[:, :h_lane]

    def cell(gates, c_prev):
        # gates: [B, gate_w], packed layout [i | f | o | g | pad]
        act = jnp.where(sig_mask, jax.nn.sigmoid(gates), jnp.tanh(gates))
        if hidden % 128 == 0:
            # gate sub-blocks are already vreg-aligned: plain aligned slices
            i_g = act[:, 0 * hidden:1 * hidden]
            f_g = act[:, 1 * hidden:2 * hidden]
            o_g = act[:, 2 * hidden:3 * hidden]
            g_g = act[:, 3 * hidden:4 * hidden]
        else:
            # align gate k (lanes [kH,(k+1)H)) with the c/h lanes [0,H) via XLU
            i_g = narrow(act)
            f_g = narrow(pltpu.roll(act, gate_w - hidden, 1))
            o_g = narrow(pltpu.roll(act, gate_w - 2 * hidden, 1))
            g_g = narrow(pltpu.roll(act, gate_w - 3 * hidden, 1))
        # Lanes [H, h_lane) carry bounded garbage after the rolls; it never
        # leaks into real lanes (elementwise only) and the padded weight rows
        # those lanes hit in the next matmul are zero.
        c_new = f_g * c_prev + i_g * g_g
        h_new = o_g * jnp.tanh(c_new)
        return h_new, c_new

    def step(t, carry):
        hs, cs = carry
        new_hs, new_cs = [], []
        # layer 0: recurrent matmul only (input projection precomputed)
        gates0 = xp_sc[t] + jnp.dot(hs[0].astype(mm_dtype), wh0_ref[...],
                                    preferred_element_type=jnp.float32)
        h_l, c_l = cell(gates0, cs[0])
        new_hs.append(h_l)
        new_cs.append(c_l)
        # layers 1..L-1: ONE fused matmul [h_{l-1}(t) | h_l(t-1)] @ [Wx_l; Wh_l]
        for l in range(1, num_layers):
            w_ref = hi_refs[l - 1][0]
            hh = jnp.concatenate([new_hs[l - 1], hs[l]], axis=1).astype(mm_dtype)
            gates = (jnp.dot(hh, w_ref[...], preferred_element_type=jnp.float32)
                     + biases[l - 1])
            h_l, c_l = cell(gates, cs[l])
            new_hs.append(h_l)
            new_cs.append(c_l)
        if mask_tail:
            valid = (chunk * t_chunk + t) < seq_len
            new_hs = [jnp.where(valid, nh, h) for nh, h in zip(new_hs, hs)]
            new_cs = [jnp.where(valid, nc, c) for nc, c in zip(new_cs, cs)]
        y_ref[t] = new_hs[-1].astype(y_ref.dtype)   # last layer's output
        return (tuple(new_hs), tuple(new_cs))

    init = (tuple(h_sc[l] for l in range(num_layers)),
            tuple(c_sc[l] for l in range(num_layers)))
    hs_f, cs_f = lax.fori_loop(0, t_chunk, step, init, unroll=loop_unroll)

    # carry across chunks (skip the dead store on the last chunk)
    @pl.when(chunk != last_chunk)
    def _():
        for l in range(num_layers):
            h_sc[l] = hs_f[l]
            c_sc[l] = cs_f[l]

    # final states written exactly once
    @pl.when(chunk == last_chunk)
    def _():
        for l in range(num_layers):
            hn_ref[l] = hs_f[l].astype(hn_ref.dtype)
            cn_ref[l] = cs_f[l].astype(cn_ref.dtype)


# ------------------------- parameters & wrapper -------------------------------

def init_params(key, in_features, hidden_features, num_layers):
    """Synthetic params. Per layer: Wx [x_feat, 4H], Wh [H, 4H], bx, bh [1, 4H].
    Gate order in the concatenated dim is i, f, o, g (internal convention; a
    real PyTorch nn.LSTM checkpoint would need its columns permuted)."""
    params = []
    x_feat = in_features
    for _ in range(num_layers):
        key, k1, k2, k3, k4 = jax.random.split(key, 5)
        wx = jax.random.normal(k1, (x_feat, 4 * hidden_features), jnp.float32) * 0.1
        wh = jax.random.normal(k2, (hidden_features, 4 * hidden_features), jnp.float32) * 0.1
        bx = jax.random.normal(k3, (1, 4 * hidden_features), jnp.float32) * 0.1
        bh = jax.random.normal(k4, (1, 4 * hidden_features), jnp.float32) * 0.1
        params.append((wx, wh, bx, bh))
        x_feat = hidden_features
    return params


@functools.partial(jax.jit,
                   static_argnames=("num_layers", "hidden_features", "matmul_dtype"))
def text_lstm_forward(inp, params, *, num_layers, hidden_features,
                      matmul_dtype=jnp.float32):
    """inp: [batch, seq, in_f] -> (output:[batch,seq,H], h_n:[batch,L,H], c_n:[batch,L,H])."""
    batch, seq, in_f = inp.shape
    H = hidden_features
    B_p = _round_up(batch, 8)          # sublane
    H_lane = _round_up(H, 128)         # lane width of the h/c state blocks
    G = _round_up(4 * H, 128)          # packed gate width: [i|f|o|g|pad]
    F_p = _round_up(in_f, 128)
    t_chunk = _pick_time_chunk(seq)
    num_chunks = (seq + t_chunk - 1) // t_chunk
    seq_pad = num_chunks * t_chunk
    dtype = inp.dtype

    # time-major + pad (zero padding is inert; h/c updates of padded timesteps
    # are masked in-kernel when seq % t_chunk != 0)
    x = jnp.transpose(inp, (1, 0, 2))                       # [seq, batch, in_f]
    x = _pad_to(_pad_to(_pad_to(x, 1, B_p), 2, F_p), 0, seq_pad)

    # h0/c0 default to zeros (matches the PyTorch module with h0/c0 = None);
    # padded lanes MUST be zero for the packed-layout algebra to be exact.
    h0 = jnp.zeros((num_layers, B_p, H_lane), dtype)
    c0 = jnp.zeros((num_layers, B_p, H_lane), dtype)

    def pack_cols(w):                                       # [..., 4H] -> [..., G]
        return _pad_to(w, -1, G)

    wx0, wh0, bx0, bh0 = params[0]
    weight_args = [
        pack_cols(_pad_to(wx0, 0, F_p)).astype(matmul_dtype),     # [F_p, G]
        pack_cols(_pad_to(wh0, 0, H_lane)).astype(matmul_dtype),  # [H_lane, G]
        pack_cols(bx0 + bh0).astype(jnp.float32),                 # fused bias [1, G]
    ]
    const2 = lambda i: (0, 0)
    in_specs = [
        pl.BlockSpec((t_chunk, B_p, F_p), lambda i: (i, 0, 0)),       # x chunk
        pl.BlockSpec((num_layers, B_p, H_lane), lambda i: (0, 0, 0)),  # h0
        pl.BlockSpec((num_layers, B_p, H_lane), lambda i: (0, 0, 0)),  # c0
        pl.BlockSpec((F_p, G), const2),
        pl.BlockSpec((H_lane, G), const2),
        pl.BlockSpec((1, G), const2),
    ]
    for l in range(1, num_layers):
        wx, wh, bx, bh = params[l]
        # fused weight: rows [0,H_lane) take h_{l-1}(t), rows [H_lane,2H_lane)
        # take h_l(t-1); padded rows are zero so garbage lanes contribute 0.
        w_fused = jnp.concatenate(
            [pack_cols(_pad_to(wx, 0, H_lane)),
             pack_cols(_pad_to(wh, 0, H_lane))], axis=0).astype(matmul_dtype)
        weight_args += [w_fused, pack_cols(bx + bh).astype(jnp.float32)]
        in_specs += [pl.BlockSpec((2 * H_lane, G), const2),
                     pl.BlockSpec((1, G), const2)]

    out_specs = [
        pl.BlockSpec((t_chunk, B_p, H_lane), lambda i: (i, 0, 0)),      # y
        pl.BlockSpec((num_layers, B_p, H_lane), lambda i: (0, 0, 0)),   # h_n
        pl.BlockSpec((num_layers, B_p, H_lane), lambda i: (0, 0, 0)),   # c_n
    ]
    scratch_shapes = [
        pltpu.VMEM((t_chunk, B_p, G), jnp.float32),            # layer-0 x proj
        pltpu.VMEM((num_layers, B_p, H_lane), jnp.float32),    # h carry
        pltpu.VMEM((num_layers, B_p, H_lane), jnp.float32),    # c carry
    ]

    kernel = functools.partial(
        _fused_lstm_kernel, num_layers=num_layers, t_chunk=t_chunk,
        batch_p=B_p, hidden=H, h_lane=H_lane, gate_w=G, seq_len=seq,
        mm_dtype=matmul_dtype, loop_unroll=True if t_chunk <= 32 else 8)

    y, hn, cn = pl.pallas_call(
        kernel,
        grid_spec=pltpu.PrefetchScalarGridSpec(
            num_scalar_prefetch=0,
            grid=(num_chunks,),
            in_specs=in_specs,
            out_specs=out_specs,
            scratch_shapes=scratch_shapes),
        out_shape=(
            jax.ShapeDtypeStruct((seq_pad, B_p, H_lane), dtype),
            jax.ShapeDtypeStruct((num_layers, B_p, H_lane), dtype),
            jax.ShapeDtypeStruct((num_layers, B_p, H_lane), dtype),
        ),
        compiler_params=pltpu.CompilerParams(
            dimension_semantics=("arbitrary",)),   # time carries recurrent state
    )(x, h0, c0, *weight_args)

    output = jnp.transpose(y[:seq, :batch, :H], (1, 0, 2))     # [batch, seq, H]
    h_n = jnp.transpose(hn[:, :batch, :H], (1, 0, 2))          # [batch, L, H]
    c_n = jnp.transpose(cn[:, :batch, :H], (1, 0, 2))
    return output, h_n, c_n


# ------------------------- pure-JAX reference ---------------------------------

def text_lstm_reference(inp, params, num_layers, hidden_features):
    batch, seq, _ = inp.shape
    H = hidden_features
    x = inp
    hns, cns = [], []
    for layer in range(num_layers):
        wx, wh, bx, bh = params[layer]
        h = jnp.zeros((batch, H), inp.dtype)
        c = jnp.zeros((batch, H), inp.dtype)
        ys = []
        for t in range(seq):
            gates = x[:, t, :] @ wx + bx + h @ wh + bh
            i_g = jax.nn.sigmoid(gates[:, 0 * H:1 * H])
            f_g = jax.nn.sigmoid(gates[:, 1 * H:2 * H])
            o_g = jax.nn.sigmoid(gates[:, 2 * H:3 * H])
            g_g = jnp.tanh(gates[:, 3 * H:4 * H])
            c = f_g * c + i_g * g_g
            h = o_g * jnp.tanh(c)
            ys.append(h)
        x = jnp.stack(ys, axis=1)
        hns.append(h)
        cns.append(c)
    return x, jnp.stack(hns, axis=1), jnp.stack(cns, axis=1)


# ----------------------------------- main --------------------------------------

if __name__ == "__main__":
    batch, seq, in_features, hidden_features, num_layers = 2, 8, 16, 32, 3

    key = jax.random.PRNGKey(0)
    key, kx = jax.random.split(key)
    inp = jax.random.normal(kx, (batch, seq, in_features), jnp.float32)
    params = init_params(key, in_features, hidden_features, num_layers)

    out, h_n, c_n = text_lstm_forward(
        inp, params, num_layers=num_layers, hidden_features=hidden_features)
    jax.block_until_ready((out, h_n, c_n))

    ref_out, ref_hn, ref_cn = text_lstm_reference(inp, params, num_layers, hidden_features)
    assert out.shape == (batch, seq, hidden_features)
    assert h_n.shape == (batch, num_layers, hidden_features)
    assert c_n.shape == (batch, num_layers, hidden_features)
    assert jnp.allclose(out, ref_out, atol=1e-4, rtol=1e-4)
    assert jnp.allclose(h_n, ref_hn, atol=1e-4, rtol=1e-4)
    assert jnp.allclose(c_n, ref_cn, atol=1e-4, rtol=1e-4)

    print("KERNEL_OK")
</pallas_src>

<mosaic_0001>
module attributes {stable_mosaic.version = 11 : i64} {
  func.func @_fused_lstm_kernel(%arg0: i32, %arg1: memref<8x8x128xf32, #tpu.memory_space<vmem>>, %arg2: memref<3x8x128xf32, #tpu.memory_space<vmem>>, %arg3: memref<3x8x128xf32, #tpu.memory_space<vmem>>, %arg4: memref<128x128xf32, #tpu.memory_space<vmem>>, %arg5: memref<128x128xf32, #tpu.memory_space<vmem>>, %arg6: memref<1x128xf32, #tpu.memory_space<vmem>>, %arg7: memref<256x128xf32, #tpu.memory_space<vmem>>, %arg8: memref<1x128xf32, #tpu.memory_space<vmem>>, %arg9: memref<256x128xf32, #tpu.memory_space<vmem>>, %arg10: memref<1x128xf32, #tpu.memory_space<vmem>>, %arg11: memref<8x8x128xf32, #tpu.memory_space<vmem>>, %arg12: memref<3x8x128xf32, #tpu.memory_space<vmem>>, %arg13: memref<3x8x128xf32, #tpu.memory_space<vmem>>, %arg14: memref<8x8x128xf32, #tpu.memory_space<vmem>>, %arg15: memref<3x8x128xf32, #tpu.memory_space<vmem>>, %arg16: memref<3x8x128xf32, #tpu.memory_space<vmem>>) attributes {dimension_semantics = [#tpu.dimension_semantics<arbitrary>], iteration_bounds = array<i64: 1>, scalar_prefetch = 0 : i64, scratch_operands = 3 : i64, tpu.core_type = #tpu.core_type<tc>, window_params = [{transform_indices = @transform_0, window_bounds = array<i64: 8, 8, 128>}, {pipeline_mode = #tpu.pipeline_mode<synchronous>, transform_indices = @transform_1, window_bounds = array<i64: 3, 8, 128>}, {pipeline_mode = #tpu.pipeline_mode<synchronous>, transform_indices = @transform_2, window_bounds = array<i64: 3, 8, 128>}, {pipeline_mode = #tpu.pipeline_mode<synchronous>, transform_indices = @transform_3, window_bounds = array<i64: 128, 128>}, {pipeline_mode = #tpu.pipeline_mode<synchronous>, transform_indices = @transform_4, window_bounds = array<i64: 128, 128>}, {pipeline_mode = #tpu.pipeline_mode<synchronous>, transform_indices = @transform_5, window_bounds = array<i64: 1, 128>}, {pipeline_mode = #tpu.pipeline_mode<synchronous>, transform_indices = @transform_6, window_bounds = array<i64: 256, 128>}, {pipeline_mode = #tpu.pipeline_mode<synchronous>, transform_indices = @transform_7, window_bounds = array<i64: 1, 128>}, {pipeline_mode = #tpu.pipeline_mode<synchronous>, transform_indices = @transform_8, window_bounds = array<i64: 256, 128>}, {pipeline_mode = #tpu.pipeline_mode<synchronous>, transform_indices = @transform_9, window_bounds = array<i64: 1, 128>}, {transform_indices = @transform_10, window_bounds = array<i64: 8, 8, 128>}, {pipeline_mode = #tpu.pipeline_mode<synchronous>, transform_indices = @transform_11, window_bounds = array<i64: 3, 8, 128>}, {pipeline_mode = #tpu.pipeline_mode<synchronous>, transform_indices = @transform_12, window_bounds = array<i64: 3, 8, 128>}]} {
    %c0_i32 = arith.constant 0 : i32
    %0 = arith.cmpi eq, %arg0, %c0_i32 : i32
    %1 = arith.extui %0 : i1 to i32
    %c0_i32_0 = arith.constant 0 : i32
    %2 = arith.cmpi ne, %1, %c0_i32_0 : i32
    scf.if %2 {
      %c0_233 = arith.constant 0 : index
      %c0_234 = arith.constant 0 : index
      %c0_235 = arith.constant 0 : index
      %543 = vector.load %arg2[%c0_233, %c0_234, %c0_235] : memref<3x8x128xf32, #tpu.memory_space<vmem>>, vector<3x8x128xf32>
      %c0_236 = arith.constant 0 : index
      %c0_237 = arith.constant 0 : index
      %c0_238 = arith.constant 0 : index
      %544 = vector.load %arg15[%c0_236, %c0_237, %c0_238] : memref<3x8x128xf32, #tpu.memory_space<vmem>>, vector<3x8x128xf32>
      tpu.vector_store %arg15[%c0_236, %c0_237, %c0_238], %543 {strides = array<i32>} : memref<3x8x128xf32, #tpu.memory_space<vmem>>, vector<3x8x128xf32>,
      %c0_239 = arith.constant 0 : index
      %c0_240 = arith.constant 0 : index
      %c0_241 = arith.constant 0 : index
      %545 = vector.load %arg3[%c0_239, %c0_240, %c0_241] : memref<3x8x128xf32, #tpu.memory_space<vmem>>, vector<3x8x128xf32>
      %c0_242 = arith.constant 0 : index
      %c0_243 = arith.constant 0 : index
      %c0_244 = arith.constant 0 : index
      %546 = vector.load %arg16[%c0_242, %c0_243, %c0_244] : memref<3x8x128xf32, #tpu.memory_space<vmem>>, vector<3x8x128xf32>
      tpu.vector_store %arg16[%c0_242, %c0_243, %c0_244], %545 {strides = array<i32>} : memref<3x8x128xf32, #tpu.memory_space<vmem>>, vector<3x8x128xf32>,
    } else {
    }
    %c0 = arith.constant 0 : index
    %c0_1 = arith.constant 0 : index
    %c0_2 = arith.constant 0 : index
    %3 = vector.load %arg1[%c0, %c0_1, %c0_2] : memref<8x8x128xf32, #tpu.memory_space<vmem>>, vector<8x8x128xf32>
    %4 = vector.shape_cast %3 : vector<8x8x128xf32> to vector<64x128xf32>
    %c0_3 = arith.constant 0 : index
    %c0_4 = arith.constant 0 : index
    %5 = vector.load %arg4[%c0_3, %c0_4] : memref<128x128xf32, #tpu.memory_space<vmem>>, vector<128x128xf32>
    %cst = arith.constant dense<0.000000e+00> : vector<64x128xf32>
    %6 = tpu.matmul %4, %5, %cst {dimension_numbers = #tpu.dot_dimension_numbers<[1], [0], [0], [1], [0, 0, 1, 1], [], []>} : vector<64x128xf32>, vector<128x128xf32>, vector<64x128xf32> -> vector<64x128xf32>
    %c0_5 = arith.constant 0 : index
    %c0_6 = arith.constant 0 : index
    %7 = vector.load %arg6[%c0_5, %c0_6] : memref<1x128xf32, #tpu.memory_space<vmem>>, vector<1x128xf32>
    %8 = vector.broadcast %7 : vector<1x128xf32> to vector<64x128xf32>
    %9 = arith.addf %6, %8 : vector<64x128xf32>
    %10 = vector.shape_cast %9 : vector<64x128xf32> to vector<8x8x128xf32>
    %c0_7 = arith.constant 0 : index
    %c0_8 = arith.constant 0 : index
    %c0_9 = arith.constant 0 : index
    %11 = vector.load %arg14[%c0_7, %c0_8, %c0_9] : memref<8x8x128xf32, #tpu.memory_space<vmem>>, vector<8x8x128xf32>
    tpu.vector_store %arg14[%c0_7, %c0_8, %c0_9], %10 {strides = array<i32>} : memref<8x8x128xf32, #tpu.memory_space<vmem>>, vector<8x8x128xf32>,
    %c0_10 = arith.constant 0 : index
    %c0_11 = arith.constant 0 : index
    %12 = vector.load %arg8[%c0_10, %c0_11] : memref<1x128xf32, #tpu.memory_space<vmem>>, vector<1x128xf32>
    %13 = vector.shape_cast %12 : vector<1x128xf32> to vector<1x128xf32>
    %14 = vector.broadcast %13 : vector<1x128xf32> to vector<8x128xf32>
    %c0_12 = arith.constant 0 : index
    %c0_13 = arith.constant 0 : index
    %15 = vector.load %arg10[%c0_12, %c0_13] : memref<1x128xf32, #tpu.memory_space<vmem>>, vector<1x128xf32>
    %16 = vector.shape_cast %15 : vector<1x128xf32> to vector<1x128xf32>
    %17 = vector.broadcast %16 : vector<1x128xf32> to vector<8x128xf32>
    %18 = tpu.iota {dimensions = array<i32: 1>} : vector<8x128xi32>
    %c96_i32 = arith.constant 96 : i32
    %19 = vector.broadcast %c96_i32 : i32 to vector<8x128xi32>
    %20 = arith.cmpi slt, %18, %19 : vector<8x128xi32>
    %c0_14 = arith.constant 0 : index
    %c0_15 = arith.constant 0 : index
    %c0_16 = arith.constant 0 : index
    %21 = vector.load %arg15[%c0_14, %c0_15, %c0_16] : memref<3x8x128xf32, #tpu.memory_space<vmem>>, vector<1x8x128xf32>
    %22 = vector.shape_cast %21 : vector<1x8x128xf32> to vector<8x128xf32>
    %c1 = arith.constant 1 : index
    %c0_17 = arith.constant 0 : index
    %c0_18 = arith.constant 0 : index
    %23 = vector.load %arg15[%c1, %c0_17, %c0_18] : memref<3x8x128xf32, #tpu.memory_space<vmem>>, vector<1x8x128xf32>
    %24 = vector.shape_cast %23 : vector<1x8x128xf32> to vector<8x128xf32>
    %c2 = arith.constant 2 : index
    %c0_19 = arith.constant 0 : index
    %c0_20 = arith.constant 0 : index
    %25 = vector.load %arg15[%c2, %c0_19, %c0_20] : memref<3x8x128xf32, #tpu.memory_space<vmem>>, vector<1x8x128xf32>
    %26 = vector.shape_cast %25 : vector<1x8x128xf32> to vector<8x128xf32>
    %c0_21 = arith.constant 0 : index
    %c0_22 = arith.constant 0 : index
    %c0_23 = arith.constant 0 : index
    %27 = vector.load %arg16[%c0_21, %c0_22, %c0_23] : memref<3x8x128xf32, #tpu.memory_space<vmem>>, vector<1x8x128xf32>
    %28 = vector.shape_cast %27 : vector<1x8x128xf32> to vector<8x128xf32>
    %c1_24 = arith.constant 1 : index
    %c0_25 = arith.constant 0 : index
    %c0_26 = arith.constant 0 : index
    %29 = vector.load %arg16[%c1_24, %c0_25, %c0_26] : memref<3x8x128xf32, #tpu.memory_space<vmem>>, vector<1x8x128xf32>
    %30 = vector.shape_cast %29 : vector<1x8x128xf32> to vector<8x128xf32>
    %c2_27 = arith.constant 2 : index
    %c0_28 = arith.constant 0 : index
    %c0_29 = arith.constant 0 : index
    %31 = vector.load %arg16[%c2_27, %c0_28, %c0_29] : memref<3x8x128xf32, #tpu.memory_space<vmem>>, vector<1x8x128xf32>
    %32 = vector.shape_cast %31 : vector<1x8x128xf32> to vector<8x128xf32>
    %c0_i32_30 = arith.constant 0 : i32
    %33 = arith.index_cast %c0_i32_30 : i32 to index
    %c0_31 = arith.constant 0 : index
    %c0_32 = arith.constant 0 : index
    %34 = vector.load %arg14[%33, %c0_31, %c0_32] : memref<8x8x128xf32, #tpu.memory_space<vmem>>, vector<1x8x128xf32>
    %35 = vector.shape_cast %34 : vector<1x8x128xf32> to vector<8x128xf32>
    %c0_33 = arith.constant 0 : index
    %c0_34 = arith.constant 0 : index
    %36 = vector.load %arg5[%c0_33, %c0_34] : memref<128x128xf32, #tpu.memory_space<vmem>>, vector<128x128xf32>
    %cst_35 = arith.constant dense<0.000000e+00> : vector<8x128xf32>
    %37 = tpu.matmul %22, %36, %cst_35 {dimension_numbers = #tpu.dot_dimension_numbers<[1], [0], [0], [1], [0, 0, 1, 1], [], []>} : vector<8x128xf32>, vector<128x128xf32>, vector<8x128xf32> -> vector<8x128xf32>
    %38 = arith.addf %35, %37 : vector<8x128xf32>
    %39 = arith.negf %38 : vector<8x128xf32>
    %40 = math.exp %39 : vector<8x128xf32>
    %cst_36 = arith.constant 1.000000e+00 : f32
    %41 = vector.broadcast %cst_36 : f32 to vector<8x128xf32>
    %42 = arith.addf %41, %40 : vector<8x128xf32>
    %43 = arith.divf %41, %42 : vector<8x128xf32>
    %44 = math.tanh %38 : vector<8x128xf32>
    %45 = arith.select %20, %43, %44 : vector<8x128xi1>, vector<8x128xf32>
    %c96_i32_37 = arith.constant 96 : i32
    %46 = tpu.dynamic_rotate %45 by %c96_i32_37 dim 1 : vector<8x128xf32>, i32 -> vector<8x128xf32>
    %c64_i32 = arith.constant 64 : i32
    %47 = tpu.dynamic_rotate %45 by %c64_i32 dim 1 : vector<8x128xf32>, i32 -> vector<8x128xf32>
    %c32_i32 = arith.constant 32 : i32
    %48 = tpu.dynamic_rotate %45 by %c32_i32 dim 1 : vector<8x128xf32>, i32 -> vector<8x128xf32>
    %49 = arith.mulf %46, %28 : vector<8x128xf32>
    %50 = arith.mulf %45, %48 : vector<8x128xf32>
    %51 = arith.addf %49, %50 : vector<8x128xf32>
    %52 = math.tanh %51 : vector<8x128xf32>
    %53 = arith.mulf %47, %52 : vector<8x128xf32>
    %54 = tpu.concatenate %53, %24 in 1 : vector<8x128xf32>, vector<8x128xf32> -> vector<8x256xf32>
    %c0_38 = arith.constant 0 : index
    %c0_39 = arith.constant 0 : index
    %55 = vector.load %arg7[%c0_38, %c0_39] : memref<256x128xf32, #tpu.memory_space<vmem>>, vector<256x128xf32>
    %cst_40 = arith.constant dense<0.000000e+00> : vector<8x128xf32>
    %56 = tpu.matmul %54, %55, %cst_40 {dimension_numbers = #tpu.dot_dimension_numbers<[1], [0], [0], [1], [0, 0, 1, 1], [], []>} : vector<8x256xf32>, vector<256x128xf32>, vector<8x128xf32> -> vector<8x128xf32>
    %57 = arith.addf %56, %14 : vector<8x128xf32>
    %58 = arith.negf %57 : vector<8x128xf32>
    %59 = math.exp %58 : vector<8x128xf32>
    %cst_41 = arith.constant 1.000000e+00 : f32
    %60 = vector.broadcast %cst_41 : f32 to vector<8x128xf32>
    %61 = arith.addf %60, %59 : vector<8x128xf32>
    %62 = arith.divf %60, %61 : vector<8x128xf32>
    %63 = math.tanh %57 : vector<8x128xf32>
    %64 = arith.select %20, %62, %63 : vector<8x128xi1>, vector<8x128xf32>
    %c96_i32_42 = arith.constant 96 : i32
    %65 = tpu.dynamic_rotate %64 by %c96_i32_42 dim 1 : vector<8x128xf32>, i32 -> vector<8x128xf32>
    %c64_i32_43 = arith.constant 64 : i32
    %66 = tpu.dynamic_rotate %64 by %c64_i32_43 dim 1 : vector<8x128xf32>, i32 -> vector<8x128xf32>
    %c32_i32_44 = arith.constant 32 : i32
    %67 = tpu.dynamic_rotate %64 by %c32_i32_44 dim 1 : vector<8x128xf32>, i32 -> vector<8x128xf32>
    %68 = arith.mulf %65, %30 : vector<8x128xf32>
    %69 = arith.mulf %64, %67 : vector<8x128xf32>
    %70 = arith.addf %68, %69 : vector<8x128xf32>
    %71 = math.tanh %70 : vector<8x128xf32>
    %72 = arith.mulf %66, %71 : vector<8x128xf32>
    %73 = tpu.concatenate %72, %26 in 1 : vector<8x128xf32>, vector<8x128xf32> -> vector<8x256xf32>
    %c0_45 = arith.constant 0 : index
    %c0_46 = arith.constant 0 : index
    %74 = vector.load %arg9[%c0_45, %c0_46] : memref<256x128xf32, #tpu.memory_space<vmem>>, vector<256x128xf32>
    %cst_47 = arith.constant dense<0.000000e+00> : vector<8x128xf32>
    %75 = tpu.matmul %73, %74, %cst_47 {dimension_numbers = #tpu.dot_dimension_numbers<[1], [0], [0], [1], [0, 0, 1, 1], [], []>} : vector<8x256xf32>, vector<256x128xf32>, vector<8x128xf32> -> vector<8x128xf32>
    %76 = arith.addf %75, %17 : vector<8x128xf32>
    %77 = arith.negf %76 : vector<8x128xf32>
    %78 = math.exp %77 : vector<8x128xf32>
    %cst_48 = arith.constant 1.000000e+00 : f32
    %79 = vector.broadcast %cst_48 : f32 to vector<8x128xf32>
    %80 = arith.addf %79, %78 : vector<8x128xf32>
    %81 = arith.divf %79, %80 : vector<8x128xf32>
    %82 = math.tanh %76 : vector<8x128xf32>
    %83 = arith.select %20, %81, %82 : vector<8x128xi1>, vector<8x128xf32>
    %c96_i32_49 = arith.constant 96 : i32
    %84 = tpu.dynamic_rotate %83 by %c96_i32_49 dim 1 : vector<8x128xf32>, i32 -> vector<8x128xf32>
    %c64_i32_50 = arith.constant 64 : i32
    %85 = tpu.dynamic_rotate %83 by %c64_i32_50 dim 1 : vector<8x128xf32>, i32 -> vector<8x128xf32>
    %c32_i32_51 = arith.constant 32 : i32
    %86 = tpu.dynamic_rotate %83 by %c32_i32_51 dim 1 : vector<8x128xf32>, i32 -> vector<8x128xf32>
    %87 = arith.mulf %84, %32 : vector<8x128xf32>
    %88 = arith.mulf %83, %86 : vector<8x128xf32>
    %89 = arith.addf %87, %88 : vector<8x128xf32>
    %90 = math.tanh %89 : vector<8x128xf32>
    %91 = arith.mulf %85, %90 : vector<8x128xf32>
    %92 = arith.index_cast %c0_i32_30 : i32 to index
    %c0_52 = arith.constant 0 : index
    %c0_53 = arith.constant 0 : index
    %93 = vector.load %arg11[%92, %c0_52, %c0_53] : memref<8x8x128xf32, #tpu.memory_space<vmem>>, vector<1x8x128xf32>
    %94 = vector.shape_cast %93 : vector<1x8x128xf32> to vector<8x128xf32>
    %95 = vector.shape_cast %91 : vector<8x128xf32> to vector<1x8x128xf32>
    tpu.vector_store %arg11[%92, %c0_52, %c0_53], %95 {strides = array<i32>} : memref<8x8x128xf32, #tpu.memory_space<vmem>>, vector<1x8x128xf32>,
    %c1_i32 = arith.constant 1 : i32
    %96 = arith.index_cast %c1_i32 : i32 to index
    %c0_54 = arith.constant 0 : index
    %c0_55 = arith.constant 0 : index
    %97 = vector.load %arg14[%96, %c0_54, %c0_55] : memref<8x8x128xf32, #tpu.memory_space<vmem>>, vector<1x8x128xf32>
    %98 = vector.shape_cast %97 : vector<1x8x128xf32> to vector<8x128xf32>
    %c0_56 = arith.constant 0 : index
    %c0_57 = arith.constant 0 : index
    %99 = vector.load %arg5[%c0_56, %c0_57] : memref<128x128xf32, #tpu.memory_space<vmem>>, vector<128x128xf32>
    %cst_58 = arith.constant dense<0.000000e+00> : vector<8x128xf32>
    %100 = tpu.matmul %53, %99, %cst_58 {dimension_numbers = #tpu.dot_dimension_numbers<[1], [0], [0], [1], [0, 0, 1, 1], [], []>} : vector<8x128xf32>, vector<128x128xf32>, vector<8x128xf32> -> vector<8x128xf32>
    %101 = arith.addf %98, %100 : vector<8x128xf32>
    %102 = arith.negf %101 : vector<8x128xf32>
    %103 = math.exp %102 : vector<8x128xf32>
    %cst_59 = arith.constant 1.000000e+00 : f32
    %104 = vector.broadcast %cst_59 : f32 to vector<8x128xf32>
    %105 = arith.addf %104, %103 : vector<8x128xf32>
    %106 = arith.divf %104, %105 : vector<8x128xf32>
    %107 = math.tanh %101 : vector<8x128xf32>
    %108 = arith.select %20, %106, %107 : vector<8x128xi1>, vector<8x128xf32>
    %c96_i32_60 = arith.constant 96 : i32
    %109 = tpu.dynamic_rotate %108 by %c96_i32_60 dim 1 : vector<8x128xf32>, i32 -> vector<8x128xf32>
    %c64_i32_61 = arith.constant 64 : i32
    %110 = tpu.dynamic_rotate %108 by %c64_i32_61 dim 1 : vector<8x128xf32>, i32 -> vector<8x128xf32>
    %c32_i32_62 = arith.constant 32 : i32
    %111 = tpu.dynamic_rotate %108 by %c32_i32_62 dim 1 : vector<8x128xf32>, i32 -> vector<8x128xf32>
    %112 = arith.mulf %109, %51 : vector<8x128xf32>
    %113 = arith.mulf %108, %111 : vector<8x128xf32>
    %114 = arith.addf %112, %113 : vector<8x128xf32>
    %115 = math.tanh %114 : vector<8x128xf32>
    %116 = arith.mulf %110, %115 : vector<8x128xf32>
    %117 = tpu.concatenate %116, %72 in 1 : vector<8x128xf32>, vector<8x128xf32> -> vector<8x256xf32>
    %c0_63 = arith.constant 0 : index
    %c0_64 = arith.constant 0 : index
    %118 = vector.load %arg7[%c0_63, %c0_64] : memref<256x128xf32, #tpu.memory_space<vmem>>, vector<256x128xf32>
    %cst_65 = arith.constant dense<0.000000e+00> : vector<8x128xf32>
    %119 = tpu.matmul %117, %118, %cst_65 {dimension_numbers = #tpu.dot_dimension_numbers<[1], [0], [0], [1], [0, 0, 1, 1], [], []>} : vector<8x256xf32>, vector<256x128xf32>, vector<8x128xf32> -> vector<8x128xf32>
    %120 = arith.addf %119, %14 : vector<8x128xf32>
    %121 = arith.negf %120 : vector<8x128xf32>
    %122 = math.exp %121 : vector<8x128xf32>
    %cst_66 = arith.constant 1.000000e+00 : f32
    %123 = vector.broadcast %cst_66 : f32 to vector<8x128xf32>
    %124 = arith.addf %123, %122 : vector<8x128xf32>
    %125 = arith.divf %123, %124 : vector<8x128xf32>
    %126 = math.tanh %120 : vector<8x128xf32>
    %127 = arith.select %20, %125, %126 : vector<8x128xi1>, vector<8x128xf32>
    %c96_i32_67 = arith.constant 96 : i32
    %128 = tpu.dynamic_rotate %127 by %c96_i32_67 dim 1 : vector<8x128xf32>, i32 -> vector<8x128xf32>
    %c64_i32_68 = arith.constant 64 : i32
    %129 = tpu.dynamic_rotate %127 by %c64_i32_68 dim 1 : vector<8x128xf32>, i32 -> vector<8x128xf32>
    %c32_i32_69 = arith.constant 32 : i32
    %130 = tpu.dynamic_rotate %127 by %c32_i32_69 dim 1 : vector<8x128xf32>, i32 -> vector<8x128xf32>
    %131 = arith.mulf %128, %70 : vector<8x128xf32>
    %132 = arith.mulf %127, %130 : vector<8x128xf32>
    %133 = arith.addf %131, %132 : vector<8x128xf32>
    %134 = math.tanh %133 : vector<8x128xf32>
    %135 = arith.mulf %129, %134 : vector<8x128xf32>
    %136 = tpu.concatenate %135, %91 in 1 : vector<8x128xf32>, vector<8x128xf32> -> vector<8x256xf32>
    %c0_70 = arith.constant 0 : index
    %c0_71 = arith.constant 0 : index
    %137 = vector.load %arg9[%c0_70, %c0_71] : memref<256x128xf32, #tpu.memory_space<vmem>>, vector<256x128xf32>
    %cst_72 = arith.constant dense<0.000000e+00> : vector<8x128xf32>
    %138 = tpu.matmul %136, %137, %cst_72 {dimension_numbers = #tpu.dot_dimension_numbers<[1], [0], [0], [1], [0, 0, 1, 1], [], []>} : vector<8x256xf32>, vector<256x128xf32>, vector<8x128xf32> -> vector<8x128xf32>
    %139 = arith.addf %138, %17 : vector<8x128xf32>
    %140 = arith.negf %139 : vector<8x128xf32>
    %141 = math.exp %140 : vector<8x128xf32>
    %cst_73 = arith.constant 1.000000e+00 : f32
    %142 = vector.broadcast %cst_73 : f32 to vector<8x128xf32>
    %143 = arith.addf %142, %141 : vector<8x128xf32>
    %144 = arith.divf %142, %143 : vector<8x128xf32>
    %145 = math.tanh %139 : vector<8x128xf32>
    %146 = arith.select %20, %144, %145 : vector<8x128xi1>, vector<8x128xf32>
    %c96_i32_74 = arith.constant 96 : i32
    %147 = tpu.dynamic_rotate %146 by %c96_i32_74 dim 1 : vector<8x128xf32>, i32 -> vector<8x128xf32>
    %c64_i32_75 = arith.constant 64 : i32
    %148 = tpu.dynamic_rotate %146 by %c64_i32_75 dim 1 : vector<8x128xf32>, i32 -> vector<8x128xf32>
    %c32_i32_76 = arith.constant 32 : i32
    %149 = tpu.dynamic_rotate %146 by %c32_i32_76 dim 1 : vector<8x128xf32>, i32 -> vector<8x128xf32>
    %150 = arith.mulf %147, %89 : vector<8x128xf32>
    %151 = arith.mulf %146, %149 : vector<8x128xf32>
    %152 = arith.addf %150, %151 : vector<8x128xf32>
    %153 = math.tanh %152 : vector<8x128xf32>
    %154 = arith.mulf %148, %153 : vector<8x128xf32>
    %155 = arith.index_cast %c1_i32 : i32 to index
    %c0_77 = arith.constant 0 : index
    %c0_78 = arith.constant 0 : index
    %156 = vector.load %arg11[%155, %c0_77, %c0_78] : memref<8x8x128xf32, #tpu.memory_space<vmem>>, vector<1x8x128xf32>
    %157 = vector.shape_cast %156 : vector<1x8x128xf32> to vector<8x128xf32>
    %158 = vector.shape_cast %154 : vector<8x128xf32> to vector<1x8x128xf32>
    tpu.vector_store %arg11[%155, %c0_77, %c0_78], %158 {strides = array<i32>} : memref<8x8x128xf32, #tpu.memory_space<vmem>>, vector<1x8x128xf32>,
    %c2_i32 = arith.constant 2 : i32
    %159 = arith.index_cast %c2_i32 : i32 to index
    %c0_79 = arith.constant 0 : index
    %c0_80 = arith.constant 0 : index
    %160 = vector.load %arg14[%159, %c0_79, %c0_80] : memref<8x8x128xf32, #tpu.memory_space<vmem>>, vector<1x8x128xf32>
    %161 = vector.shape_cast %160 : vector<1x8x128xf32> to vector<8x128xf32>
    %c0_81 = arith.constant 0 : index
    %c0_82 = arith.constant 0 : index
    %162 = vector.load %arg5[%c0_81, %c0_82] : memref<128x128xf32, #tpu.memory_space<vmem>>, vector<128x128xf32>
    %cst_83 = arith.constant dense<0.000000e+00> : vector<8x128xf32>
    %163 = tpu.matmul %116, %162, %cst_83 {dimension_numbers = #tpu.dot_dimension_numbers<[1], [0], [0], [1], [0, 0, 1, 1], [], []>} : vector<8x128xf32>, vector<128x128xf32>, vector<8x128xf32> -> vector<8x128xf32>
    %164 = arith.addf %161, %163 : vector<8x128xf32>
    %165 = arith.negf %164 : vector<8x128xf32>
    %166 = math.exp %165 : vector<8x128xf32>
    %cst_84 = arith.constant 1.000000e+00 : f32
    %167 = vector.broadcast %cst_84 : f32 to vector<8x128xf32>
    %168 = arith.addf %167, %166 : vector<8x128xf32>
    %169 = arith.divf %167, %168 : vector<8x128xf32>
    %170 = math.tanh %164 : vector<8x128xf32>
    %171 = arith.select %20, %169, %170 : vector<8x128xi1>, vector<8x128xf32>
    %c96_i32_85 = arith.constant 96 : i32
    %172 = tpu.dynamic_rotate %171 by %c96_i32_85 dim 1 : vector<8x128xf32>, i32 -> vector<8x128xf32>
    %c64_i32_86 = arith.constant 64 : i32
    %173 = tpu.dynamic_rotate %171 by %c64_i32_86 dim 1 : vector<8x128xf32>, i32 -> vector<8x128xf32>
    %c32_i32_87 = arith.constant 32 : i32
    %174 = tpu.dynamic_rotate %171 by %c32_i32_87 dim 1 : vector<8x128xf32>, i32 -> vector<8x128xf32>
    %175 = arith.mulf %172, %114 : vector<8x128xf32>
    %176 = arith.mulf %171, %174 : vector<8x128xf32>
    %177 = arith.addf %175, %176 : vector<8x128xf32>
    %178 = math.tanh %177 : vector<8x128xf32>
    %179 = arith.mulf %173, %178 : vector<8x128xf32>
    %180 = tpu.concatenate %179, %135 in 1 : vector<8x128xf32>, vector<8x128xf32> -> vector<8x256xf32>
    %c0_88 = arith.constant 0 : index
    %c0_89 = arith.constant 0 : index
    %181 = vector.load %arg7[%c0_88, %c0_89] : memref<256x128xf32, #tpu.memory_space<vmem>>, vector<256x128xf32>
    %cst_90 = arith.constant dense<0.000000e+00> : vector<8x128xf32>
    %182 = tpu.matmul %180, %181, %cst_90 {dimension_numbers = #tpu.dot_dimension_numbers<[1], [0], [0], [1], [0, 0, 1, 1], [], []>} : vector<8x256xf32>, vector<256x128xf32>, vector<8x128xf32> -> vector<8x128xf32>
    %183 = arith.addf %182, %14 : vector<8x128xf32>
    %184 = arith.negf %183 : vector<8x128xf32>
    %185 = math.exp %184 : vector<8x128xf32>
    %cst_91 = arith.constant 1.000000e+00 : f32
    %186 = vector.broadcast %cst_91 : f32 to vector<8x128xf32>
    %187 = arith.addf %186, %185 : vector<8x128xf32>
    %188 = arith.divf %186, %187 : vector<8x128xf32>
    %189 = math.tanh %183 : vector<8x128xf32>
    %190 = arith.select %20, %188, %189 : vector<8x128xi1>, vector<8x128xf32>
    %c96_i32_92 = arith.constant 96 : i32
    %191 = tpu.dynamic_rotate %190 by %c96_i32_92 dim 1 : vector<8x128xf32>, i32 -> vector<8x128xf32>
    %c64_i32_93 = arith.constant 64 : i32
    %192 = tpu.dynamic_rotate %190 by %c64_i32_93 dim 1 : vector<8x128xf32>, i32 -> vector<8x128xf32>
    %c32_i32_94 = arith.constant 32 : i32
    %193 = tpu.dynamic_rotate %190 by %c32_i32_94 dim 1 : vector<8x128xf32>, i32 -> vector<8x128xf32>
    %194 = arith.mulf %191, %133 : vector<8x128xf32>
    %195 = arith.mulf %190, %193 : vector<8x128xf32>
    %196 = arith.addf %194, %195 : vector<8x128xf32>
    %197 = math.tanh %196 : vector<8x128xf32>
    %198 = arith.mulf %192, %197 : vector<8x128xf32>
    %199 = tpu.concatenate %198, %154 in 1 : vector<8x128xf32>, vector<8x128xf32> -> vector<8x256xf32>
    %c0_95 = arith.constant 0 : index
    %c0_96 = arith.constant 0 : index
    %200 = vector.load %arg9[%c0_95, %c0_96] : memref<256x128xf32, #tpu.memory_space<vmem>>, vector<256x128xf32>
    %cst_97 = arith.constant dense<0.000000e+00> : vector<8x128xf32>
    %201 = tpu.matmul %199, %200, %cst_97 {dimension_numbers = #tpu.dot_dimension_numbers<[1], [0], [0], [1], [0, 0, 1, 1], [], []>} : vector<8x256xf32>, vector<256x128xf32>, vector<8x128xf32> -> vector<8x128xf32>
    %202 = arith.addf %201, %17 : vector<8x128xf32>
    %203 = arith.negf %202 : vector<8x128xf32>
    %204 = math.exp %203 : vector<8x128xf32>
    %cst_98 = arith.constant 1.000000e+00 : f32
    %205 = vector.broadcast %cst_98 : f32 to vector<8x128xf32>
    %206 = arith.addf %205, %204 : vector<8x128xf32>
    %207 = arith.divf %205, %206 : vector<8x128xf32>
    %208 = math.tanh %202 : vector<8x128xf32>
    %209 = arith.select %20, %207, %208 : vector<8x128xi1>, vector<8x128xf32>
    %c96_i32_99 = arith.constant 96 : i32
    %210 = tpu.dynamic_rotate %209 by %c96_i32_99 dim 1 : vector<8x128xf32>, i32 -> vector<8x128xf32>
    %c64_i32_100 = arith.constant 64 : i32
    %211 = tpu.dynamic_rotate %209 by %c64_i32_100 dim 1 : vector<8x128xf32>, i32 -> vector<8x128xf32>
    %c32_i32_101 = arith.constant 32 : i32
    %212 = tpu.dynamic_rotate %209 by %c32_i32_101 dim 1 : vector<8x128xf32>, i32 -> vector<8x128xf32>
    %213 = arith.mulf %210, %152 : vector<8x128xf32>
    %214 = arith.mulf %209, %212 : vector<8x128xf32>
    %215 = arith.addf %213, %214 : vector<8x128xf32>
    %216 = math.tanh %215 : vector<8x128xf32>
    %217 = arith.mulf %211, %216 : vector<8x128xf32>
    %218 = arith.index_cast %c2_i32 : i32 to index
    %c0_102 = arith.constant 0 : index
    %c0_103 = arith.constant 0 : index
    %219 = vector.load %arg11[%218, %c0_102, %c0_103] : memref<8x8x128xf32, #tpu.memory_space<vmem>>, vector<1x8x128xf32>
    %220 = vector.shape_cast %219 : vector<1x8x128xf32> to vector<8x128xf32>
    %221 = vector.shape_cast %217 : vector<8x128xf32> to vector<1x8x128xf32>
    tpu.vector_store %arg11[%218, %c0_102, %c0_103], %221 {strides = array<i32>} : memref<8x8x128xf32, #tpu.memory_space<vmem>>, vector<1x8x128xf32>,
    %c3_i32 = arith.constant 3 : i32
    %222 = arith.index_cast %c3_i32 : i32 to index
    %c0_104 = arith.constant 0 : index
    %c0_105 = arith.constant 0 : index
    %223 = vector.load %arg14[%222, %c0_104, %c0_105] : memref<8x8x128xf32, #tpu.memory_space<vmem>>, vector<1x8x128xf32>
    %224 = vector.shape_cast %223 : vector<1x8x128xf32> to vector<8x128xf32>
    %c0_106 = arith.constant 0 : index
    %c0_107 = arith.constant 0 : index
    %225 = vector.load %arg5[%c0_106, %c0_107] : memref<128x128xf32, #tpu.memory_space<vmem>>, vector<128x128xf32>
    %cst_108 = arith.constant dense<0.000000e+00> : vector<8x128xf32>
    %226 = tpu.matmul %179, %225, %cst_108 {dimension_numbers = #tpu.dot_dimension_numbers<[1], [0], [0], [1], [0, 0, 1, 1], [], []>} : vector<8x128xf32>, vector<128x128xf32>, vector<8x128xf32> -> vector<8x128xf32>
    %227 = arith.addf %224, %226 : vector<8x128xf32>
    %228 = arith.negf %227 : vector<8x128xf32>
    %229 = math.exp %228 : vector<8x128xf32>
    %cst_109 = arith.constant 1.000000e+00 : f32
    %230 = vector.broadcast %cst_109 : f32 to vector<8x128xf32>
    %231 = arith.addf %230, %229 : vector<8x128xf32>
    %232 = arith.divf %230, %231 : vector<8x128xf32>
    %233 = math.tanh %227 : vector<8x128xf32>
    %234 = arith.select %20, %232, %233 : vector<8x128xi1>, vector<8x128xf32>
    %c96_i32_110 = arith.constant 96 : i32
    %235 = tpu.dynamic_rotate %234 by %c96_i32_110 dim 1 : vector<8x128xf32>, i32 -> vector<8x128xf32>
    %c64_i32_111 = arith.constant 64 : i32
    %236 = tpu.dynamic_rotate %234 by %c64_i32_111 dim 1 : vector<8x128xf32>, i32 -> vector<8x128xf32>
    %c32_i32_112 = arith.constant 32 : i32
    %237 = tpu.dynamic_rotate %234 by %c32_i32_112 dim 1 : vector<8x128xf32>, i32 -> vector<8x128xf32>
    %238 = arith.mulf %235, %177 : vector<8x128xf32>
    %239 = arith.mulf %234, %237 : vector<8x128xf32>
    %240 = arith.addf %238, %239 : vector<8x128xf32>
    %241 = math.tanh %240 : vector<8x128xf32>
    %242 = arith.mulf %236, %241 : vector<8x128xf32>
    %243 = tpu.concatenate %242, %198 in 1 : vector<8x128xf32>, vector<8x128xf32> -> vector<8x256xf32>
    %c0_113 = arith.constant 0 : index
    %c0_114 = arith.constant 0 : index
    %244 = vector.load %arg7[%c0_113, %c0_114] : memref<256x128xf32, #tpu.memory_space<vmem>>, vector<256x128xf32>
    %cst_115 = arith.constant dense<0.000000e+00> : vector<8x128xf32>
    %245 = tpu.matmul %243, %244, %cst_115 {dimension_numbers = #tpu.dot_dimension_numbers<[1], [0], [0], [1], [0, 0, 1, 1], [], []>} : vector<8x256xf32>, vector<256x128xf32>, vector<8x128xf32> -> vector<8x128xf32>
    %246 = arith.addf %245, %14 : vector<8x128xf32>
    %247 = arith.negf %246 : vector<8x128xf32>
    %248 = math.exp %247 : vector<8x128xf32>
    %cst_116 = arith.constant 1.000000e+00 : f32
    %249 = vector.broadcast %cst_116 : f32 to vector<8x128xf32>
    %250 = arith.addf %249, %248 : vector<8x128xf32>
    %251 = arith.divf %249, %250 : vector<8x128xf32>
    %252 = math.tanh %246 : vector<8x128xf32>
    %253 = arith.select %20, %251, %252 : vector<8x128xi1>, vector<8x128xf32>
    %c96_i32_117 = arith.constant 96 : i32
    %254 = tpu.dynamic_rotate %253 by %c96_i32_117 dim 1 : vector<8x128xf32>, i32 -> vector<8x128xf32>
    %c64_i32_118 = arith.constant 64 : i32
    %255 = tpu.dynamic_rotate %253 by %c64_i32_118 dim 1 : vector<8x128xf32>, i32 -> vector<8x128xf32>
    %c32_i32_119 = arith.constant 32 : i32
    %256 = tpu.dynamic_rotate %253 by %c32_i32_119 dim 1 : vector<8x128xf32>, i32 -> vector<8x128xf32>
    %257 = arith.mulf %254, %196 : vector<8x128xf32>
    %258 = arith.mulf %253, %256 : vector<8x128xf32>
    %259 = arith.addf %257, %258 : vector<8x128xf32>
    %260 = math.tanh %259 : vector<8x128xf32>
    %261 = arith.mulf %255, %260 : vector<8x128xf32>
    %262 = tpu.concatenate %261, %217 in 1 : vector<8x128xf32>, vector<8x128xf32> -> vector<8x256xf32>
    %c0_120 = arith.constant 0 : index
    %c0_121 = arith.constant 0 : index
    %263 = vector.load %arg9[%c0_120, %c0_121] : memref<256x128xf32, #tpu.memory_space<vmem>>, vector<256x128xf32>
    %cst_122 = arith.constant dense<0.000000e+00> : vector<8x128xf32>
    %264 = tpu.matmul %262, %263, %cst_122 {dimension_numbers = #tpu.dot_dimension_numbers<[1], [0], [0], [1], [0, 0, 1, 1], [], []>} : vector<8x256xf32>, vector<256x128xf32>, vector<8x128xf32> -> vector<8x128xf32>
    %265 = arith.addf %264, %17 : vector<8x128xf32>
    %266 = arith.negf %265 : vector<8x128xf32>
    %267 = math.exp %266 : vector<8x128xf32>
    %cst_123 = arith.constant 1.000000e+00 : f32
    %268 = vector.broadcast %cst_123 : f32 to vector<8x128xf32>
    %269 = arith.addf %268, %267 : vector<8x128xf32>
    %270 = arith.divf %268, %269 : vector<8x128xf32>
    %271 = math.tanh %265 : vector<8x128xf32>
    %272 = arith.select %20, %270, %271 : vector<8x128xi1>, vector<8x128xf32>
    %c96_i32_124 = arith.constant 96 : i32
    %273 = tpu.dynamic_rotate %272 by %c96_i32_124 dim 1 : vector<8x128xf32>, i32 -> vector<8x128xf32>
    %c64_i32_125 = arith.constant 64 : i32
    %274 = tpu.dynamic_rotate %272 by %c64_i32_125 dim 1 : vector<8x128xf32>, i32 -> vector<8x128xf32>
    %c32_i32_126 = arith.constant 32 : i32
    %275 = tpu.dynamic_rotate %272 by %c32_i32_126 dim 1 : vector<8x128xf32>, i32 -> vector<8x128xf32>
    %276 = arith.mulf %273, %215 : vector<8x128xf32>
    %277 = arith.mulf %272, %275 : vector<8x128xf32>
    %278 = arith.addf %276, %277 : vector<8x128xf32>
    %279 = math.tanh %278 : vector<8x128xf32>
    %280 = arith.mulf %274, %279 : vector<8x128xf32>
    %281 = arith.index_cast %c3_i32 : i32 to index
    %c0_127 = arith.constant 0 : index
    %c0_128 = arith.constant 0 : index
    %282 = vector.load %arg11[%281, %c0_127, %c0_128] : memref<8x8x128xf32, #tpu.memory_space<vmem>>, vector<1x8x128xf32>
    %283 = vector.shape_cast %282 : vector<1x8x128xf32> to vector<8x128xf32>
    %284 = vector.shape_cast %280 : vector<8x128xf32> to vector<1x8x128xf32>
    tpu.vector_store %arg11[%281, %c0_127, %c0_128], %284 {strides = array<i32>} : memref<8x8x128xf32, #tpu.memory_space<vmem>>, vector<1x8x128xf32>,
    %c4_i32 = arith.constant 4 : i32
    %285 = arith.index_cast %c4_i32 : i32 to index
    %c0_129 = arith.constant 0 : index
    %c0_130 = arith.constant 0 : index
    %286 = vector.load %arg14[%285, %c0_129, %c0_130] : memref<8x8x128xf32, #tpu.memory_space<vmem>>, vector<1x8x128xf32>
    %287 = vector.shape_cast %286 : vector<1x8x128xf32> to vector<8x128xf32>
    %c0_131 = arith.constant 0 : index
    %c0_132 = arith.constant 0 : index
    %288 = vector.load %arg5[%c0_131, %c0_132] : memref<128x128xf32, #tpu.memory_space<vmem>>, vector<128x128xf32>
    %cst_133 = arith.constant dense<0.000000e+00> : vector<8x128xf32>
    %289 = tpu.matmul %242, %288, %cst_133 {dimension_numbers = #tpu.dot_dimension_numbers<[1], [0], [0], [1], [0, 0, 1, 1], [], []>} : vector<8x128xf32>, vector<128x128xf32>, vector<8x128xf32> -> vector<8x128xf32>
    %290 = arith.addf %287, %289 : vector<8x128xf32>
    %291 = arith.negf %290 : vector<8x128xf32>
    %292 = math.exp %291 : vector<8x128xf32>
    %cst_134 = arith.constant 1.000000e+00 : f32
    %293 = vector.broadcast %cst_134 : f32 to vector<8x128xf32>
    %294 = arith.addf %293, %292 : vector<8x128xf32>
    %295 = arith.divf %293, %294 : vector<8x128xf32>
    %296 = math.tanh %290 : vector<8x128xf32>
    %297 = arith.select %20, %295, %296 : vector<8x128xi1>, vector<8x128xf32>
    %c96_i32_135 = arith.constant 96 : i32
    %298 = tpu.dynamic_rotate %297 by %c96_i32_135 dim 1 : vector<8x128xf32>, i32 -> vector<8x128xf32>
    %c64_i32_136 = arith.constant 64 : i32
    %299 = tpu.dynamic_rotate %297 by %c64_i32_136 dim 1 : vector<8x128xf32>, i32 -> vector<8x128xf32>
    %c32_i32_137 = arith.constant 32 : i32
    %300 = tpu.dynamic_rotate %297 by %c32_i32_137 dim 1 : vector<8x128xf32>, i32 -> vector<8x128xf32>
    %301 = arith.mulf %298, %240 : vector<8x128xf32>
    %302 = arith.mulf %297, %300 : vector<8x128xf32>
    %303 = arith.addf %301, %302 : vector<8x128xf32>
    %304 = math.tanh %303 : vector<8x128xf32>
    %305 = arith.mulf %299, %304 : vector<8x128xf32>
    %306 = tpu.concatenate %305, %261 in 1 : vector<8x128xf32>, vector<8x128xf32> -> vector<8x256xf32>
    %c0_138 = arith.constant 0 : index
    %c0_139 = arith.constant 0 : index
    %307 = vector.load %arg7[%c0_138, %c0_139] : memref<256x128xf32, #tpu.memory_space<vmem>>, vector<256x128xf32>
    %cst_140 = arith.constant dense<0.000000e+00> : vector<8x128xf32>
    %308 = tpu.matmul %306, %307, %cst_140 {dimension_numbers = #tpu.dot_dimension_numbers<[1], [0], [0], [1], [0, 0, 1, 1], [], []>} : vector<8x256xf32>, vector<256x128xf32>, vector<8x128xf32> -> vector<8x128xf32>
    %309 = arith.addf %308, %14 : vector<8x128xf32>
    %310 = arith.negf %309 : vector<8x128xf32>
    %311 = math.exp %310 : vector<8x128xf32>
    %cst_141 = arith.constant 1.000000e+00 : f32
    %312 = vector.broadcast %cst_141 : f32 to vector<8x128xf32>
    %313 = arith.addf %312, %311 : vector<8x128xf32>
    %314 = arith.divf %312, %313 : vector<8x128xf32>
    %315 = math.tanh %309 : vector<8x128xf32>
    %316 = arith.select %20, %314, %315 : vector<8x128xi1>, vector<8x128xf32>
    %c96_i32_142 = arith.constant 96 : i32
    %317 = tpu.dynamic_rotate %316 by %c96_i32_142 dim 1 : vector<8x128xf32>, i32 -> vector<8x128xf32>
    %c64_i32_143 = arith.constant 64 : i32
    %318 = tpu.dynamic_rotate %316 by %c64_i32_143 dim 1 : vector<8x128xf32>, i32 -> vector<8x128xf32>
    %c32_i32_144 = arith.constant 32 : i32
    %319 = tpu.dynamic_rotate %316 by %c32_i32_144 dim 1 : vector<8x128xf32>, i32 -> vector<8x128xf32>
    %320 = arith.mulf %317, %259 : vector<8x128xf32>
    %321 = arith.mulf %316, %319 : vector<8x128xf32>
    %322 = arith.addf %320, %321 : vector<8x128xf32>
    %323 = math.tanh %322 : vector<8x128xf32>
    %324 = arith.mulf %318, %323 : vector<8x128xf32>
    %325 = tpu.concatenate %324, %280 in 1 : vector<8x128xf32>, vector<8x128xf32> -> vector<8x256xf32>
    %c0_145 = arith.constant 0 : index
    %c0_146 = arith.constant 0 : index
    %326 = vector.load %arg9[%c0_145, %c0_146] : memref<256x128xf32, #tpu.memory_space<vmem>>, vector<256x128xf32>
    %cst_147 = arith.constant dense<0.000000e+00> : vector<8x128xf32>
    %327 = tpu.matmul %325, %326, %cst_147 {dimension_numbers = #tpu.dot_dimension_numbers<[1], [0], [0], [1], [0, 0, 1, 1], [], []>} : vector<8x256xf32>, vector<256x128xf32>, vector<8x128xf32> -> vector<8x128xf32>
    %328 = arith.addf %327, %17 : vector<8x128xf32>
    %329 = arith.negf %328 : vector<8x128xf32>
    %330 = math.exp %329 : vector<8x128xf32>
    %cst_148 = arith.constant 1.000000e+00 : f32
    %331 = vector.broadcast %cst_148 : f32 to vector<8x128xf32>
    %332 = arith.addf %331, %330 : vector<8x128xf32>
    %333 = arith.divf %331, %332 : vector<8x128xf32>
    %334 = math.tanh %328 : vector<8x128xf32>
    %335 = arith.select %20, %333, %334 : vector<8x128xi1>, vector<8x128xf32>
    %c96_i32_149 = arith.constant 96 : i32
    %336 = tpu.dynamic_rotate %335 by %c96_i32_149 dim 1 : vector<8x128xf32>, i32 -> vector<8x128xf32>
    %c64_i32_150 = arith.constant 64 : i32
    %337 = tpu.dynamic_rotate %335 by %c64_i32_150 dim 1 : vector<8x128xf32>, i32 -> vector<8x128xf32>
    %c32_i32_151 = arith.constant 32 : i32
    %338 = tpu.dynamic_rotate %335 by %c32_i32_151 dim 1 : vector<8x128xf32>, i32 -> vector<8x128xf32>
    %339 = arith.mulf %336, %278 : vector<8x128xf32>
    %340 = arith.mulf %335, %338 : vector<8x128xf32>
    %341 = arith.addf %339, %340 : vector<8x128xf32>
    %342 = math.tanh %341 : vector<8x128xf32>
    %343 = arith.mulf %337, %342 : vector<8x128xf32>
    %344 = arith.index_cast %c4_i32 : i32 to index
    %c0_152 = arith.constant 0 : index
    %c0_153 = arith.constant 0 : index
    %345 = vector.load %arg11[%344, %c0_152, %c0_153] : memref<8x8x128xf32, #tpu.memory_space<vmem>>, vector<1x8x128xf32>
    %346 = vector.shape_cast %345 : vector<1x8x128xf32> to vector<8x128xf32>
    %347 = vector.shape_cast %343 : vector<8x128xf32> to vector<1x8x128xf32>
    tpu.vector_store %arg11[%344, %c0_152, %c0_153], %347 {strides = array<i32>} : memref<8x8x128xf32, #tpu.memory_space<vmem>>, vector<1x8x128xf32>,
    %c5_i32 = arith.constant 5 : i32
    %348 = arith.index_cast %c5_i32 : i32 to index
    %c0_154 = arith.constant 0 : index
    %c0_155 = arith.constant 0 : index
    %349 = vector.load %arg14[%348, %c0_154, %c0_155] : memref<8x8x128xf32, #tpu.memory_space<vmem>>, vector<1x8x128xf32>
    %350 = vector.shape_cast %349 : vector<1x8x128xf32> to vector<8x128xf32>
    %c0_156 = arith.constant 0 : index
    %c0_157 = arith.constant 0 : index
    %351 = vector.load %arg5[%c0_156, %c0_157] : memref<128x128xf32, #tpu.memory_space<vmem>>, vector<128x128xf32>
    %cst_158 = arith.constant dense<0.000000e+00> : vector<8x128xf32>
    %352 = tpu.matmul %305, %351, %cst_158 {dimension_numbers = #tpu.dot_dimension_numbers<[1], [0], [0], [1], [0, 0, 1, 1], [], []>} : vector<8x128xf32>, vector<128x128xf32>, vector<8x128xf32> -> vector<8x128xf32>
    %353 = arith.addf %350, %352 : vector<8x128xf32>
    %354 = arith.negf %353 : vector<8x128xf32>
    %355 = math.exp %354 : vector<8x128xf32>
    %cst_159 = arith.constant 1.000000e+00 : f32
    %356 = vector.broadcast %cst_159 : f32 to vector<8x128xf32>
    %357 = arith.addf %356, %355 : vector<8x128xf32>
    %358 = arith.divf %356, %357 : vector<8x128xf32>
    %359 = math.tanh %353 : vector<8x128xf32>
    %360 = arith.select %20, %358, %359 : vector<8x128xi1>, vector<8x128xf32>
    %c96_i32_160 = arith.constant 96 : i32
    %361 = tpu.dynamic_rotate %360 by %c96_i32_160 dim 1 : vector<8x128xf32>, i32 -> vector<8x128xf32>
    %c64_i32_161 = arith.constant 64 : i32
    %362 = tpu.dynamic_rotate %360 by %c64_i32_161 dim 1 : vector<8x128xf32>, i32 -> vector<8x128xf32>
    %c32_i32_162 = arith.constant 32 : i32
    %363 = tpu.dynamic_rotate %360 by %c32_i32_162 dim 1 : vector<8x128xf32>, i32 -> vector<8x128xf32>
    %364 = arith.mulf %361, %303 : vector<8x128xf32>
    %365 = arith.mulf %360, %363 : vector<8x128xf32>
    %366 = arith.addf %364, %365 : vector<8x128xf32>
    %367 = math.tanh %366 : vector<8x128xf32>
    %368 = arith.mulf %362, %367 : vector<8x128xf32>
    %369 = tpu.concatenate %368, %324 in 1 : vector<8x128xf32>, vector<8x128xf32> -> vector<8x256xf32>
    %c0_163 = arith.constant 0 : index
    %c0_164 = arith.constant 0 : index
    %370 = vector.load %arg7[%c0_163, %c0_164] : memref<256x128xf32, #tpu.memory_space<vmem>>, vector<256x128xf32>
    %cst_165 = arith.constant dense<0.000000e+00> : vector<8x128xf32>
    %371 = tpu.matmul %369, %370, %cst_165 {dimension_numbers = #tpu.dot_dimension_numbers<[1], [0], [0], [1], [0, 0, 1, 1], [], []>} : vector<8x256xf32>, vector<256x128xf32>, vector<8x128xf32> -> vector<8x128xf32>
    %372 = arith.addf %371, %14 : vector<8x128xf32>
    %373 = arith.negf %372 : vector<8x128xf32>
    %374 = math.exp %373 : vector<8x128xf32>
    %cst_166 = arith.constant 1.000000e+00 : f32
    %375 = vector.broadcast %cst_166 : f32 to vector<8x128xf32>
    %376 = arith.addf %375, %374 : vector<8x128xf32>
    %377 = arith.divf %375, %376 : vector<8x128xf32>
    %378 = math.tanh %372 : vector<8x128xf32>
    %379 = arith.select %20, %377, %378 : vector<8x128xi1>, vector<8x128xf32>
    %c96_i32_167 = arith.constant 96 : i32
    %380 = tpu.dynamic_rotate %379 by %c96_i32_167 dim 1 : vector<8x128xf32>, i32 -> vector<8x128xf32>
    %c64_i32_168 = arith.constant 64 : i32
    %381 = tpu.dynamic_rotate %379 by %c64_i32_168 dim 1 : vector<8x128xf32>, i32 -> vector<8x128xf32>
    %c32_i32_169 = arith.constant 32 : i32
    %382 = tpu.dynamic_rotate %379 by %c32_i32_169 dim 1 : vector<8x128xf32>, i32 -> vector<8x128xf32>
    %383 = arith.mulf %380, %322 : vector<8x128xf32>
    %384 = arith.mulf %379, %382 : vector<8x128xf32>
    %385 = arith.addf %383, %384 : vector<8x128xf32>
    %386 = math.tanh %385 : vector<8x128xf32>
    %387 = arith.mulf %381, %386 : vector<8x128xf32>
    %388 = tpu.concatenate %387, %343 in 1 : vector<8x128xf32>, vector<8x128xf32> -> vector<8x256xf32>
    %c0_170 = arith.constant 0 : index
    %c0_171 = arith.constant 0 : index
    %389 = vector.load %arg9[%c0_170, %c0_171] : memref<256x128xf32, #tpu.memory_space<vmem>>, vector<256x128xf32>
    %cst_172 = arith.constant dense<0.000000e+00> : vector<8x128xf32>
    %390 = tpu.matmul %388, %389, %cst_172 {dimension_numbers = #tpu.dot_dimension_numbers<[1], [0], [0], [1], [0, 0, 1, 1], [], []>} : vector<8x256xf32>, vector<256x128xf32>, vector<8x128xf32> -> vector<8x128xf32>
    %391 = arith.addf %390, %17 : vector<8x128xf32>
    %392 = arith.negf %391 : vector<8x128xf32>
    %393 = math.exp %392 : vector<8x128xf32>
    %cst_173 = arith.constant 1.000000e+00 : f32
    %394 = vector.broadcast %cst_173 : f32 to vector<8x128xf32>
    %395 = arith.addf %394, %393 : vector<8x128xf32>
    %396 = arith.divf %394, %395 : vector<8x128xf32>
    %397 = math.tanh %391 : vector<8x128xf32>
    %398 = arith.select %20, %396, %397 : vector<8x128xi1>, vector<8x128xf32>
    %c96_i32_174 = arith.constant 96 : i32
    %399 = tpu.dynamic_rotate %398 by %c96_i32_174 dim 1 : vector<8x128xf32>, i32 -> vector<8x128xf32>
    %c64_i32_175 = arith.constant 64 : i32
    %400 = tpu.dynamic_rotate %398 by %c64_i32_175 dim 1 : vector<8x128xf32>, i32 -> vector<8x128xf32>
    %c32_i32_176 = arith.constant 32 : i32
    %401 = tpu.dynamic_rotate %398 by %c32_i32_176 dim 1 : vector<8x128xf32>, i32 -> vector<8x128xf32>
    %402 = arith.mulf %399, %341 : vector<8x128xf32>
    %403 = arith.mulf %398, %401 : vector<8x128xf32>
    %404 = arith.addf %402, %403 : vector<8x128xf32>
    %405 = math.tanh %404 : vector<8x128xf32>
    %406 = arith.mulf %400, %405 : vector<8x128xf32>
    %407 = arith.index_cast %c5_i32 : i32 to index
    %c0_177 = arith.constant 0 : index
    %c0_178 = arith.constant 0 : index
    %408 = vector.load %arg11[%407, %c0_177, %c0_178] : memref<8x8x128xf32, #tpu.memory_space<vmem>>, vector<1x8x128xf32>
    %409 = vector.shape_cast %408 : vector<1x8x128xf32> to vector<8x128xf32>
    %410 = vector.shape_cast %406 : vector<8x128xf32> to vector<1x8x128xf32>
    tpu.vector_store %arg11[%407, %c0_177, %c0_178], %410 {strides = array<i32>} : memref<8x8x128xf32, #tpu.memory_space<vmem>>, vector<1x8x128xf32>,
    %c6_i32 = arith.constant 6 : i32
    %411 = arith.index_cast %c6_i32 : i32 to index
    %c0_179 = arith.constant 0 : index
    %c0_180 = arith.constant 0 : index
    %412 = vector.load %arg14[%411, %c0_179, %c0_180] : memref<8x8x128xf32, #tpu.memory_space<vmem>>, vector<1x8x128xf32>
    %413 = vector.shape_cast %412 : vector<1x8x128xf32> to vector<8x128xf32>
    %c0_181 = arith.constant 0 : index
    %c0_182 = arith.constant 0 : index
    %414 = vector.load %arg5[%c0_181, %c0_182] : memref<128x128xf32, #tpu.memory_space<vmem>>, vector<128x128xf32>
    %cst_183 = arith.constant dense<0.000000e+00> : vector<8x128xf32>
    %415 = tpu.matmul %368, %414, %cst_183 {dimension_numbers = #tpu.dot_dimension_numbers<[1], [0], [0], [1], [0, 0, 1, 1], [], []>} : vector<8x128xf32>, vector<128x128xf32>, vector<8x128xf32> -> vector<8x128xf32>
    %416 = arith.addf %413, %415 : vector<8x128xf32>
    %417 = arith.negf %416 : vector<8x128xf32>
    %418 = math.exp %417 : vector<8x128xf32>
    %cst_184 = arith.constant 1.000000e+00 : f32
    %419 = vector.broadcast %cst_184 : f32 to vector<8x128xf32>
    %420 = arith.addf %419, %418 : vector<8x128xf32>
    %421 = arith.divf %419, %420 : vector<8x128xf32>
    %422 = math.tanh %416 : vector<8x128xf32>
    %423 = arith.select %20, %421, %422 : vector<8x128xi1>, vector<8x128xf32>
    %c96_i32_185 = arith.constant 96 : i32
    %424 = tpu.dynamic_rotate %423 by %c96_i32_185 dim 1 : vector<8x128xf32>, i32 -> vector<8x128xf32>
    %c64_i32_186 = arith.constant 64 : i32
    %425 = tpu.dynamic_rotate %423 by %c64_i32_186 dim 1 : vector<8x128xf32>, i32 -> vector<8x128xf32>
    %c32_i32_187 = arith.constant 32 : i32
    %426 = tpu.dynamic_rotate %423 by %c32_i32_187 dim 1 : vector<8x128xf32>, i32 -> vector<8x128xf32>
    %427 = arith.mulf %424, %366 : vector<8x128xf32>
    %428 = arith.mulf %423, %426 : vector<8x128xf32>
    %429 = arith.addf %427, %428 : vector<8x128xf32>
    %430 = math.tanh %429 : vector<8x128xf32>
    %431 = arith.mulf %425, %430 : vector<8x128xf32>
    %432 = tpu.concatenate %431, %387 in 1 : vector<8x128xf32>, vector<8x128xf32> -> vector<8x256xf32>
    %c0_188 = arith.constant 0 : index
    %c0_189 = arith.constant 0 : index
    %433 = vector.load %arg7[%c0_188, %c0_189] : memref<256x128xf32, #tpu.memory_space<vmem>>, vector<256x128xf32>
    %cst_190 = arith.constant dense<0.000000e+00> : vector<8x128xf32>
    %434 = tpu.matmul %432, %433, %cst_190 {dimension_numbers = #tpu.dot_dimension_numbers<[1], [0], [0], [1], [0, 0, 1, 1], [], []>} : vector<8x256xf32>, vector<256x128xf32>, vector<8x128xf32> -> vector<8x128xf32>
    %435 = arith.addf %434, %14 : vector<8x128xf32>
    %436 = arith.negf %435 : vector<8x128xf32>
    %437 = math.exp %436 : vector<8x128xf32>
    %cst_191 = arith.constant 1.000000e+00 : f32
    %438 = vector.broadcast %cst_191 : f32 to vector<8x128xf32>
    %439 = arith.addf %438, %437 : vector<8x128xf32>
    %440 = arith.divf %438, %439 : vector<8x128xf32>
    %441 = math.tanh %435 : vector<8x128xf32>
    %442 = arith.select %20, %440, %441 : vector<8x128xi1>, vector<8x128xf32>
    %c96_i32_192 = arith.constant 96 : i32
    %443 = tpu.dynamic_rotate %442 by %c96_i32_192 dim 1 : vector<8x128xf32>, i32 -> vector<8x128xf32>
    %c64_i32_193 = arith.constant 64 : i32
    %444 = tpu.dynamic_rotate %442 by %c64_i32_193 dim 1 : vector<8x128xf32>, i32 -> vector<8x128xf32>
    %c32_i32_194 = arith.constant 32 : i32
    %445 = tpu.dynamic_rotate %442 by %c32_i32_194 dim 1 : vector<8x128xf32>, i32 -> vector<8x128xf32>
    %446 = arith.mulf %443, %385 : vector<8x128xf32>
    %447 = arith.mulf %442, %445 : vector<8x128xf32>
    %448 = arith.addf %446, %447 : vector<8x128xf32>
    %449 = math.tanh %448 : vector<8x128xf32>
    %450 = arith.mulf %444, %449 : vector<8x128xf32>
    %451 = tpu.concatenate %450, %406 in 1 : vector<8x128xf32>, vector<8x128xf32> -> vector<8x256xf32>
    %c0_195 = arith.constant 0 : index
    %c0_196 = arith.constant 0 : index
    %452 = vector.load %arg9[%c0_195, %c0_196] : memref<256x128xf32, #tpu.memory_space<vmem>>, vector<256x128xf32>
    %cst_197 = arith.constant dense<0.000000e+00> : vector<8x128xf32>
    %453 = tpu.matmul %451, %452, %cst_197 {dimension_numbers = #tpu.dot_dimension_numbers<[1], [0], [0], [1], [0, 0, 1, 1], [], []>} : vector<8x256xf32>, vector<256x128xf32>, vector<8x128xf32> -> vector<8x128xf32>
    %454 = arith.addf %453, %17 : vector<8x128xf32>
    %455 = arith.negf %454 : vector<8x128xf32>
    %456 = math.exp %455 : vector<8x128xf32>
    %cst_198 = arith.constant 1.000000e+00 : f32
    %457 = vector.broadcast %cst_198 : f32 to vector<8x128xf32>
    %458 = arith.addf %457, %456 : vector<8x128xf32>
    %459 = arith.divf %457, %458 : vector<8x128xf32>
    %460 = math.tanh %454 : vector<8x128xf32>
    %461 = arith.select %20, %459, %460 : vector<8x128xi1>, vector<8x128xf32>
    %c96_i32_199 = arith.constant 96 : i32
    %462 = tpu.dynamic_rotate %461 by %c96_i32_199 dim 1 : vector<8x128xf32>, i32 -> vector<8x128xf32>
    %c64_i32_200 = arith.constant 64 : i32
    %463 = tpu.dynamic_rotate %461 by %c64_i32_200 dim 1 : vector<8x128xf32>, i32 -> vector<8x128xf32>
    %c32_i32_201 = arith.constant 32 : i32
    %464 = tpu.dynamic_rotate %461 by %c32_i32_201 dim 1 : vector<8x128xf32>, i32 -> vector<8x128xf32>
    %465 = arith.mulf %462, %404 : vector<8x128xf32>
    %466 = arith.mulf %461, %464 : vector<8x128xf32>
    %467 = arith.addf %465, %466 : vector<8x128xf32>
    %468 = math.tanh %467 : vector<8x128xf32>
    %469 = arith.mulf %463, %468 : vector<8x128xf32>
    %470 = arith.index_cast %c6_i32 : i32 to index
    %c0_202 = arith.constant 0 : index
    %c0_203 = arith.constant 0 : index
    %471 = vector.load %arg11[%470, %c0_202, %c0_203] : memref<8x8x128xf32, #tpu.memory_space<vmem>>, vector<1x8x128xf32>
    %472 = vector.shape_cast %471 : vector<1x8x128xf32> to vector<8x128xf32>
    %473 = vector.shape_cast %469 : vector<8x128xf32> to vector<1x8x128xf32>
    tpu.vector_store %arg11[%470, %c0_202, %c0_203], %473 {strides = array<i32>} : memref<8x8x128xf32, #tpu.memory_space<vmem>>, vector<1x8x128xf32>,
    %c7_i32 = arith.constant 7 : i32
    %474 = arith.index_cast %c7_i32 : i32 to index
    %c0_204 = arith.constant 0 : index
    %c0_205 = arith.constant 0 : index
    %475 = vector.load %arg14[%474, %c0_204, %c0_205] : memref<8x8x128xf32, #tpu.memory_space<vmem>>, vector<1x8x128xf32>
    %476 = vector.shape_cast %475 : vector<1x8x128xf32> to vector<8x128xf32>
    %c0_206 = arith.constant 0 : index
    %c0_207 = arith.constant 0 : index
    %477 = vector.load %arg5[%c0_206, %c0_207] : memref<128x128xf32, #tpu.memory_space<vmem>>, vector<128x128xf32>
    %cst_208 = arith.constant dense<0.000000e+00> : vector<8x128xf32>
    %478 = tpu.matmul %431, %477, %cst_208 {dimension_numbers = #tpu.dot_dimension_numbers<[1], [0], [0], [1], [0, 0, 1, 1], [], []>} : vector<8x128xf32>, vector<128x128xf32>, vector<8x128xf32> -> vector<8x128xf32>
    %479 = arith.addf %476, %478 : vector<8x128xf32>
    %480 = arith.negf %479 : vector<8x128xf32>
    %481 = math.exp %480 : vector<8x128xf32>
    %cst_209 = arith.constant 1.000000e+00 : f32
    %482 = vector.broadcast %cst_209 : f32 to vector<8x128xf32>
    %483 = arith.addf %482, %481 : vector<8x128xf32>
    %484 = arith.divf %482, %483 : vector<8x128xf32>
    %485 = math.tanh %479 : vector<8x128xf32>
    %486 = arith.select %20, %484, %485 : vector<8x128xi1>, vector<8x128xf32>
    %c96_i32_210 = arith.constant 96 : i32
    %487 = tpu.dynamic_rotate %486 by %c96_i32_210 dim 1 : vector<8x128xf32>, i32 -> vector<8x128xf32>
    %c64_i32_211 = arith.constant 64 : i32
    %488 = tpu.dynamic_rotate %486 by %c64_i32_211 dim 1 : vector<8x128xf32>, i32 -> vector<8x128xf32>
    %c32_i32_212 = arith.constant 32 : i32
    %489 = tpu.dynamic_rotate %486 by %c32_i32_212 dim 1 : vector<8x128xf32>, i32 -> vector<8x128xf32>
    %490 = arith.mulf %487, %429 : vector<8x128xf32>
    %491 = arith.mulf %486, %489 : vector<8x128xf32>
    %492 = arith.addf %490, %491 : vector<8x128xf32>
    %493 = math.tanh %492 : vector<8x128xf32>
    %494 = arith.mulf %488, %493 : vector<8x128xf32>
    %495 = tpu.concatenate %494, %450 in 1 : vector<8x128xf32>, vector<8x128xf32> -> vector<8x256xf32>
    %c0_213 = arith.constant 0 : index
    %c0_214 = arith.constant 0 : index
    %496 = vector.load %arg7[%c0_213, %c0_214] : memref<256x128xf32, #tpu.memory_space<vmem>>, vector<256x128xf32>
    %cst_215 = arith.constant dense<0.000000e+00> : vector<8x128xf32>
    %497 = tpu.matmul %495, %496, %cst_215 {dimension_numbers = #tpu.dot_dimension_numbers<[1], [0], [0], [1], [0, 0, 1, 1], [], []>} : vector<8x256xf32>, vector<256x128xf32>, vector<8x128xf32> -> vector<8x128xf32>
    %498 = arith.addf %497, %14 : vector<8x128xf32>
    %499 = arith.negf %498 : vector<8x128xf32>
    %500 = math.exp %499 : vector<8x128xf32>
    %cst_216 = arith.constant 1.000000e+00 : f32
    %501 = vector.broadcast %cst_216 : f32 to vector<8x128xf32>
    %502 = arith.addf %501, %500 : vector<8x128xf32>
    %503 = arith.divf %501, %502 : vector<8x128xf32>
    %504 = math.tanh %498 : vector<8x128xf32>
    %505 = arith.select %20, %503, %504 : vector<8x128xi1>, vector<8x128xf32>
    %c96_i32_217 = arith.constant 96 : i32
    %506 = tpu.dynamic_rotate %505 by %c96_i32_217 dim 1 : vector<8x128xf32>, i32 -> vector<8x128xf32>
    %c64_i32_218 = arith.constant 64 : i32
    %507 = tpu.dynamic_rotate %505 by %c64_i32_218 dim 1 : vector<8x128xf32>, i32 -> vector<8x128xf32>
    %c32_i32_219 = arith.constant 32 : i32
    %508 = tpu.dynamic_rotate %505 by %c32_i32_219 dim 1 : vector<8x128xf32>, i32 -> vector<8x128xf32>
    %509 = arith.mulf %506, %448 : vector<8x128xf32>
    %510 = arith.mulf %505, %508 : vector<8x128xf32>
    %511 = arith.addf %509, %510 : vector<8x128xf32>
    %512 = math.tanh %511 : vector<8x128xf32>
    %513 = arith.mulf %507, %512 : vector<8x128xf32>
    %514 = tpu.concatenate %513, %469 in 1 : vector<8x128xf32>, vector<8x128xf32> -> vector<8x256xf32>
    %c0_220 = arith.constant 0 : index
    %c0_221 = arith.constant 0 : index
    %515 = vector.load %arg9[%c0_220, %c0_221] : memref<256x128xf32, #tpu.memory_space<vmem>>, vector<256x128xf32>
    %cst_222 = arith.constant dense<0.000000e+00> : vector<8x128xf32>
    %516 = tpu.matmul %514, %515, %cst_222 {dimension_numbers = #tpu.dot_dimension_numbers<[1], [0], [0], [1], [0, 0, 1, 1], [], []>} : vector<8x256xf32>, vector<256x128xf32>, vector<8x128xf32> -> vector<8x128xf32>
    %517 = arith.addf %516, %17 : vector<8x128xf32>
    %518 = arith.negf %517 : vector<8x128xf32>
    %519 = math.exp %518 : vector<8x128xf32>
    %cst_223 = arith.constant 1.000000e+00 : f32
    %520 = vector.broadcast %cst_223 : f32 to vector<8x128xf32>
    %521 = arith.addf %520, %519 : vector<8x128xf32>
    %522 = arith.divf %520, %521 : vector<8x128xf32>
    %523 = math.tanh %517 : vector<8x128xf32>
    %524 = arith.select %20, %522, %523 : vector<8x128xi1>, vector<8x128xf32>
    %c96_i32_224 = arith.constant 96 : i32
    %525 = tpu.dynamic_rotate %524 by %c96_i32_224 dim 1 : vector<8x128xf32>, i32 -> vector<8x128xf32>
    %c64_i32_225 = arith.constant 64 : i32
    %526 = tpu.dynamic_rotate %524 by %c64_i32_225 dim 1 : vector<8x128xf32>, i32 -> vector<8x128xf32>
    %c32_i32_226 = arith.constant 32 : i32
    %527 = tpu.dynamic_rotate %524 by %c32_i32_226 dim 1 : vector<8x128xf32>, i32 -> vector<8x128xf32>
    %528 = arith.mulf %525, %467 : vector<8x128xf32>
    %529 = arith.mulf %524, %527 : vector<8x128xf32>
    %530 = arith.addf %528, %529 : vector<8x128xf32>
    %531 = math.tanh %530 : vector<8x128xf32>
    %532 = arith.mulf %526, %531 : vector<8x128xf32>
    %533 = arith.index_cast %c7_i32 : i32 to index
    %c0_227 = arith.constant 0 : index
    %c0_228 = arith.constant 0 : index
    %534 = vector.load %arg11[%533, %c0_227, %c0_228] : memref<8x8x128xf32, #tpu.memory_space<vmem>>, vector<1x8x128xf32>
    %535 = vector.shape_cast %534 : vector<1x8x128xf32> to vector<8x128xf32>
    %536 = vector.shape_cast %532 : vector<8x128xf32> to vector<1x8x128xf32>
    tpu.vector_store %arg11[%533, %c0_227, %c0_228], %536 {strides = array<i32>} : memref<8x8x128xf32, #tpu.memory_space<vmem>>, vector<1x8x128xf32>,
    %c8_i32 = arith.constant 8 : i32
    %c0_i32_229 = arith.constant 0 : i32
    %537 = arith.cmpi ne, %arg0, %c0_i32_229 : i32
    %538 = arith.extui %537 : i1 to i32
    %c0_i32_230 = arith.constant 0 : i32
    %539 = arith.cmpi ne, %538, %c0_i32_230 : i32
    scf.if %539 {
      %c0_233 = arith.constant 0 : index
      %c0_234 = arith.constant 0 : index
      %c0_235 = arith.constant 0 : index
      %543 = vector.load %arg15[%c0_233, %c0_234, %c0_235] : memref<3x8x128xf32, #tpu.memory_space<vmem>>, vector<1x8x128xf32>
      %544 = vector.shape_cast %543 : vector<1x8x128xf32> to vector<8x128xf32>
      %545 = vector.shape_cast %494 : vector<8x128xf32> to vector<1x8x128xf32>
      tpu.vector_store %arg15[%c0_233, %c0_234, %c0_235], %545 {strides = array<i32>} : memref<3x8x128xf32, #tpu.memory_space<vmem>>, vector<1x8x128xf32>,
      %c0_236 = arith.constant 0 : index
      %c0_237 = arith.constant 0 : index
      %c0_238 = arith.constant 0 : index
      %546 = vector.load %arg16[%c0_236, %c0_237, %c0_238] : memref<3x8x128xf32, #tpu.memory_space<vmem>>, vector<1x8x128xf32>
      %547 = vector.shape_cast %546 : vector<1x8x128xf32> to vector<8x128xf32>
      %548 = vector.shape_cast %492 : vector<8x128xf32> to vector<1x8x128xf32>
      tpu.vector_store %arg16[%c0_236, %c0_237, %c0_238], %548 {strides = array<i32>} : memref<3x8x128xf32, #tpu.memory_space<vmem>>, vector<1x8x128xf32>,
      %c1_239 = arith.constant 1 : index
      %c0_240 = arith.constant 0 : index
      %c0_241 = arith.constant 0 : index
      %549 = vector.load %arg15[%c1_239, %c0_240, %c0_241] : memref<3x8x128xf32, #tpu.memory_space<vmem>>, vector<1x8x128xf32>
      %550 = vector.shape_cast %549 : vector<1x8x128xf32> to vector<8x128xf32>
      %551 = vector.shape_cast %513 : vector<8x128xf32> to vector<1x8x128xf32>
      tpu.vector_store %arg15[%c1_239, %c0_240, %c0_241], %551 {strides = array<i32>} : memref<3x8x128xf32, #tpu.memory_space<vmem>>, vector<1x8x128xf32>,
      %c1_242 = arith.constant 1 : index
      %c0_243 = arith.constant 0 : index
      %c0_244 = arith.constant 0 : index
      %552 = vector.load %arg16[%c1_242, %c0_243, %c0_244] : memref<3x8x128xf32, #tpu.memory_space<vmem>>, vector<1x8x128xf32>
      %553 = vector.shape_cast %552 : vector<1x8x128xf32> to vector<8x128xf32>
      %554 = vector.shape_cast %511 : vector<8x128xf32> to vector<1x8x128xf32>
      tpu.vector_store %arg16[%c1_242, %c0_243, %c0_244], %554 {strides = array<i32>} : memref<3x8x128xf32, #tpu.memory_space<vmem>>, vector<1x8x128xf32>,
      %c2_245 = arith.constant 2 : index
      %c0_246 = arith.constant 0 : index
      %c0_247 = arith.constant 0 : index
      %555 = vector.load %arg15[%c2_245, %c0_246, %c0_247] : memref<3x8x128xf32, #tpu.memory_space<vmem>>, vector<1x8x128xf32>
      %556 = vector.shape_cast %555 : vector<1x8x128xf32> to vector<8x128xf32>
      %557 = vector.shape_cast %532 : vector<8x128xf32> to vector<1x8x128xf32>
      tpu.vector_store %arg15[%c2_245, %c0_246, %c0_247], %557 {strides = array<i32>} : memref<3x8x128xf32, #tpu.memory_space<vmem>>, vector<1x8x128xf32>,
      %c2_248 = arith.constant 2 : index
      %c0_249 = arith.constant 0 : index
      %c0_250 = arith.constant 0 : index
      %558 = vector.load %arg16[%c2_248, %c0_249, %c0_250] : memref<3x8x128xf32, #tpu.memory_space<vmem>>, vector<1x8x128xf32>
      %559 = vector.shape_cast %558 : vector<1x8x128xf32> to vector<8x128xf32>
      %560 = vector.shape_cast %530 : vector<8x128xf32> to vector<1x8x128xf32>
      tpu.vector_store %arg16[%c2_248, %c0_249, %c0_250], %560 {strides = array<i32>} : memref<3x8x128xf32, #tpu.memory_space<vmem>>, vector<1x8x128xf32>,
    } else {
    }
    %c0_i32_231 = arith.constant 0 : i32
    %540 = arith.cmpi eq, %arg0, %c0_i32_231 : i32
    %541 = arith.extui %540 : i1 to i32
    %c0_i32_232 = arith.constant 0 : i32
    %542 = arith.cmpi ne, %541, %c0_i32_232 : i32
    scf.if %542 {
      %c0_233 = arith.constant 0 : index
      %c0_234 = arith.constant 0 : index
      %c0_235 = arith.constant 0 : index
      %543 = vector.load %arg12[%c0_233, %c0_234, %c0_235] : memref<3x8x128xf32, #tpu.memory_space<vmem>>, vector<1x8x128xf32>
      %544 = vector.shape_cast %543 : vector<1x8x128xf32> to vector<8x128xf32>
      %545 = vector.shape_cast %494 : vector<8x128xf32> to vector<1x8x128xf32>
      tpu.vector_store %arg12[%c0_233, %c0_234, %c0_235], %545 {strides = array<i32>} : memref<3x8x128xf32, #tpu.memory_space<vmem>>, vector<1x8x128xf32>,
      %c0_236 = arith.constant 0 : index
      %c0_237 = arith.constant 0 : index
      %c0_238 = arith.constant 0 : index
      %546 = vector.load %arg13[%c0_236, %c0_237, %c0_238] : memref<3x8x128xf32, #tpu.memory_space<vmem>>, vector<1x8x128xf32>
      %547 = vector.shape_cast %546 : vector<1x8x128xf32> to vector<8x128xf32>
      %548 = vector.shape_cast %492 : vector<8x128xf32> to vector<1x8x128xf32>
      tpu.vector_store %arg13[%c0_236, %c0_237, %c0_238], %548 {strides = array<i32>} : memref<3x8x128xf32, #tpu.memory_space<vmem>>, vector<1x8x128xf32>,
      %c1_239 = arith.constant 1 : index
      %c0_240 = arith.constant 0 : index
      %c0_241 = arith.constant 0 : index
      %549 = vector.load %arg12[%c1_239, %c0_240, %c0_241] : memref<3x8x128xf32, #tpu.memory_space<vmem>>, vector<1x8x128xf32>
      %550 = vector.shape_cast %549 : vector<1x8x128xf32> to vector<8x128xf32>
      %551 = vector.shape_cast %513 : vector<8x128xf32> to vector<1x8x128xf32>
      tpu.vector_store %arg12[%c1_239, %c0_240, %c0_241], %551 {strides = array<i32>} : memref<3x8x128xf32, #tpu.memory_space<vmem>>, vector<1x8x128xf32>,
      %c1_242 = arith.constant 1 : index
      %c0_243 = arith.constant 0 : index
      %c0_244 = arith.constant 0 : index
      %552 = vector.load %arg13[%c1_242, %c0_243, %c0_244] : memref<3x8x128xf32, #tpu.memory_space<vmem>>, vector<1x8x128xf32>
      %553 = vector.shape_cast %552 : vector<1x8x128xf32> to vector<8x128xf32>
      %554 = vector.shape_cast %511 : vector<8x128xf32> to vector<1x8x128xf32>
      tpu.vector_store %arg13[%c1_242, %c0_243, %c0_244], %554 {strides = array<i32>} : memref<3x8x128xf32, #tpu.memory_space<vmem>>, vector<1x8x128xf32>,
      %c2_245 = arith.constant 2 : index
      %c0_246 = arith.constant 0 : index
      %c0_247 = arith.constant 0 : index
      %555 = vector.load %arg12[%c2_245, %c0_246, %c0_247] : memref<3x8x128xf32, #tpu.memory_space<vmem>>, vector<1x8x128xf32>
      %556 = vector.shape_cast %555 : vector<1x8x128xf32> to vector<8x128xf32>
      %557 = vector.shape_cast %532 : vector<8x128xf32> to vector<1x8x128xf32>
      tpu.vector_store %arg12[%c2_245, %c0_246, %c0_247], %557 {strides = array<i32>} : memref<3x8x128xf32, #tpu.memory_space<vmem>>, vector<1x8x128xf32>,
      %c2_248 = arith.constant 2 : index
      %c0_249 = arith.constant 0 : index
      %c0_250 = arith.constant 0 : index
      %558 = vector.load %arg13[%c2_248, %c0_249, %c0_250] : memref<3x8x128xf32, #tpu.memory_space<vmem>>, vector<1x8x128xf32>
      %559 = vector.shape_cast %558 : vector<1x8x128xf32> to vector<8x128xf32>
      %560 = vector.shape_cast %530 : vector<8x128xf32> to vector<1x8x128xf32>
      tpu.vector_store %arg13[%c2_248, %c0_249, %c0_250], %560 {strides = array<i32>} : memref<3x8x128xf32, #tpu.memory_space<vmem>>, vector<1x8x128xf32>,
    } else {
    }
    return
  }
  func.func @transform_0(%arg0: i32) -> (i32, i32, i32) {
    %c0_i32 = arith.constant 0 : i32
    %c0_i32_0 = arith.constant 0 : i32
    %c0_i32_1 = arith.constant 0 : i32
    return %arg0, %c0_i32, %c0_i32_0 : i32, i32, i32
  }
  func.func @transform_1(%arg0: i32) -> (i32, i32, i32) {
    %c0_i32 = arith.constant 0 : i32
    %c0_i32_0 = arith.constant 0 : i32
    %c0_i32_1 = arith.constant 0 : i32
    %c0_i32_2 = arith.constant 0 : i32
    return %c0_i32, %c0_i32_0, %c0_i32_1 : i32, i32, i32
  }
  func.func @transform_2(%arg0: i32) -> (i32, i32, i32) {
    %c0_i32 = arith.constant 0 : i32
    %c0_i32_0 = arith.constant 0 : i32
    %c0_i32_1 = arith.constant 0 : i32
    %c0_i32_2 = arith.constant 0 : i32
    return %c0_i32, %c0_i32_0, %c0_i32_1 : i32, i32, i32
  }
  func.func @transform_3(%arg0: i32) -> (i32, i32) {
    %c0_i32 = arith.constant 0 : i32
    %c0_i32_0 = arith.constant 0 : i32
    %c0_i32_1 = arith.constant 0 : i32
    return %c0_i32, %c0_i32_0 : i32, i32
  }
  func.func @transform_4(%arg0: i32) -> (i32, i32) {
    %c0_i32 = arith.constant 0 : i32
    %c0_i32_0 = arith.constant 0 : i32
    %c0_i32_1 = arith.constant 0 : i32
    return %c0_i32, %c0_i32_0 : i32, i32
  }
  func.func @transform_5(%arg0: i32) -> (i32, i32) {
    %c0_i32 = arith.constant 0 : i32
    %c0_i32_0 = arith.constant 0 : i32
    %c0_i32_1 = arith.constant 0 : i32
    return %c0_i32, %c0_i32_0 : i32, i32
  }
  func.func @transform_6(%arg0: i32) -> (i32, i32) {
    %c0_i32 = arith.constant 0 : i32
    %c0_i32_0 = arith.constant 0 : i32
    %c0_i32_1 = arith.constant 0 : i32
    return %c0_i32, %c0_i32_0 : i32, i32
  }
  func.func @transform_7(%arg0: i32) -> (i32, i32) {
    %c0_i32 = arith.constant 0 : i32
    %c0_i32_0 = arith.constant 0 : i32
    %c0_i32_1 = arith.constant 0 : i32
    return %c0_i32, %c0_i32_0 : i32, i32
  }
  func.func @transform_8(%arg0: i32) -> (i32, i32) {
    %c0_i32 = arith.constant 0 : i32
    %c0_i32_0 = arith.constant 0 : i32
    %c0_i32_1 = arith.constant 0 : i32
    return %c0_i32, %c0_i32_0 : i32, i32
  }
  func.func @transform_9(%arg0: i32) -> (i32, i32) {
    %c0_i32 = arith.constant 0 : i32
    %c0_i32_0 = arith.constant 0 : i32
    %c0_i32_1 = arith.constant 0 : i32
    return %c0_i32, %c0_i32_0 : i32, i32
  }
  func.func @transform_10(%arg0: i32) -> (i32, i32, i32) {
    %c0_i32 = arith.constant 0 : i32
    %c0_i32_0 = arith.constant 0 : i32
    %c0_i32_1 = arith.constant 0 : i32
    return %arg0, %c0_i32, %c0_i32_0 : i32, i32, i32
  }
  func.func @transform_11(%arg0: i32) -> (i32, i32, i32) {
    %c0_i32 = arith.constant 0 : i32
    %c0_i32_0 = arith.constant 0 : i32
    %c0_i32_1 = arith.constant 0 : i32
    %c0_i32_2 = arith.constant 0 : i32
    return %c0_i32, %c0_i32_0, %c0_i32_1 : i32, i32, i32
  }
  func.func @transform_12(%arg0: i32) -> (i32, i32, i32) {
    %c0_i32 = arith.constant 0 : i32
    %c0_i32_0 = arith.constant 0 : i32
    %c0_i32_1 = arith.constant 0 : i32
    %c0_i32_2 = arith.constant 0 : i32
    return %c0_i32, %c0_i32_0, %c0_i32_1 : i32, i32, i32
  }
}

</mosaic_0001>

<llo_original>
// kernel: text_lstm_forward.1
$region0: #{text_lstm_forward.1}
  #allocation0 [shape = 'u32[]', space=smem, size = 0x4, offset = 0x4, fixed_abs, tag = 'smem constant byte address 0x4 - core index']
  #allocation1 [shape = 'u32[144,128]{1,0:T(1,128)}', space=vmem, size = 0x12000, scoped, tag = 'internal scratch']
  #allocation2 [shape = 'f32[8,8,128]{2,1,0:T(8,128)}', space=vmem, size = 0x8000, scoped, tag = 'scratch operand']
  #allocation3 [shape = 'f32[3,8,128]{2,1,0:T(8,128)}', space=vmem, size = 0x3000, scoped, tag = 'scratch operand']
  #allocation4 [shape = 'f32[3,8,128]{2,1,0:T(8,128)}', space=vmem, size = 0x3000, scoped, tag = 'scratch operand']
  %s0 = inlined_call_operand.vmem [shape: f32[8,8,128], index: 0, kind: input, shape index: {}]
  %s1 = inlined_call_operand.vmem [shape: f32[3,8,128], index: 1, kind: input, shape index: {}, may-alias: {1,2}]
  %s2 = inlined_call_operand.vmem [shape: f32[3,8,128], index: 2, kind: input, shape index: {}, may-alias: {1,2}]
  %s3 = inlined_call_operand.vmem [shape: f32[128,128], index: 3, kind: input, shape index: {}]
  %s4 = inlined_call_operand.vmem [shape: f32[128,128], index: 4, kind: input, shape index: {}]
  %s5 = inlined_call_operand.vmem [shape: f32[1,128], index: 5, kind: input, shape index: {}]
  %s6 = inlined_call_operand.vmem [shape: f32[256,128], index: 6, kind: input, shape index: {}]
  %s7 = inlined_call_operand.vmem [shape: f32[1,128], index: 7, kind: input, shape index: {}]
  %s8 = inlined_call_operand.vmem [shape: f32[256,128], index: 8, kind: input, shape index: {}]
  %s9 = inlined_call_operand.vmem [shape: f32[1,128], index: 9, kind: input, shape index: {}]
  %s10 = inlined_call_operand.vmem [shape: f32[8,8,128], index: 10, kind: output, shape index: {0}]
  %s11 = inlined_call_operand.vmem [shape: f32[3,8,128], index: 11, kind: output, shape index: {1}]
  %s12 = inlined_call_operand.vmem [shape: f32[3,8,128], index: 12, kind: output, shape index: {2}]
  %13 = xla_tuple %s10, %s11, %s12
  %s14 = sld [smem:[#allocation0]]
  $region78: #{text_lstm_forward.1} parent=0
    _
  %s16 = ssub.s32 1, %s14
  %s17 = scalar_select 0, %s16, %s14
  // Predicated region
  $region2: #{text_lstm_forward.1} parent=0 // pred_check
    _
  $region3: #{text_lstm_forward.1} parent=0 // pred_check_branch
    %19 = sbr.rel (0) target = $region5
  $region4: #{text_lstm_forward.1} parent=0 // pred_region
    _
  $region5: #{text_lstm_forward.1} parent=0 // pred_fallthru
    _
  // Predicated region
  $region6: #{text_lstm_forward.1} parent=0 // pred_check
    _
  $region7: #{text_lstm_forward.1} parent=0 // pred_check_branch
    %21 = sbr.rel (0) target = $region9
  $region8: #{text_lstm_forward.1} parent=0 // pred_region
    _
  $region9: #{text_lstm_forward.1} parent=0 // pred_fallthru
    _
  // Predicated region
  $region10: #{text_lstm_forward.1} parent=0 // pred_check
    _
  $region11: #{text_lstm_forward.1} parent=0 // pred_check_branch
    %23 = sbr.rel (0) target = $region13
  $region12: #{text_lstm_forward.1} parent=0 // pred_region
    _
  $region13: #{text_lstm_forward.1} parent=0 // pred_fallthru
    _
  // Predicated region
  $region14: #{text_lstm_forward.1} parent=0 // pred_check
    _
  $region15: #{text_lstm_forward.1} parent=0 // pred_check_branch
    %25 = sbr.rel (0) target = $region17
  $region16: #{text_lstm_forward.1} parent=0 // pred_region
    _
  $region17: #{text_lstm_forward.1} parent=0 // pred_fallthru
    _
  // Predicated region
  $region18: #{text_lstm_forward.1} parent=0 // pred_check
    _
  $region19: #{text_lstm_forward.1} parent=0 // pred_check_branch
    %27 = sbr.rel (0) target = $region21
  $region20: #{text_lstm_forward.1} parent=0 // pred_region
    _
  $region21: #{text_lstm_forward.1} parent=0 // pred_fallthru
    _
  // Predicated region
  $region22: #{text_lstm_forward.1} parent=0 // pred_check
    _
  $region23: #{text_lstm_forward.1} parent=0 // pred_check_branch
    %29 = sbr.rel (0) target = $region25
  $region24: #{text_lstm_forward.1} parent=0 // pred_region
    _
  $region25: #{text_lstm_forward.1} parent=0 // pred_fallthru
    _
  // Predicated region
  $region26: #{text_lstm_forward.1} parent=0 // pred_check
    _
  $region27: #{text_lstm_forward.1} parent=0 // pred_check_branch
    %31 = sbr.rel (0) target = $region29
  $region28: #{text_lstm_forward.1} parent=0 // pred_region
    _
  $region29: #{text_lstm_forward.1} parent=0 // pred_fallthru
    _
  // Predicated region
  $region30: #{text_lstm_forward.1} parent=0 // pred_check
    _
  $region31: #{text_lstm_forward.1} parent=0 // pred_check_branch
    %33 = sbr.rel (0) target = $region33
  $region32: #{text_lstm_forward.1} parent=0 // pred_region
    _
  $region33: #{text_lstm_forward.1} parent=0 // pred_fallthru
    _
  // Predicated region
  $region34: #{text_lstm_forward.1} parent=0 // pred_check
    _
  $region35: #{text_lstm_forward.1} parent=0 // pred_check_branch
    %35 = sbr.rel (0) target = $region37
  $region36: #{text_lstm_forward.1} parent=0 // pred_region
    _
  $region37: #{text_lstm_forward.1} parent=0 // pred_fallthru
    _
  // Predicated region
  $region38: #{text_lstm_forward.1} parent=0 // pred_check
    _
  $region39: #{text_lstm_forward.1} parent=0 // pred_check_branch
    %37 = sbr.rel (0) target = $region41
  $region40: #{text_lstm_forward.1} parent=0 // pred_region
    _
  $region41: #{text_lstm_forward.1} parent=0 // pred_fallthru
    _
  %p38 = scmp.eq.s32.totalorder 0, 0
  // Predicated region
  $region42: #{text_lstm_forward.1} parent=0 // pred_check
    %p39 = pneg %p38
  $region43: #{text_lstm_forward.1} parent=0 // pred_check_branch
    %41 = sbr.rel (%p39) target = $region45
  $region44: #{text_lstm_forward.1} parent=0 // pred_region
    %v42 = vld [vmem:[%s1] sm:$0xff]
    %v43 = vld [vmem:[%s1 + $0x8] sm:$0xff]
    %v44 = vld [vmem:[%s1 + $0x10] sm:$0xff]
    %45 = vst [vmem:[#allocation3] sm:$0xff] %v42
    %46 = vst [vmem:[#allocation3 + $0x8] sm:$0xff] %v43
    %47 = vst [vmem:[#allocation3 + $0x10] sm:$0xff] %v44
    %v48 = vld [vmem:[%s2] sm:$0xff]
    %v49 = vld [vmem:[%s2 + $0x8] sm:$0xff]
    %v50 = vld [vmem:[%s2 + $0x10] sm:$0xff]
    %51 = vst [vmem:[#allocation4] sm:$0xff] %v48
    %52 = vst [vmem:[#allocation4 + $0x8] sm:$0xff] %v49
    %53 = vst [vmem:[#allocation4 + $0x10] sm:$0xff] %v50
  $region45: #{text_lstm_forward.1} parent=0 // pred_fallthru
    _
  %v54 = vld [vmem:[%s0] sm:$0xff]
  %v55 = vld [vmem:[%s0 + $0x8] sm:$0xff]
  %v56 = vld [vmem:[%s0 + $0x10] sm:$0xff]
  %v57 = vld [vmem:[%s0 + $0x18] sm:$0xff]
  %v58 = vld [vmem:[%s0 + $0x20] sm:$0xff]
  %v59 = vld [vmem:[%s0 + $0x28] sm:$0xff]
  %v60 = vld [vmem:[%s0 + $0x30] sm:$0xff]
  %v61 = vld [vmem:[%s0 + $0x38] sm:$0xff]
  %v62 = vld [vmem:[%s3] sm:$0xff]
  %v63 = vld [vmem:[%s3 + $0x8] sm:$0xff]
  %v64 = vld [vmem:[%s3 + $0x10] sm:$0xff]
  %v65 = vld [vmem:[%s3 + $0x18] sm:$0xff]
  %v66 = vld [vmem:[%s3 + $0x20] sm:$0xff]
  %v67 = vld [vmem:[%s3 + $0x28] sm:$0xff]
  %v68 = vld [vmem:[%s3 + $0x30] sm:$0xff]
  %v69 = vld [vmem:[%s3 + $0x38] sm:$0xff]
  %v70 = vld [vmem:[%s3 + $0x40] sm:$0xff]
  %v71 = vld [vmem:[%s3 + $0x48] sm:$0xff]
  %v72 = vld [vmem:[%s3 + $0x50] sm:$0xff]
  %v73 = vld [vmem:[%s3 + $0x58] sm:$0xff]
  %v74 = vld [vmem:[%s3 + $0x60] sm:$0xff]
  %v75 = vld [vmem:[%s3 + $0x68] sm:$0xff]
  %v76 = vld [vmem:[%s3 + $0x70] sm:$0xff]
  %v77 = vld [vmem:[%s3 + $0x78] sm:$0xff]
  %v78 = vld [vmem:[%s5] sm:$0x1]
  %v80 = vlaneseq
  %v81 = vshrl.u32 %v80, 7
  %v82 = vsub.s32 0, %v81
  %v83 = vrot.slane %v78, %v82
  %85 = vmatprep.subr.mxu0 0.0
  %86 = vmatpush1.msra.mxu0 %v62
  %87 = vmatprep.subr.mxu0 0.0
  %88 = vmatpush1.msra.mxu0 %v63
  %89 = vmatprep.subr.mxu0 0.0
  %90 = vmatpush1.msra.mxu0 %v64
  %91 = vmatprep.subr.mxu0 0.0
  %92 = vmatpush1.msra.mxu0 %v65
  %93 = vmatprep.subr.mxu0 0.0
  %94 = vmatpush1.msra.mxu0 %v66
  %95 = vmatprep.subr.mxu0 0.0
  %96 = vmatpush1.msra.mxu0 %v67
  %97 = vmatprep.subr.mxu0 0.0
  %98 = vmatpush1.msra.mxu0 %v68
  %99 = vmatprep.subr.mxu0 0.0
  %100 = vmatpush1.msra.mxu0 %v69
  %101 = vmatprep.subr.mxu0 0.0
  %102 = vmatpush1.msra.mxu0 %v70
  %103 = vmatprep.subr.mxu0 0.0
  %104 = vmatpush1.msra.mxu0 %v71
  %105 = vmatprep.subr.mxu0 0.0
  %106 = vmatpush1.msra.mxu0 %v72
  %107 = vmatprep.subr.mxu0 0.0
  %108 = vmatpush1.msra.mxu0 %v73
  %109 = vmatprep.subr.mxu0 0.0
  %110 = vmatpush1.msra.mxu0 %v74
  %111 = vmatprep.subr.mxu0 0.0
  %112 = vmatpush1.msra.mxu0 %v75
  %113 = vmatprep.subr.mxu0 0.0
  %114 = vmatpush1.msra.mxu0 %v76
  %115 = vmatprep.subr.mxu0 0.0
  %116 = vmatpush1.msra.mxu0 %v77
  %117 = vmatprep.subr.mxu0 0.0
  %118 = vmatpush1.msra.mxu0 0.0
  %119 = vmatprep.subr.mxu0 0.0
  %120 = vmatpush1.msra.mxu0 0.0
  %121 = vmatprep.subr.mxu0 0.0
  %122 = vmatpush1.msra.mxu0 0.0
  %123 = vmatprep.subr.mxu0 0.0
  %124 = vmatpush1.msra.mxu0 0.0
  %125 = vmatprep.subr.mxu0 0.0
  %126 = vmatpush1.msra.mxu0 0.0
  %127 = vmatprep.subr.mxu0 0.0
  %128 = vmatpush1.msra.mxu0 0.0
  %129 = vmatprep.subr.mxu0 0.0
  %130 = vmatpush1.msra.mxu0 0.0
  %131 = vmatprep.subr.mxu0 0.0
  %132 = vmatpush1.msra.mxu0 0.0
  %133 = vmatprep.subr.mxu0 0.0
  %134 = vmatpush1.msra.mxu0 0.0
  %135 = vmatprep.subr.mxu0 0.0
  %136 = vmatpush1.msra.mxu0 0.0
  %137 = vmatprep.subr.mxu0 0.0
  %138 = vmatpush1.msra.mxu0 0.0
  %139 = vmatprep.subr.mxu0 0.0
  %140 = vmatpush1.msra.mxu0 0.0
  %141 = vmatprep.subr.mxu0 0.0
  %142 = vmatpush1.msra.mxu0 0.0
  %143 = vmatprep.subr.mxu0 0.0
  %144 = vmatpush1.msra.mxu0 0.0
  %145 = vmatprep.subr.mxu0 0.0
  %146 = vmatpush1.msra.mxu0 0.0
  %147 = vmatprep.subr.mxu0 0.0
  %148 = vmatpush1.msra.mxu0 0.0
  %149 = vmatprep.mubr.f32.mxu0 0.0
  %150 = vmatmul.mubr.f32.gmra.mrb[0].mxu0 %v54
  %v151 = vpop.f32.mrb[0].mxu0
  %v152 = vadd.f32 %v83, %v151
  %v153 = vpop.f32.mrb[0].mxu0
  %154 = vmatprep.mubr.f32.mxu0 0.0
  %155 = vmatmul.mubr.f32.gmra.mrb[0].mxu0 %v55
  %v156 = vpop.f32.mrb[0].mxu0
  %v157 = vadd.f32 %v83, %v156
  %v158 = vpop.f32.mrb[0].mxu0
  %159 = vmatprep.mubr.f32.mxu0 0.0
  %160 = vmatmul.mubr.f32.gmra.mrb[0].mxu0 %v56
  %v161 = vpop.f32.mrb[0].mxu0
  %v162 = vadd.f32 %v83, %v161
  %v163 = vpop.f32.mrb[0].mxu0
  %164 = vmatprep.mubr.f32.mxu0 0.0
  %165 = vmatmul.mubr.f32.gmra.mrb[0].mxu0 %v57
  %v166 = vpop.f32.mrb[0].mxu0
  %v167 = vadd.f32 %v83, %v166
  %v168 = vpop.f32.mrb[0].mxu0
  %169 = vmatprep.mubr.f32.mxu0 0.0
  %170 = vmatmul.mubr.f32.gmra.mrb[0].mxu0 %v58
  %v171 = vpop.f32.mrb[0].mxu0
  %v172 = vadd.f32 %v83, %v171
  %v173 = vpop.f32.mrb[0].mxu0
  %174 = vmatprep.mubr.f32.mxu0 0.0
  %175 = vmatmul.mubr.f32.gmra.mrb[0].mxu0 %v59
  %v176 = vpop.f32.mrb[0].mxu0
  %v177 = vadd.f32 %v83, %v176
  %v178 = vpop.f32.mrb[0].mxu0
  %179 = vmatprep.mubr.f32.mxu0 0.0
  %180 = vmatmul.mubr.f32.gmra.mrb[0].mxu0 %v60
  %v181 = vpop.f32.mrb[0].mxu0
  %v182 = vadd.f32 %v83, %v181
  %v183 = vpop.f32.mrb[0].mxu0
  %184 = vmatprep.mubr.f32.mxu0 0.0
  %185 = vmatmul.mubr.f32.gmra.mrb[0].mxu0 %v61
  %v186 = vpop.f32.mrb[0].mxu0
  %v187 = vadd.f32 %v83, %v186
  %v188 = vpop.f32.mrb[0].mxu0
  %189 = vdwg.mxu0
  %190 = vst [vmem:[#allocation2] sm:$0xff] %v152
  %191 = vst [vmem:[#allocation2 + $0x8] sm:$0xff] %v157
  %192 = vst [vmem:[#allocation2 + $0x10] sm:$0xff] %v162
  %193 = vst [vmem:[#allocation2 + $0x18] sm:$0xff] %v167
  %194 = vst [vmem:[#allocation2 + $0x20] sm:$0xff] %v172
  %195 = vst [vmem:[#allocation2 + $0x28] sm:$0xff] %v177
  %196 = vst [vmem:[#allocation2 + $0x30] sm:$0xff] %v182
  %197 = vst [vmem:[#allocation2 + $0x38] sm:$0xff] %v187
  %v198 = vld [vmem:[%s7] sm:$0x1]
  %v200 = vlaneseq
  %v201 = vshrl.u32 %v200, 7
  %v202 = vsub.s32 0, %v201
  %v203 = vrot.slane %v198, %v202
  %v205 = vld [vmem:[%s9] sm:$0x1]
  %v207 = vlaneseq
  %v208 = vshrl.u32 %v207, 7
  %v209 = vsub.s32 0, %v208
  %v210 = vrot.slane %v205, %v209
  %v212 = vlaneseq
  %v213 = vand.u32 %v212, 127
  %vm214 = vcmp.lt.s32.totalorder %v213, 96
  %v215 = vld [vmem:[#allocation3] sm:$0xff]
  %s216 = scalar_lea.vmem [#allocation3], 8
  %v217 = vld [vmem:[%s216] sm:$0xff]
  %s218 = scalar_lea.vmem [#allocation3], 16
  %v219 = vld [vmem:[%s218] sm:$0xff]
  %v220 = vld [vmem:[#allocation4] sm:$0xff]
  %s221 = scalar_lea.vmem [#allocation4], 8
  %v222 = vld [vmem:[%s221] sm:$0xff]
  %s223 = scalar_lea.vmem [#allocation4], 16
  %v224 = vld [vmem:[%s223] sm:$0xff]
  %v225 = vld [vmem:[#allocation2] sm:$0xff]
  %v226 = vld [vmem:[%s4] sm:$0xff]
  %v227 = vld [vmem:[%s4 + $0x8] sm:$0xff]
  %v228 = vld [vmem:[%s4 + $0x10] sm:$0xff]
  %v229 = vld [vmem:[%s4 + $0x18] sm:$0xff]
  %v230 = vld [vmem:[%s4 + $0x20] sm:$0xff]
  %v231 = vld [vmem:[%s4 + $0x28] sm:$0xff]
  %v232 = vld [vmem:[%s4 + $0x30] sm:$0xff]
  %v233 = vld [vmem:[%s4 + $0x38] sm:$0xff]
  %v234 = vld [vmem:[%s4 + $0x40] sm:$0xff]
  %v235 = vld [vmem:[%s4 + $0x48] sm:$0xff]
  %v236 = vld [vmem:[%s4 + $0x50] sm:$0xff]
  %v237 = vld [vmem:[%s4 + $0x58] sm:$0xff]
  %v238 = vld [vmem:[%s4 + $0x60] sm:$0xff]
  %v239 = vld [vmem:[%s4 + $0x68] sm:$0xff]
  %v240 = vld [vmem:[%s4 + $0x70] sm:$0xff]
  %v241 = vld [vmem:[%s4 + $0x78] sm:$0xff]
  %242 = vmatprep.subr.mxu0 0.0
  %243 = vmatpush1.msra.mxu0 %v226
  %244 = vmatprep.subr.mxu0 0.0
  %245 = vmatpush1.msra.mxu0 %v227
  %246 = vmatprep.subr.mxu0 0.0
  %247 = vmatpush1.msra.mxu0 %v228
  %248 = vmatprep.subr.mxu0 0.0
  %249 = vmatpush1.msra.mxu0 %v229
  %250 = vmatprep.subr.mxu0 0.0
  %251 = vmatpush1.msra.mxu0 %v230
  %252 = vmatprep.subr.mxu0 0.0
  %253 = vmatpush1.msra.mxu0 %v231
  %254 = vmatprep.subr.mxu0 0.0
  %255 = vmatpush1.msra.mxu0 %v232
  %256 = vmatprep.subr.mxu0 0.0
  %257 = vmatpush1.msra.mxu0 %v233
  %258 = vmatprep.subr.mxu0 0.0
  %259 = vmatpush1.msra.mxu0 %v234
  %260 = vmatprep.subr.mxu0 0.0
  %261 = vmatpush1.msra.mxu0 %v235
  %262 = vmatprep.subr.mxu0 0.0
  %263 = vmatpush1.msra.mxu0 %v236
  %264 = vmatprep.subr.mxu0 0.0
  %265 = vmatpush1.msra.mxu0 %v237
  %266 = vmatprep.subr.mxu0 0.0
  %267 = vmatpush1.msra.mxu0 %v238
  %268 = vmatprep.subr.mxu0 0.0
  %269 = vmatpush1.msra.mxu0 %v239
  %270 = vmatprep.subr.mxu0 0.0
  %271 = vmatpush1.msra.mxu0 %v240
  %272 = vmatprep.subr.mxu0 0.0
  %273 = vmatpush1.msra.mxu0 %v241
  %274 = vmatprep.subr.mxu0 0.0
  %275 = vmatpush1.msra.mxu0 0.0
  %276 = vmatprep.subr.mxu0 0.0
  %277 = vmatpush1.msra.mxu0 0.0
  %278 = vmatprep.subr.mxu0 0.0
  %279 = vmatpush1.msra.mxu0 0.0
  %280 = vmatprep.subr.mxu0 0.0
  %281 = vmatpush1.msra.mxu0 0.0
  %282 = vmatprep.subr.mxu0 0.0
  %283 = vmatpush1.msra.mxu0 0.0
  %284 = vmatprep.subr.mxu0 0.0
  %285 = vmatpush1.msra.mxu0 0.0
  %286 = vmatprep.subr.mxu0 0.0
  %287 = vmatpush1.msra.mxu0 0.0
  %288 = vmatprep.subr.mxu0 0.0
  %289 = vmatpush1.msra.mxu0 0.0
  %290 = vmatprep.subr.mxu0 0.0
  %291 = vmatpush1.msra.mxu0 0.0
  %292 = vmatprep.subr.mxu0 0.0
  %293 = vmatpush1.msra.mxu0 0.0
  %294 = vmatprep.subr.mxu0 0.0
  %295 = vmatpush1.msra.mxu0 0.0
  %296 = vmatprep.subr.mxu0 0.0
  %297 = vmatpush1.msra.mxu0 0.0
  %298 = vmatprep.subr.mxu0 0.0
  %299 = vmatpush1.msra.mxu0 0.0
  %300 = vmatprep.subr.mxu0 0.0
  %301 = vmatpush1.msra.mxu0 0.0
  %302 = vmatprep.subr.mxu0 0.0
  %303 = vmatpush1.msra.mxu0 0.0
  %304 = vmatprep.subr.mxu0 0.0
  %305 = vmatpush1.msra.mxu0 0.0
  %306 = vmatprep.mubr.f32.mxu0 0.0
  %307 = vmatmul.mubr.f32.gmra.mrb[0].mxu0 %v215
  %v308 = vpop.f32.mrb[0].mxu0
  %v309 = vadd.f32 0.0, %v308
  %v310 = vpop.f32.mrb[0].mxu0
  %311 = vdwg.mxu0
  %v312 = vadd.f32 %v225, %v309
  %v313 = vxor.u32 %v312, 2147483648
  %v314 = vmul.f32 %v313, 1.442695
  %v315 = vpow.pop %v314
  %v316 = vadd.f32 %v315, 1.0
  %v317 = vrcp.pop %v316
  %v318 = vmul.f32 1.0, %v317
  %v319 = vtanh.pop %v312
  %v320 = vsel %vm214, %v318, %v319
  %321 = vrot.lane.b32.xlu0 %v320, 96
  %v322 = vpop.permute.xlu0 %321
  %323 = vrot.lane.b32.xlu0 %v320, 64
  %v324 = vpop.permute.xlu0 %323
  %325 = vrot.lane.b32.xlu0 %v320, 32
  %v326 = vpop.permute.xlu0 %325
  %v327 = vmul.f32 %v322, %v220
  %v328 = vmul.f32 %v320, %v326
  %v329 = vadd.f32 %v327, %v328
  %v330 = vtanh.pop %v329
  %v331 = vmul.f32 %v324, %v330
  %v332 = vld [vmem:[%s6] sm:$0xff]
  %v333 = vld [vmem:[%s6 + $0x8] sm:$0xff]
  %v334 = vld [vmem:[%s6 + $0x10] sm:$0xff]
  %v335 = vld [vmem:[%s6 + $0x18] sm:$0xff]
  %v336 = vld [vmem:[%s6 + $0x20] sm:$0xff]
  %v337 = vld [vmem:[%s6 + $0x28] sm:$0xff]
  %v338 = vld [vmem:[%s6 + $0x30] sm:$0xff]
  %v339 = vld [vmem:[%s6 + $0x38] sm:$0xff]
  %v340 = vld [vmem:[%s6 + $0x40] sm:$0xff]
  %v341 = vld [vmem:[%s6 + $0x48] sm:$0xff]
  %v342 = vld [vmem:[%s6 + $0x50] sm:$0xff]
  %v343 = vld [vmem:[%s6 + $0x58] sm:$0xff]
  %v344 = vld [vmem:[%s6 + $0x60] sm:$0xff]
  %v345 = vld [vmem:[%s6 + $0x68] sm:$0xff]
  %v346 = vld [vmem:[%s6 + $0x70] sm:$0xff]
  %v347 = vld [vmem:[%s6 + $0x78] sm:$0xff]
  %v348 = vld [vmem:[%s6 + $0x80] sm:$0xff]
  %v349 = vld [vmem:[%s6 + $0x88] sm:$0xff]
  %v350 = vld [vmem:[%s6 + $0x90] sm:$0xff]
  %v351 = vld [vmem:[%s6 + $0x98] sm:$0xff]
  %v352 = vld [vmem:[%s6 + $0xa0] sm:$0xff]
  %v353 = vld [vmem:[%s6 + $0xa8] sm:$0xff]
  %v354 = vld [vmem:[%s6 + $0xb0] sm:$0xff]
  %v355 = vld [vmem:[%s6 + $0xb8] sm:$0xff]
  %v356 = vld [vmem:[%s6 + $0xc0] sm:$0xff]
  %v357 = vld [vmem:[%s6 + $0xc8] sm:$0xff]
  %v358 = vld [vmem:[%s6 + $0xd0] sm:$0xff]
  %v359 = vld [vmem:[%s6 + $0xd8] sm:$0xff]
  %v360 = vld [vmem:[%s6 + $0xe0] sm:$0xff]
  %v361 = vld [vmem:[%s6 + $0xe8] sm:$0xff]
  %v362 = vld [vmem:[%s6 + $0xf0] sm:$0xff]
  %v363 = vld [vmem:[%s6 + $0xf8] sm:$0xff]
  %364 = vmatprep.subr.mxu0 0.0
  %365 = vmatpush1.msra.mxu0 %v332
  %366 = vmatprep.subr.mxu0 0.0
  %367 = vmatpush1.msra.mxu0 %v333
  %368 = vmatprep.subr.mxu0 0.0
  %369 = vmatpush1.msra.mxu0 %v334
  %370 = vmatprep.subr.mxu0 0.0
  %371 = vmatpush1.msra.mxu0 %v335
  %372 = vmatprep.subr.mxu0 0.0
  %373 = vmatpush1.msra.mxu0 %v336
  %374 = vmatprep.subr.mxu0 0.0
  %375 = vmatpush1.msra.mxu0 %v337
  %376 = vmatprep.subr.mxu0 0.0
  %377 = vmatpush1.msra.mxu0 %v338
  %378 = vmatprep.subr.mxu0 0.0
  %379 = vmatpush1.msra.mxu0 %v339
  %380 = vmatprep.subr.mxu0 0.0
  %381 = vmatpush1.msra.mxu0 %v340
  %382 = vmatprep.subr.mxu0 0.0
  %383 = vmatpush1.msra.mxu0 %v341
  %384 = vmatprep.subr.mxu0 0.0
  %385 = vmatpush1.msra.mxu0 %v342
  %386 = vmatprep.subr.mxu0 0.0
  %387 = vmatpush1.msra.mxu0 %v343
  %388 = vmatprep.subr.mxu0 0.0
  %389 = vmatpush1.msra.mxu0 %v344
  %390 = vmatprep.subr.mxu0 0.0
  %391 = vmatpush1.msra.mxu0 %v345
  %392 = vmatprep.subr.mxu0 0.0
  %393 = vmatpush1.msra.mxu0 %v346
  %394 = vmatprep.subr.mxu0 0.0
  %395 = vmatpush1.msra.mxu0 %v347
  %396 = vmatprep.subr.mxu0 0.0
  %397 = vmatpush1.msra.mxu0 %v348
  %398 = vmatprep.subr.mxu0 0.0
  %399 = vmatpush1.msra.mxu0 %v349
  %400 = vmatprep.subr.mxu0 0.0
  %401 = vmatpush1.msra.mxu0 %v350
  %402 = vmatprep.subr.mxu0 0.0
  %403 = vmatpush1.msra.mxu0 %v351
  %404 = vmatprep.subr.mxu0 0.0
  %405 = vmatpush1.msra.mxu0 %v352
  %406 = vmatprep.subr.mxu0 0.0
  %407 = vmatpush1.msra.mxu0 %v353
  %408 = vmatprep.subr.mxu0 0.0
  %409 = vmatpush1.msra.mxu0 %v354
  %410 = vmatprep.subr.mxu0 0.0
  %411 = vmatpush1.msra.mxu0 %v355
  %412 = vmatprep.subr.mxu0 0.0
  %413 = vmatpush1.msra.mxu0 %v356
  %414 = vmatprep.subr.mxu0 0.0
  %415 = vmatpush1.msra.mxu0 %v357
  %416 = vmatprep.subr.mxu0 0.0
  %417 = vmatpush1.msra.mxu0 %v358
  %418 = vmatprep.subr.mxu0 0.0
  %419 = vmatpush1.msra.mxu0 %v359
  %420 = vmatprep.subr.mxu0 0.0
  %421 = vmatpush1.msra.mxu0 %v360
  %422 = vmatprep.subr.mxu0 0.0
  %423 = vmatpush1.msra.mxu0 %v361
  %424 = vmatprep.subr.mxu0 0.0
  %425 = vmatpush1.msra.mxu0 %v362
  %426 = vmatprep.subr.mxu0 0.0
  %427 = vmatpush1.msra.mxu0 %v363
  %428 = vmatprep.mubr.f32.mxu0 %v217
  %429 = vmatmul.mubr.f32.gmra.mrb[0].mxu0 %v331
  %v430 = vpop.f32.mrb[0].mxu0
  %v431 = vadd.f32 %v203, %v430
  %v432 = vpop.f32.mrb[0].mxu0
  %433 = vdwg.mxu0
  %v434 = vxor.u32 %v431, 2147483648
  %v435 = vmul.f32 %v434, 1.442695
  %v436 = vpow.pop %v435
  %v437 = vadd.f32 %v436, 1.0
  %v438 = vrcp.pop %v437
  %v439 = vmul.f32 1.0, %v438
  %v440 = vtanh.pop %v431
  %v441 = vsel %vm214, %v439, %v440
  %442 = vrot.lane.b32.xlu0 %v441, 96
  %v443 = vpop.permute.xlu0 %442
  %444 = vrot.lane.b32.xlu0 %v441, 64
  %v445 = vpop.permute.xlu0 %444
  %446 = vrot.lane.b32.xlu0 %v441, 32
  %v447 = vpop.permute.xlu0 %446
  %v448 = vmul.f32 %v443, %v222
  %v449 = vmul.f32 %v441, %v447
  %v450 = vadd.f32 %v448, %v449
  %v451 = vtanh.pop %v450
  %v452 = vmul.f32 %v445, %v451
  %v453 = vld [vmem:[%s8] sm:$0xff]
  %v454 = vld [vmem:[%s8 + $0x8] sm:$0xff]
  %v455 = vld [vmem:[%s8 + $0x10] sm:$0xff]
  %v456 = vld [vmem:[%s8 + $0x18] sm:$0xff]
  %v457 = vld [vmem:[%s8 + $0x20] sm:$0xff]
  %v458 = vld [vmem:[%s8 + $0x28] sm:$0xff]
  %v459 = vld [vmem:[%s8 + $0x30] sm:$0xff]
  %v460 = vld [vmem:[%s8 + $0x38] sm:$0xff]
  %v461 = vld [vmem:[%s8 + $0x40] sm:$0xff]
  %v462 = vld [vmem:[%s8 + $0x48] sm:$0xff]
  %v463 = vld [vmem:[%s8 + $0x50] sm:$0xff]
  %v464 = vld [vmem:[%s8 + $0x58] sm:$0xff]
  %v465 = vld [vmem:[%s8 + $0x60] sm:$0xff]
  %v466 = vld [vmem:[%s8 + $0x68] sm:$0xff]
  %v467 = vld [vmem:[%s8 + $0x70] sm:$0xff]
  %v468 = vld [vmem:[%s8 + $0x78] sm:$0xff]
  %v469 = vld [vmem:[%s8 + $0x80] sm:$0xff]
  %v470 = vld [vmem:[%s8 + $0x88] sm:$0xff]
  %v471 = vld [vmem:[%s8 + $0x90] sm:$0xff]
  %v472 = vld [vmem:[%s8 + $0x98] sm:$0xff]
  %v473 = vld [vmem:[%s8 + $0xa0] sm:$0xff]
  %v474 = vld [vmem:[%s8 + $0xa8] sm:$0xff]
  %v475 = vld [vmem:[%s8 + $0xb0] sm:$0xff]
  %v476 = vld [vmem:[%s8 + $0xb8] sm:$0xff]
  %v477 = vld [vmem:[%s8 + $0xc0] sm:$0xff]
  %v478 = vld [vmem:[%s8 + $0xc8] sm:$0xff]
  %v479 = vld [vmem:[%s8 + $0xd0] sm:$0xff]
  %v480 = vld [vmem:[%s8 + $0xd8] sm:$0xff]
  %v481 = vld [vmem:[%s8 + $0xe0] sm:$0xff]
  %v482 = vld [vmem:[%s8 + $0xe8] sm:$0xff]
  %v483 = vld [vmem:[%s8 + $0xf0] sm:$0xff]
  %v484 = vld [vmem:[%s8 + $0xf8] sm:$0xff]
  %485 = vmatprep.subr.mxu0 0.0
  %486 = vmatpush1.msra.mxu0 %v453
  %487 = vmatprep.subr.mxu0 0.0
  %488 = vmatpush1.msra.mxu0 %v454
  %489 = vmatprep.subr.mxu0 0.0
  %490 = vmatpush1.msra.mxu0 %v455
  %491 = vmatprep.subr.mxu0 0.0
  %492 = vmatpush1.msra.mxu0 %v456
  %493 = vmatprep.subr.mxu0 0.0
  %494 = vmatpush1.msra.mxu0 %v457
  %495 = vmatprep.subr.mxu0 0.0
  %496 = vmatpush1.msra.mxu0 %v458
  %497 = vmatprep.subr.mxu0 0.0
  %498 = vmatpush1.msra.mxu0 %v459
  %499 = vmatprep.subr.mxu0 0.0
  %500 = vmatpush1.msra.mxu0 %v460
  %501 = vmatprep.subr.mxu0 0.0
  %502 = vmatpush1.msra.mxu0 %v461
  %503 = vmatprep.subr.mxu0 0.0
  %504 = vmatpush1.msra.mxu0 %v462
  %505 = vmatprep.subr.mxu0 0.0
  %506 = vmatpush1.msra.mxu0 %v463
  %507 = vmatprep.subr.mxu0 0.0
  %508 = vmatpush1.msra.mxu0 %v464
  %509 = vmatprep.subr.mxu0 0.0
  %510 = vmatpush1.msra.mxu0 %v465
  %511 = vmatprep.subr.mxu0 0.0
  %512 = vmatpush1.msra.mxu0 %v466
  %513 = vmatprep.subr.mxu0 0.0
  %514 = vmatpush1.msra.mxu0 %v467
  %515 = vmatprep.subr.mxu0 0.0
  %516 = vmatpush1.msra.mxu0 %v468
  %517 = vmatprep.subr.mxu0 0.0
  %518 = vmatpush1.msra.mxu0 %v469
  %519 = vmatprep.subr.mxu0 0.0
  %520 = vmatpush1.msra.mxu0 %v470
  %521 = vmatprep.subr.mxu0 0.0
  %522 = vmatpush1.msra.mxu0 %v471
  %523 = vmatprep.subr.mxu0 0.0
  %524 = vmatpush1.msra.mxu0 %v472
  %525 = vmatprep.subr.mxu0 0.0
  %526 = vmatpush1.msra.mxu0 %v473
  %527 = vmatprep.subr.mxu0 0.0
  %528 = vmatpush1.msra.mxu0 %v474
  %529 = vmatprep.subr.mxu0 0.0
  %530 = vmatpush1.msra.mxu0 %v475
  %531 = vmatprep.subr.mxu0 0.0
  %532 = vmatpush1.msra.mxu0 %v476
  %533 = vmatprep.subr.mxu0 0.0
  %534 = vmatpush1.msra.mxu0 %v477
  %535 = vmatprep.subr.mxu0 0.0
  %536 = vmatpush1.msra.mxu0 %v478
  %537 = vmatprep.subr.mxu0 0.0
  %538 = vmatpush1.msra.mxu0 %v479
  %539 = vmatprep.subr.mxu0 0.0
  %540 = vmatpush1.msra.mxu0 %v480
  %541 = vmatprep.subr.mxu0 0.0
  %542 = vmatpush1.msra.mxu0 %v481
  %543 = vmatprep.subr.mxu0 0.0
  %544 = vmatpush1.msra.mxu0 %v482
  %545 = vmatprep.subr.mxu0 0.0
  %546 = vmatpush1.msra.mxu0 %v483
  %547 = vmatprep.subr.mxu0 0.0
  %548 = vmatpush1.msra.mxu0 %v484
  %549 = vmatprep.mubr.f32.mxu0 %v219
  %550 = vmatmul.mubr.f32.gmra.mrb[0].mxu0 %v452
  %v551 = vpop.f32.mrb[0].mxu0
  %v552 = vadd.f32 %v210, %v551
  %v553 = vpop.f32.mrb[0].mxu0
  %554 = vdwg.mxu0
  %v555 = vxor.u32 %v552, 2147483648
  %v556 = vmul.f32 %v555, 1.442695
  %v557 = vpow.pop %v556
  %v558 = vadd.f32 %v557, 1.0
  %v559 = vrcp.pop %v558
  %v560 = vmul.f32 1.0, %v559
  %v561 = vtanh.pop %v552
  %v562 = vsel %vm214, %v560, %v561
  %563 = vrot.lane.b32.xlu0 %v562, 96
  %v564 = vpop.permute.xlu0 %563
  %565 = vrot.lane.b32.xlu0 %v562, 64
  %v566 = vpop.permute.xlu0 %565
  %567 = vrot.lane.b32.xlu0 %v562, 32
  %v568 = vpop.permute.xlu0 %567
  %v569 = vmul.f32 %v564, %v224
  %v570 = vmul.f32 %v562, %v568
  %v571 = vadd.f32 %v569, %v570
  %v572 = vtanh.pop %v571
  %v573 = vmul.f32 %v566, %v572
  %574 = vst [vmem:[%s10] sm:$0xff] %v573
  %s575 = scalar_lea.vmem [#allocation2], 8
  %v576 = vld [vmem:[%s575] sm:$0xff]
  %v577 = vld [vmem:[%s4] sm:$0xff]
  %v578 = vld [vmem:[%s4 + $0x8] sm:$0xff]
  %v579 = vld [vmem:[%s4 + $0x10] sm:$0xff]
  %v580 = vld [vmem:[%s4 + $0x18] sm:$0xff]
  %v581 = vld [vmem:[%s4 + $0x20] sm:$0xff]
  %v582 = vld [vmem:[%s4 + $0x28] sm:$0xff]
  %v583 = vld [vmem:[%s4 + $0x30] sm:$0xff]
  %v584 = vld [vmem:[%s4 + $0x38] sm:$0xff]
  %v585 = vld [vmem:[%s4 + $0x40] sm:$0xff]
  %v586 = vld [vmem:[%s4 + $0x48] sm:$0xff]
  %v587 = vld [vmem:[%s4 + $0x50] sm:$0xff]
  %v588 = vld [vmem:[%s4 + $0x58] sm:$0xff]
  %v589 = vld [vmem:[%s4 + $0x60] sm:$0xff]
  %v590 = vld [vmem:[%s4 + $0x68] sm:$0xff]
  %v591 = vld [vmem:[%s4 + $0x70] sm:$0xff]
  %v592 = vld [vmem:[%s4 + $0x78] sm:$0xff]
  %593 = vmatprep.subr.mxu0 0.0
  %594 = vmatpush1.msra.mxu0 %v577
  %595 = vmatprep.subr.mxu0 0.0
  %596 = vmatpush1.msra.mxu0 %v578
  %597 = vmatprep.subr.mxu0 0.0
  %598 = vmatpush1.msra.mxu0 %v579
  %599 = vmatprep.subr.mxu0 0.0
  %600 = vmatpush1.msra.mxu0 %v580
  %601 = vmatprep.subr.mxu0 0.0
  %602 = vmatpush1.msra.mxu0 %v581
  %603 = vmatprep.subr.mxu0 0.0
  %604 = vmatpush1.msra.mxu0 %v582
  %605 = vmatprep.subr.mxu0 0.0
  %606 = vmatpush1.msra.mxu0 %v583
  %607 = vmatprep.subr.mxu0 0.0
  %608 = vmatpush1.msra.mxu0 %v584
  %609 = vmatprep.subr.mxu0 0.0
  %610 = vmatpush1.msra.mxu0 %v585
  %611 = vmatprep.subr.mxu0 0.0
  %612 = vmatpush1.msra.mxu0 %v586
  %613 = vmatprep.subr.mxu0 0.0
  %614 = vmatpush1.msra.mxu0 %v587
  %615 = vmatprep.subr.mxu0 0.0
  %616 = vmatpush1.msra.mxu0 %v588
  %617 = vmatprep.subr.mxu0 0.0
  %618 = vmatpush1.msra.mxu0 %v589
  %619 = vmatprep.subr.mxu0 0.0
  %620 = vmatpush1.msra.mxu0 %v590
  %621 = vmatprep.subr.mxu0 0.0
  %622 = vmatpush1.msra.mxu0 %v591
  %623 = vmatprep.subr.mxu0 0.0
  %624 = vmatpush1.msra.mxu0 %v592
  %625 = vmatprep.subr.mxu0 0.0
  %626 = vmatpush1.msra.mxu0 0.0
  %627 = vmatprep.subr.mxu0 0.0
  %628 = vmatpush1.msra.mxu0 0.0
  %629 = vmatprep.subr.mxu0 0.0
  %630 = vmatpush1.msra.mxu0 0.0
  %631 = vmatprep.subr.mxu0 0.0
  %632 = vmatpush1.msra.mxu0 0.0
  %633 = vmatprep.subr.mxu0 0.0
  %634 = vmatpush1.msra.mxu0 0.0
  %635 = vmatprep.subr.mxu0 0.0
  %636 = vmatpush1.msra.mxu0 0.0
  %637 = vmatprep.subr.mxu0 0.0
  %638 = vmatpush1.msra.mxu0 0.0
  %639 = vmatprep.subr.mxu0 0.0
  %640 = vmatpush1.msra.mxu0 0.0
  %641 = vmatprep.subr.mxu0 0.0
  %642 = vmatpush1.msra.mxu0 0.0
  %643 = vmatprep.subr.mxu0 0.0
  %644 = vmatpush1.msra.mxu0 0.0
  %645 = vmatprep.subr.mxu0 0.0
  %646 = vmatpush1.msra.mxu0 0.0
  %647 = vmatprep.subr.mxu0 0.0
  %648 = vmatpush1.msra.mxu0 0.0
  %649 = vmatprep.subr.mxu0 0.0
  %650 = vmatpush1.msra.mxu0 0.0
  %651 = vmatprep.subr.mxu0 0.0
  %652 = vmatpush1.msra.mxu0 0.0
  %653 = vmatprep.subr.mxu0 0.0
  %654 = vmatpush1.msra.mxu0 0.0
  %655 = vmatprep.subr.mxu0 0.0
  %656 = vmatpush1.msra.mxu0 0.0
  %657 = vmatprep.mubr.f32.mxu0 0.0
  %658 = vmatmul.mubr.f32.gmra.mrb[0].mxu0 %v331
  %v659 = vpop.f32.mrb[0].mxu0
  %v660 = vadd.f32 0.0, %v659
  %v661 = vpop.f32.mrb[0].mxu0
  %662 = vdwg.mxu0
  %v663 = vadd.f32 %v576, %v660
  %v664 = vxor.u32 %v663, 2147483648
  %v665 = vmul.f32 %v664, 1.442695
  %v666 = vpow.pop %v665
  %v667 = vadd.f32 %v666, 1.0
  %v668 = vrcp.pop %v667
  %v669 = vmul.f32 1.0, %v668
  %v670 = vtanh.pop %v663
  %v671 = vsel %vm214, %v669, %v670
  %672 = vrot.lane.b32.xlu0 %v671, 96
  %v673 = vpop.permute.xlu0 %672
  %674 = vrot.lane.b32.xlu0 %v671, 64
  %v675 = vpop.permute.xlu0 %674
  %676 = vrot.lane.b32.xlu0 %v671, 32
  %v677 = vpop.permute.xlu0 %676
  %v678 = vmul.f32 %v673, %v329
  %v679 = vmul.f32 %v671, %v677
  %v680 = vadd.f32 %v678, %v679
  %v681 = vtanh.pop %v680
  %v682 = vmul.f32 %v675, %v681
  %v683 = vld [vmem:[%s6] sm:$0xff]
  %v684 = vld [vmem:[%s6 + $0x8] sm:$0xff]
  %v685 = vld [vmem:[%s6 + $0x10] sm:$0xff]
  %v686 = vld [vmem:[%s6 + $0x18] sm:$0xff]
  %v687 = vld [vmem:[%s6 + $0x20] sm:$0xff]
  %v688 = vld [vmem:[%s6 + $0x28] sm:$0xff]
  %v689 = vld [vmem:[%s6 + $0x30] sm:$0xff]
  %v690 = vld [vmem:[%s6 + $0x38] sm:$0xff]
  %v691 = vld [vmem:[%s6 + $0x40] sm:$0xff]
  %v692 = vld [vmem:[%s6 + $0x48] sm:$0xff]
  %v693 = vld [vmem:[%s6 + $0x50] sm:$0xff]
  %v694 = vld [vmem:[%s6 + $0x58] sm:$0xff]
  %v695 = vld [vmem:[%s6 + $0x60] sm:$0xff]
  %v696 = vld [vmem:[%s6 + $0x68] sm:$0xff]
  %v697 = vld [vmem:[%s6 + $0x70] sm:$0xff]
  %v698 = vld [vmem:[%s6 + $0x78] sm:$0xff]
  %v699 = vld [vmem:[%s6 + $0x80] sm:$0xff]
  %v700 = vld [vmem:[%s6 + $0x88] sm:$0xff]
  %v701 = vld [vmem:[%s6 + $0x90] sm:$0xff]
  %v702 = vld [vmem:[%s6 + $0x98] sm:$0xff]
  %v703 = vld [vmem:[%s6 + $0xa0] sm:$0xff]
  %v704 = vld [vmem:[%s6 + $0xa8] sm:$0xff]
  %v705 = vld [vmem:[%s6 + $0xb0] sm:$0xff]
  %v706 = vld [vmem:[%s6 + $0xb8] sm:$0xff]
  %v707 = vld [vmem:[%s6 + $0xc0] sm:$0xff]
  %v708 = vld [vmem:[%s6 + $0xc8] sm:$0xff]
  %v709 = vld [vmem:[%s6 + $0xd0] sm:$0xff]
  %v710 = vld [vmem:[%s6 + $0xd8] sm:$0xff]
  %v711 = vld [vmem:[%s6 + $0xe0] sm:$0xff]
  %v712 = vld [vmem:[%s6 + $0xe8] sm:$0xff]
  %v713 = vld [vmem:[%s6 + $0xf0] sm:$0xff]
  %v714 = vld [vmem:[%s6 + $0xf8] sm:$0xff]
  %715 = vmatprep.subr.mxu0 0.0
  %716 = vmatpush1.msra.mxu0 %v683
  %717 = vmatprep.subr.mxu0 0.0
  %718 = vmatpush1.msra.mxu0 %v684
  %719 = vmatprep.subr.mxu0 0.0
  %720 = vmatpush1.msra.mxu0 %v685
  %721 = vmatprep.subr.mxu0 0.0
  %722 = vmatpush1.msra.mxu0 %v686
  %723 = vmatprep.subr.mxu0 0.0
  %724 = vmatpush1.msra.mxu0 %v687
  %725 = vmatprep.subr.mxu0 0.0
  %726 = vmatpush1.msra.mxu0 %v688
  %727 = vmatprep.subr.mxu0 0.0
  %728 = vmatpush1.msra.mxu0 %v689
  %729 = vmatprep.subr.mxu0 0.0
  %730 = vmatpush1.msra.mxu0 %v690
  %731 = vmatprep.subr.mxu0 0.0
  %732 = vmatpush1.msra.mxu0 %v691
  %733 = vmatprep.subr.mxu0 0.0
  %734 = vmatpush1.msra.mxu0 %v692
  %735 = vmatprep.subr.mxu0 0.0
  %736 = vmatpush1.msra.mxu0 %v693
  %737 = vmatprep.subr.mxu0 0.0
  %738 = vmatpush1.msra.mxu0 %v694
  %739 = vmatprep.subr.mxu0 0.0
  %740 = vmatpush1.msra.mxu0 %v695
  %741 = vmatprep.subr.mxu0 0.0
  %742 = vmatpush1.msra.mxu0 %v696
  %743 = vmatprep.subr.mxu0 0.0
  %744 = vmatpush1.msra.mxu0 %v697
  %745 = vmatprep.subr.mxu0 0.0
  %746 = vmatpush1.msra.mxu0 %v698
  %747 = vmatprep.subr.mxu0 0.0
  %748 = vmatpush1.msra.mxu0 %v699
  %749 = vmatprep.subr.mxu0 0.0
  %750 = vmatpush1.msra.mxu0 %v700
  %751 = vmatprep.subr.mxu0 0.0
  %752 = vmatpush1.msra.mxu0 %v701
  %753 = vmatprep.subr.mxu0 0.0
  %754 = vmatpush1.msra.mxu0 %v702
  %755 = vmatprep.subr.mxu0 0.0
  %756 = vmatpush1.msra.mxu0 %v703
  %757 = vmatprep.subr.mxu0 0.0
  %758 = vmatpush1.msra.mxu0 %v704
  %759 = vmatprep.subr.mxu0 0.0
  %760 = vmatpush1.msra.mxu0 %v705
  %761 = vmatprep.subr.mxu0 0.0
  %762 = vmatpush1.msra.mxu0 %v706
  %763 = vmatprep.subr.mxu0 0.0
  %764 = vmatpush1.msra.mxu0 %v707
  %765 = vmatprep.subr.mxu0 0.0
  %766 = vmatpush1.msra.mxu0 %v708
  %767 = vmatprep.subr.mxu0 0.0
  %768 = vmatpush1.msra.mxu0 %v709
  %769 = vmatprep.subr.mxu0 0.0
  %770 = vmatpush1.msra.mxu0 %v710
  %771 = vmatprep.subr.mxu0 0.0
  %772 = vmatpush1.msra.mxu0 %v711
  %773 = vmatprep.subr.mxu0 0.0
  %774 = vmatpush1.msra.mxu0 %v712
  %775 = vmatprep.subr.mxu0 0.0
  %776 = vmatpush1.msra.mxu0 %v713
  %777 = vmatprep.subr.mxu0 0.0
  %778 = vmatpush1.msra.mxu0 %v714
  %779 = vmatprep.mubr.f32.mxu0 %v452
  %780 = vmatmul.mubr.f32.gmra.mrb[0].mxu0 %v682
  %v781 = vpop.f32.mrb[0].mxu0
  %v782 = vadd.f32 %v203, %v781
  %v783 = vpop.f32.mrb[0].mxu0
  %784 = vdwg.mxu0
  %v785 = vxor.u32 %v782, 2147483648
  %v786 = vmul.f32 %v785, 1.442695
  %v787 = vpow.pop %v786
  %v788 = vadd.f32 %v787, 1.0
  %v789 = vrcp.pop %v788
  %v790 = vmul.f32 1.0, %v789
  %v791 = vtanh.pop %v782
  %v792 = vsel %vm214, %v790, %v791
  %793 = vrot.lane.b32.xlu0 %v792, 96
  %v794 = vpop.permute.xlu0 %793
  %795 = vrot.lane.b32.xlu0 %v792, 64
  %v796 = vpop.permute.xlu0 %795
  %797 = vrot.lane.b32.xlu0 %v792, 32
  %v798 = vpop.permute.xlu0 %797
  %v799 = vmul.f32 %v794, %v450
  %v800 = vmul.f32 %v792, %v798
  %v801 = vadd.f32 %v799, %v800
  %v802 = vtanh.pop %v801
  %v803 = vmul.f32 %v796, %v802
  %v804 = vld [vmem:[%s8] sm:$0xff]
  %v805 = vld [vmem:[%s8 + $0x8] sm:$0xff]
  %v806 = vld [vmem:[%s8 + $0x10] sm:$0xff]
  %v807 = vld [vmem:[%s8 + $0x18] sm:$0xff]
  %v808 = vld [vmem:[%s8 + $0x20] sm:$0xff]
  %v809 = vld [vmem:[%s8 + $0x28] sm:$0xff]
  %v810 = vld [vmem:[%s8 + $0x30] sm:$0xff]
  %v811 = vld [vmem:[%s8 + $0x38] sm:$0xff]
  %v812 = vld [vmem:[%s8 + $0x40] sm:$0xff]
  %v813 = vld [vmem:[%s8 + $0x48] sm:$0xff]
  %v814 = vld [vmem:[%s8 + $0x50] sm:$0xff]
  %v815 = vld [vmem:[%s8 + $0x58] sm:$0xff]
  %v816 = vld [vmem:[%s8 + $0x60] sm:$0xff]
  %v817 = vld [vmem:[%s8 + $0x68] sm:$0xff]
  %v818 = vld [vmem:[%s8 + $0x70] sm:$0xff]
  %v819 = vld [vmem:[%s8 + $0x78] sm:$0xff]
  %v820 = vld [vmem:[%s8 + $0x80] sm:$0xff]
  %v821 = vld [vmem:[%s8 + $0x88] sm:$0xff]
  %v822 = vld [vmem:[%s8 + $0x90] sm:$0xff]
  %v823 = vld [vmem:[%s8 + $0x98] sm:$0xff]
  %v824 = vld [vmem:[%s8 + $0xa0] sm:$0xff]
  %v825 = vld [vmem:[%s8 + $0xa8] sm:$0xff]
  %v826 = vld [vmem:[%s8 + $0xb0] sm:$0xff]
  %v827 = vld [vmem:[%s8 + $0xb8] sm:$0xff]
  %v828 = vld [vmem:[%s8 + $0xc0] sm:$0xff]
  %v829 = vld [vmem:[%s8 + $0xc8] sm:$0xff]
  %v830 = vld [vmem:[%s8 + $0xd0] sm:$0xff]
  %v831 = vld [vmem:[%s8 + $0xd8] sm:$0xff]
  %v832 = vld [vmem:[%s8 + $0xe0] sm:$0xff]
  %v833 = vld [vmem:[%s8 + $0xe8] sm:$0xff]
  %v834 = vld [vmem:[%s8 + $0xf0] sm:$0xff]
  %v835 = vld [vmem:[%s8 + $0xf8] sm:$0xff]
  %836 = vmatprep.subr.mxu0 0.0
  %837 = vmatpush1.msra.mxu0 %v804
  %838 = vmatprep.subr.mxu0 0.0
  %839 = vmatpush1.msra.mxu0 %v805
  %840 = vmatprep.subr.mxu0 0.0
  %841 = vmatpush1.msra.mxu0 %v806
  %842 = vmatprep.subr.mxu0 0.0
  %843 = vmatpush1.msra.mxu0 %v807
  %844 = vmatprep.subr.mxu0 0.0
  %845 = vmatpush1.msra.mxu0 %v808
  %846 = vmatprep.subr.mxu0 0.0
  %847 = vmatpush1.msra.mxu0 %v809
  %848 = vmatprep.subr.mxu0 0.0
  %849 = vmatpush1.msra.mxu0 %v810
  %850 = vmatprep.subr.mxu0 0.0
  %851 = vmatpush1.msra.mxu0 %v811
  %852 = vmatprep.subr.mxu0 0.0
  %853 = vmatpush1.msra.mxu0 %v812
  %854 = vmatprep.subr.mxu0 0.0
  %855 = vmatpush1.msra.mxu0 %v813
  %856 = vmatprep.subr.mxu0 0.0
  %857 = vmatpush1.msra.mxu0 %v814
  %858 = vmatprep.subr.mxu0 0.0
  %859 = vmatpush1.msra.mxu0 %v815
  %860 = vmatprep.subr.mxu0 0.0
  %861 = vmatpush1.msra.mxu0 %v816
  %862 = vmatprep.subr.mxu0 0.0
  %863 = vmatpush1.msra.mxu0 %v817
  %864 = vmatprep.subr.mxu0 0.0
  %865 = vmatpush1.msra.mxu0 %v818
  %866 = vmatprep.subr.mxu0 0.0
  %867 = vmatpush1.msra.mxu0 %v819
  %868 = vmatprep.subr.mxu0 0.0
  %869 = vmatpush1.msra.mxu0 %v820
  %870 = vmatprep.subr.mxu0 0.0
  %871 = vmatpush1.msra.mxu0 %v821
  %872 = vmatprep.subr.mxu0 0.0
  %873 = vmatpush1.msra.mxu0 %v822
  %874 = vmatprep.subr.mxu0 0.0
  %875 = vmatpush1.msra.mxu0 %v823
  %876 = vmatprep.subr.mxu0 0.0
  %877 = vmatpush1.msra.mxu0 %v824
  %878 = vmatprep.subr.mxu0 0.0
  %879 = vmatpush1.msra.mxu0 %v825
  %880 = vmatprep.subr.mxu0 0.0
  %881 = vmatpush1.msra.mxu0 %v826
  %882 = vmatprep.subr.mxu0 0.0
  %883 = vmatpush1.msra.mxu0 %v827
  %884 = vmatprep.subr.mxu0 0.0
  %885 = vmatpush1.msra.mxu0 %v828
  %886 = vmatprep.subr.mxu0 0.0
  %887 = vmatpush1.msra.mxu0 %v829
  %888 = vmatprep.subr.mxu0 0.0
  %889 = vmatpush1.msra.mxu0 %v830
  %890 = vmatprep.subr.mxu0 0.0
  %891 = vmatpush1.msra.mxu0 %v831
  %892 = vmatprep.subr.mxu0 0.0
  %893 = vmatpush1.msra.mxu0 %v832
  %894 = vmatprep.subr.mxu0 0.0
  %895 = vmatpush1.msra.mxu0 %v833
  %896 = vmatprep.subr.mxu0 0.0
  %897 = vmatpush1.msra.mxu0 %v834
  %898 = vmatprep.subr.mxu0 0.0
  %899 = vmatpush1.msra.mxu0 %v835
  %900 = vmatprep.mubr.f32.mxu0 %v573
  %901 = vmatmul.mubr.f32.gmra.mrb[0].mxu0 %v803
  %v902 = vpop.f32.mrb[0].mxu0
  %v903 = vadd.f32 %v210, %v902
  %v904 = vpop.f32.mrb[0].mxu0
  %905 = vdwg.mxu0
  %v906 = vxor.u32 %v903, 2147483648
  %v907 = vmul.f32 %v906, 1.442695
  %v908 = vpow.pop %v907
  %v909 = vadd.f32 %v908, 1.0
  %v910 = vrcp.pop %v909
  %v911 = vmul.f32 1.0, %v910
  %v912 = vtanh.pop %v903
  %v913 = vsel %vm214, %v911, %v912
  %914 = vrot.lane.b32.xlu0 %v913, 96
  %v915 = vpop.permute.xlu0 %914
  %916 = vrot.lane.b32.xlu0 %v913, 64
  %v917 = vpop.permute.xlu0 %916
  %918 = vrot.lane.b32.xlu0 %v913, 32
  %v919 = vpop.permute.xlu0 %918
  %v920 = vmul.f32 %v915, %v571
  %v921 = vmul.f32 %v913, %v919
  %v922 = vadd.f32 %v920, %v921
  %v923 = vtanh.pop %v922
  %v924 = vmul.f32 %v917, %v923
  %s925 = scalar_lea.vmem %s10, 8
  %926 = vst [vmem:[%s925] sm:$0xff] %v924
  %s927 = scalar_lea.vmem [#allocation2], 16
  %v928 = vld [vmem:[%s927] sm:$0xff]
  %v929 = vld [vmem:[%s4] sm:$0xff]
  %v930 = vld [vmem:[%s4 + $0x8] sm:$0xff]
  %v931 = vld [vmem:[%s4 + $0x10] sm:$0xff]
  %v932 = vld [vmem:[%s4 + $0x18] sm:$0xff]
  %v933 = vld [vmem:[%s4 + $0x20] sm:$0xff]
  %v934 = vld [vmem:[%s4 + $0x28] sm:$0xff]
  %v935 = vld [vmem:[%s4 + $0x30] sm:$0xff]
  %v936 = vld [vmem:[%s4 + $0x38] sm:$0xff]
  %v937 = vld [vmem:[%s4 + $0x40] sm:$0xff]
  %v938 = vld [vmem:[%s4 + $0x48] sm:$0xff]
  %v939 = vld [vmem:[%s4 + $0x50] sm:$0xff]
  %v940 = vld [vmem:[%s4 + $0x58] sm:$0xff]
  %v941 = vld [vmem:[%s4 + $0x60] sm:$0xff]
  %v942 = vld [vmem:[%s4 + $0x68] sm:$0xff]
  %v943 = vld [vmem:[%s4 + $0x70] sm:$0xff]
  %v944 = vld [vmem:[%s4 + $0x78] sm:$0xff]
  %945 = vmatprep.subr.mxu0 0.0
  %946 = vmatpush1.msra.mxu0 %v929
  %947 = vmatprep.subr.mxu0 0.0
  %948 = vmatpush1.msra.mxu0 %v930
  %949 = vmatprep.subr.mxu0 0.0
  %950 = vmatpush1.msra.mxu0 %v931
  %951 = vmatprep.subr.mxu0 0.0
  %952 = vmatpush1.msra.mxu0 %v932
  %953 = vmatprep.subr.mxu0 0.0
  %954 = vmatpush1.msra.mxu0 %v933
  %955 = vmatprep.subr.mxu0 0.0
  %956 = vmatpush1.msra.mxu0 %v934
  %957 = vmatprep.subr.mxu0 0.0
  %958 = vmatpush1.msra.mxu0 %v935
  %959 = vmatprep.subr.mxu0 0.0
  %960 = vmatpush1.msra.mxu0 %v936
  %961 = vmatprep.subr.mxu0 0.0
  %962 = vmatpush1.msra.mxu0 %v937
  %963 = vmatprep.subr.mxu0 0.0
  %964 = vmatpush1.msra.mxu0 %v938
  %965 = vmatprep.subr.mxu0 0.0
  %966 = vmatpush1.msra.mxu0 %v939
  %967 = vmatprep.subr.mxu0 0.0
  %968 = vmatpush1.msra.mxu0 %v940
  %969 = vmatprep.subr.mxu0 0.0
  %970 = vmatpush1.msra.mxu0 %v941
  %971 = vmatprep.subr.mxu0 0.0
  %972 = vmatpush1.msra.mxu0 %v942
  %973 = vmatprep.subr.mxu0 0.0
  %974 = vmatpush1.msra.mxu0 %v943
  %975 = vmatprep.subr.mxu0 0.0
  %976 = vmatpush1.msra.mxu0 %v944
  %977 = vmatprep.subr.mxu0 0.0
  %978 = vmatpush1.msra.mxu0 0.0
  %979 = vmatprep.subr.mxu0 0.0
  %980 = vmatpush1.msra.mxu0 0.0
  %981 = vmatprep.subr.mxu0 0.0
  %982 = vmatpush1.msra.mxu0 0.0
  %983 = vmatprep.subr.mxu0 0.0
  %984 = vmatpush1.msra.mxu0 0.0
  %985 = vmatprep.subr.mxu0 0.0
  %986 = vmatpush1.msra.mxu0 0.0
  %987 = vmatprep.subr.mxu0 0.0
  %988 = vmatpush1.msra.mxu0 0.0
  %989 = vmatprep.subr.mxu0 0.0
  %990 = vmatpush1.msra.mxu0 0.0
  %991 = vmatprep.subr.mxu0 0.0
  %992 = vmatpush1.msra.mxu0 0.0
  %993 = vmatprep.subr.mxu0 0.0
  %994 = vmatpush1.msra.mxu0 0.0
  %995 = vmatprep.subr.mxu0 0.0
  %996 = vmatpush1.msra.mxu0 0.0
  %997 = vmatprep.subr.mxu0 0.0
  %998 = vmatpush1.msra.mxu0 0.0
  %999 = vmatprep.subr.mxu0 0.0
  %1000 = vmatpush1.msra.mxu0 0.0
  %1001 = vmatprep.subr.mxu0 0.0
  %1002 = vmatpush1.msra.mxu0 0.0
  %1003 = vmatprep.subr.mxu0 0.0
  %1004 = vmatpush1.msra.mxu0 0.0
  %1005 = vmatprep.subr.mxu0 0.0
  %1006 = vmatpush1.msra.mxu0 0.0
  %1007 = vmatprep.subr.mxu0 0.0
  %1008 = vmatpush1.msra.mxu0 0.0
  %1009 = vmatprep.mubr.f32.mxu0 0.0
  %1010 = vmatmul.mubr.f32.gmra.mrb[0].mxu0 %v682
  %v1011 = vpop.f32.mrb[0].mxu0
  %v1012 = vadd.f32 0.0, %v1011
  %v1013 = vpop.f32.mrb[0].mxu0
  %1014 = vdwg.mxu0
  %v1015 = vadd.f32 %v928, %v1012
  %v1016 = vxor.u32 %v1015, 2147483648
  %v1017 = vmul.f32 %v1016, 1.442695
  %v1018 = vpow.pop %v1017
  %v1019 = vadd.f32 %v1018, 1.0
  %v1020 = vrcp.pop %v1019
  %v1021 = vmul.f32 1.0, %v1020
  %v1022 = vtanh.pop %v1015
  %v1023 = vsel %vm214, %v1021, %v1022
  %1024 = vrot.lane.b32.xlu0 %v1023, 96
  %v1025 = vpop.permute.xlu0 %1024
  %1026 = vrot.lane.b32.xlu0 %v1023, 64
  %v1027 = vpop.permute.xlu0 %1026
  %1028 = vrot.lane.b32.xlu0 %v1023, 32
  %v1029 = vpop.permute.xlu0 %1028
  %v1030 = vmul.f32 %v1025, %v680
  %v1031 = vmul.f32 %v1023, %v1029
  %v1032 = vadd.f32 %v1030, %v1031
  %v1033 = vtanh.pop %v1032
  %v1034 = vmul.f32 %v1027, %v1033
  %v1035 = vld [vmem:[%s6] sm:$0xff]
  %v1036 = vld [vmem:[%s6 + $0x8] sm:$0xff]
  %v1037 = vld [vmem:[%s6 + $0x10] sm:$0xff]
  %v1038 = vld [vmem:[%s6 + $0x18] sm:$0xff]
  %v1039 = vld [vmem:[%s6 + $0x20] sm:$0xff]
  %v1040 = vld [vmem:[%s6 + $0x28] sm:$0xff]
  %v1041 = vld [vmem:[%s6 + $0x30] sm:$0xff]
  %v1042 = vld [vmem:[%s6 + $0x38] sm:$0xff]
  %v1043 = vld [vmem:[%s6 + $0x40] sm:$0xff]
  %v1044 = vld [vmem:[%s6 + $0x48] sm:$0xff]
  %v1045 = vld [vmem:[%s6 + $0x50] sm:$0xff]
  %v1046 = vld [vmem:[%s6 + $0x58] sm:$0xff]
  %v1047 = vld [vmem:[%s6 + $0x60] sm:$0xff]
  %v1048 = vld [vmem:[%s6 + $0x68] sm:$0xff]
  %v1049 = vld [vmem:[%s6 + $0x70] sm:$0xff]
  %v1050 = vld [vmem:[%s6 + $0x78] sm:$0xff]
  %v1051 = vld [vmem:[%s6 + $0x80] sm:$0xff]
  %v1052 = vld [vmem:[%s6 + $0x88] sm:$0xff]
  %v1053 = vld [vmem:[%s6 + $0x90] sm:$0xff]
  %v1054 = vld [vmem:[%s6 + $0x98] sm:$0xff]
  %v1055 = vld [vmem:[%s6 + $0xa0] sm:$0xff]
  %v1056 = vld [vmem:[%s6 + $0xa8] sm:$0xff]
  %v1057 = vld [vmem:[%s6 + $0xb0] sm:$0xff]
  %v1058 = vld [vmem:[%s6 + $0xb8] sm:$0xff]
  %v1059 = vld [vmem:[%s6 + $0xc0] sm:$0xff]
  %v1060 = vld [vmem:[%s6 + $0xc8] sm:$0xff]
  %v1061 = vld [vmem:[%s6 + $0xd0] sm:$0xff]
  %v1062 = vld [vmem:[%s6 + $0xd8] sm:$0xff]
  %v1063 = vld [vmem:[%s6 + $0xe0] sm:$0xff]
  %v1064 = vld [vmem:[%s6 + $0xe8] sm:$0xff]
  %v1065 = vld [vmem:[%s6 + $0xf0] sm:$0xff]
  %v1066 = vld [vmem:[%s6 + $0xf8] sm:$0xff]
  %1067 = vmatprep.subr.mxu0 0.0
  %1068 = vmatpush1.msra.mxu0 %v1035
  %1069 = vmatprep.subr.mxu0 0.0
  %1070 = vmatpush1.msra.mxu0 %v1036
  %1071 = vmatprep.subr.mxu0 0.0
  %1072 = vmatpush1.msra.mxu0 %v1037
  %1073 = vmatprep.subr.mxu0 0.0
  %1074 = vmatpush1.msra.mxu0 %v1038
  %1075 = vmatprep.subr.mxu0 0.0
  %1076 = vmatpush1.msra.mxu0 %v1039
  %1077 = vmatprep.subr.mxu0 0.0
  %1078 = vmatpush1.msra.mxu0 %v1040
  %1079 = vmatprep.subr.mxu0 0.0
  %1080 = vmatpush1.msra.mxu0 %v1041
  %1081 = vmatprep.subr.mxu0 0.0
  %1082 = vmatpush1.msra.mxu0 %v1042
  %1083 = vmatprep.subr.mxu0 0.0
  %1084 = vmatpush1.msra.mxu0 %v1043
  %1085 = vmatprep.subr.mxu0 0.0
  %1086 = vmatpush1.msra.mxu0 %v1044
  %1087 = vmatprep.subr.mxu0 0.0
  %1088 = vmatpush1.msra.mxu0 %v1045
  %1089 = vmatprep.subr.mxu0 0.0
  %1090 = vmatpush1.msra.mxu0 %v1046
  %1091 = vmatprep.subr.mxu0 0.0
  %1092 = vmatpush1.msra.mxu0 %v1047
  %1093 = vmatprep.subr.mxu0 0.0
  %1094 = vmatpush1.msra.mxu0 %v1048
  %1095 = vmatprep.subr.mxu0 0.0
  %1096 = vmatpush1.msra.mxu0 %v1049
  %1097 = vmatprep.subr.mxu0 0.0
  %1098 = vmatpush1.msra.mxu0 %v1050
  %1099 = vmatprep.subr.mxu0 0.0
  %1100 = vmatpush1.msra.mxu0 %v1051
  %1101 = vmatprep.subr.mxu0 0.0
  %1102 = vmatpush1.msra.mxu0 %v1052
  %1103 = vmatprep.subr.mxu0 0.0
  %1104 = vmatpush1.msra.mxu0 %v1053
  %1105 = vmatprep.subr.mxu0 0.0
  %1106 = vmatpush1.msra.mxu0 %v1054
  %1107 = vmatprep.subr.mxu0 0.0
  %1108 = vmatpush1.msra.mxu0 %v1055
  %1109 = vmatprep.subr.mxu0 0.0
  %1110 = vmatpush1.msra.mxu0 %v1056
  %1111 = vmatprep.subr.mxu0 0.0
  %1112 = vmatpush1.msra.mxu0 %v1057
  %1113 = vmatprep.subr.mxu0 0.0
  %1114 = vmatpush1.msra.mxu0 %v1058
  %1115 = vmatprep.subr.mxu0 0.0
  %1116 = vmatpush1.msra.mxu0 %v1059
  %1117 = vmatprep.subr.mxu0 0.0
  %1118 = vmatpush1.msra.mxu0 %v1060
  %1119 = vmatprep.subr.mxu0 0.0
  %1120 = vmatpush1.msra.mxu0 %v1061
  %1121 = vmatprep.subr.mxu0 0.0
  %1122 = vmatpush1.msra.mxu0 %v1062
  %1123 = vmatprep.subr.mxu0 0.0
  %1124 = vmatpush1.msra.mxu0 %v1063
  %1125 = vmatprep.subr.mxu0 0.0
  %1126 = vmatpush1.msra.mxu0 %v1064
  %1127 = vmatprep.subr.mxu0 0.0
  %1128 = vmatpush1.msra.mxu0 %v1065
  %1129 = vmatprep.subr.mxu0 0.0
  %1130 = vmatpush1.msra.mxu0 %v1066
  %1131 = vmatprep.mubr.f32.mxu0 %v803
  %1132 = vmatmul.mubr.f32.gmra.mrb[0].mxu0 %v1034
  %v1133 = vpop.f32.mrb[0].mxu0
  %v1134 = vadd.f32 %v203, %v1133
  %v1135 = vpop.f32.mrb[0].mxu0
  %1136 = vdwg.mxu0
  %v1137 = vxor.u32 %v1134, 2147483648
  %v1138 = vmul.f32 %v1137, 1.442695
  %v1139 = vpow.pop %v1138
  %v1140 = vadd.f32 %v1139, 1.0
  %v1141 = vrcp.pop %v1140
  %v1142 = vmul.f32 1.0, %v1141
  %v1143 = vtanh.pop %v1134
  %v1144 = vsel %vm214, %v1142, %v1143
  %1145 = vrot.lane.b32.xlu0 %v1144, 96
  %v1146 = vpop.permute.xlu0 %1145
  %1147 = vrot.lane.b32.xlu0 %v1144, 64
  %v1148 = vpop.permute.xlu0 %1147
  %1149 = vrot.lane.b32.xlu0 %v1144, 32
  %v1150 = vpop.permute.xlu0 %1149
  %v1151 = vmul.f32 %v1146, %v801
  %v1152 = vmul.f32 %v1144, %v1150
  %v1153 = vadd.f32 %v1151, %v1152
  %v1154 = vtanh.pop %v1153
  %v1155 = vmul.f32 %v1148, %v1154
  %v1156 = vld [vmem:[%s8] sm:$0xff]
  %v1157 = vld [vmem:[%s8 + $0x8] sm:$0xff]
  %v1158 = vld [vmem:[%s8 + $0x10] sm:$0xff]
  %v1159 = vld [vmem:[%s8 + $0x18] sm:$0xff]
  %v1160 = vld [vmem:[%s8 + $0x20] sm:$0xff]
  %v1161 = vld [vmem:[%s8 + $0x28] sm:$0xff]
  %v1162 = vld [vmem:[%s8 + $0x30] sm:$0xff]
  %v1163 = vld [vmem:[%s8 + $0x38] sm:$0xff]
  %v1164 = vld [vmem:[%s8 + $0x40] sm:$0xff]
  %v1165 = vld [vmem:[%s8 + $0x48] sm:$0xff]
  %v1166 = vld [vmem:[%s8 + $0x50] sm:$0xff]
  %v1167 = vld [vmem:[%s8 + $0x58] sm:$0xff]
  %v1168 = vld [vmem:[%s8 + $0x60] sm:$0xff]
  %v1169 = vld [vmem:[%s8 + $0x68] sm:$0xff]
  %v1170 = vld [vmem:[%s8 + $0x70] sm:$0xff]
  %v1171 = vld [vmem:[%s8 + $0x78] sm:$0xff]
  %v1172 = vld [vmem:[%s8 + $0x80] sm:$0xff]
  %v1173 = vld [vmem:[%s8 + $0x88] sm:$0xff]
  %v1174 = vld [vmem:[%s8 + $0x90] sm:$0xff]
  %v1175 = vld [vmem:[%s8 + $0x98] sm:$0xff]
  %v1176 = vld [vmem:[%s8 + $0xa0] sm:$0xff]
  %v1177 = vld [vmem:[%s8 + $0xa8] sm:$0xff]
  %v1178 = vld [vmem:[%s8 + $0xb0] sm:$0xff]
  %v1179 = vld [vmem:[%s8 + $0xb8] sm:$0xff]
  %v1180 = vld [vmem:[%s8 + $0xc0] sm:$0xff]
  %v1181 = vld [vmem:[%s8 + $0xc8] sm:$0xff]
  %v1182 = vld [vmem:[%s8 + $0xd0] sm:$0xff]
  %v1183 = vld [vmem:[%s8 + $0xd8] sm:$0xff]
  %v1184 = vld [vmem:[%s8 + $0xe0] sm:$0xff]
  %v1185 = vld [vmem:[%s8 + $0xe8] sm:$0xff]
  %v1186 = vld [vmem:[%s8 + $0xf0] sm:$0xff]
  %v1187 = vld [vmem:[%s8 + $0xf8] sm:$0xff]
  %1188 = vmatprep.subr.mxu0 0.0
  %1189 = vmatpush1.msra.mxu0 %v1156
  %1190 = vmatprep.subr.mxu0 0.0
  %1191 = vmatpush1.msra.mxu0 %v1157
  %1192 = vmatprep.subr.mxu0 0.0
  %1193 = vmatpush1.msra.mxu0 %v1158
  %1194 = vmatprep.subr.mxu0 0.0
  %1195 = vmatpush1.msra.mxu0 %v1159
  %1196 = vmatprep.subr.mxu0 0.0
  %1197 = vmatpush1.msra.mxu0 %v1160
  %1198 = vmatprep.subr.mxu0 0.0
  %1199 = vmatpush1.msra.mxu0 %v1161
  %1200 = vmatprep.subr.mxu0 0.0
  %1201 = vmatpush1.msra.mxu0 %v1162
  %1202 = vmatprep.subr.mxu0 0.0
  %1203 = vmatpush1.msra.mxu0 %v1163
  %1204 = vmatprep.subr.mxu0 0.0
  %1205 = vmatpush1.msra.mxu0 %v1164
  %1206 = vmatprep.subr.mxu0 0.0
  %1207 = vmatpush1.msra.mxu0 %v1165
  %1208 = vmatprep.subr.mxu0 0.0
  %1209 = vmatpush1.msra.mxu0 %v1166
  %1210 = vmatprep.subr.mxu0 0.0
  %1211 = vmatpush1.msra.mxu0 %v1167
  %1212 = vmatprep.subr.mxu0 0.0
  %1213 = vmatpush1.msra.mxu0 %v1168
  %1214 = vmatprep.subr.mxu0 0.0
  %1215 = vmatpush1.msra.mxu0 %v1169
  %1216 = vmatprep.subr.mxu0 0.0
  %1217 = vmatpush1.msra.mxu0 %v1170
  %1218 = vmatprep.subr.mxu0 0.0
  %1219 = vmatpush1.msra.mxu0 %v1171
  %1220 = vmatprep.subr.mxu0 0.0
  %1221 = vmatpush1.msra.mxu0 %v1172
  %1222 = vmatprep.subr.mxu0 0.0
  %1223 = vmatpush1.msra.mxu0 %v1173
  %1224 = vmatprep.subr.mxu0 0.0
  %1225 = vmatpush1.msra.mxu0 %v1174
  %1226 = vmatprep.subr.mxu0 0.0
  %1227 = vmatpush1.msra.mxu0 %v1175
  %1228 = vmatprep.subr.mxu0 0.0
  %1229 = vmatpush1.msra.mxu0 %v1176
  %1230 = vmatprep.subr.mxu0 0.0
  %1231 = vmatpush1.msra.mxu0 %v1177
  %1232 = vmatprep.subr.mxu0 0.0
  %1233 = vmatpush1.msra.mxu0 %v1178
  %1234 = vmatprep.subr.mxu0 0.0
  %1235 = vmatpush1.msra.mxu0 %v1179
  %1236 = vmatprep.subr.mxu0 0.0
  %1237 = vmatpush1.msra.mxu0 %v1180
  %1238 = vmatprep.subr.mxu0 0.0
  %1239 = vmatpush1.msra.mxu0 %v1181
  %1240 = vmatprep.subr.mxu0 0.0
  %1241 = vmatpush1.msra.mxu0 %v1182
  %1242 = vmatprep.subr.mxu0 0.0
  %1243 = vmatpush1.msra.mxu0 %v1183
  %1244 = vmatprep.subr.mxu0 0.0
  %1245 = vmatpush1.msra.mxu0 %v1184
  %1246 = vmatprep.subr.mxu0 0.0
  %1247 = vmatpush1.msra.mxu0 %v1185
  %1248 = vmatprep.subr.mxu0 0.0
  %1249 = vmatpush1.msra.mxu0 %v1186
  %1250 = vmatprep.subr.mxu0 0.0
  %1251 = vmatpush1.msra.mxu0 %v1187
  %1252 = vmatprep.mubr.f32.mxu0 %v924
  %1253 = vmatmul.mubr.f32.gmra.mrb[0].mxu0 %v1155
  %v1254 = vpop.f32.mrb[0].mxu0
  %v1255 = vadd.f32 %v210, %v1254
  %v1256 = vpop.f32.mrb[0].mxu0
  %1257 = vdwg.mxu0
  %v1258 = vxor.u32 %v1255, 2147483648
  %v1259 = vmul.f32 %v1258, 1.442695
  %v1260 = vpow.pop %v1259
  %v1261 = vadd.f32 %v1260, 1.0
  %v1262 = vrcp.pop %v1261
  %v1263 = vmul.f32 1.0, %v1262
  %v1264 = vtanh.pop %v1255
  %v1265 = vsel %vm214, %v1263, %v1264
  %1266 = vrot.lane.b32.xlu0 %v1265, 96
  %v1267 = vpop.permute.xlu0 %1266
  %1268 = vrot.lane.b32.xlu0 %v1265, 64
  %v1269 = vpop.permute.xlu0 %1268
  %1270 = vrot.lane.b32.xlu0 %v1265, 32
  %v1271 = vpop.permute.xlu0 %1270
  %v1272 = vmul.f32 %v1267, %v922
  %v1273 = vmul.f32 %v1265, %v1271
  %v1274 = vadd.f32 %v1272, %v1273
  %v1275 = vtanh.pop %v1274
  %v1276 = vmul.f32 %v1269, %v1275
  %s1277 = scalar_lea.vmem %s10, 16
  %1278 = vst [vmem:[%s1277] sm:$0xff] %v1276
  %s1279 = scalar_lea.vmem [#allocation2], 24
  %v1280 = vld [vmem:[%s1279] sm:$0xff]
  %v1281 = vld [vmem:[%s4] sm:$0xff]
  %v1282 = vld [vmem:[%s4 + $0x8] sm:$0xff]
  %v1283 = vld [vmem:[%s4 + $0x10] sm:$0xff]
  %v1284 = vld [vmem:[%s4 + $0x18] sm:$0xff]
  %v1285 = vld [vmem:[%s4 + $0x20] sm:$0xff]
  %v1286 = vld [vmem:[%s4 + $0x28] sm:$0xff]
  %v1287 = vld [vmem:[%s4 + $0x30] sm:$0xff]
  %v1288 = vld [vmem:[%s4 + $0x38] sm:$0xff]
  %v1289 = vld [vmem:[%s4 + $0x40] sm:$0xff]
  %v1290 = vld [vmem:[%s4 + $0x48] sm:$0xff]
  %v1291 = vld [vmem:[%s4 + $0x50] sm:$0xff]
  %v1292 = vld [vmem:[%s4 + $0x58] sm:$0xff]
  %v1293 = vld [vmem:[%s4 + $0x60] sm:$0xff]
  %v1294 = vld [vmem:[%s4 + $0x68] sm:$0xff]
  %v1295 = vld [vmem:[%s4 + $0x70] sm:$0xff]
  %v1296 = vld [vmem:[%s4 + $0x78] sm:$0xff]
  %1297 = vmatprep.subr.mxu0 0.0
  %1298 = vmatpush1.msra.mxu0 %v1281
  %1299 = vmatprep.subr.mxu0 0.0
  %1300 = vmatpush1.msra.mxu0 %v1282
  %1301 = vmatprep.subr.mxu0 0.0
  %1302 = vmatpush1.msra.mxu0 %v1283
  %1303 = vmatprep.subr.mxu0 0.0
  %1304 = vmatpush1.msra.mxu0 %v1284
  %1305 = vmatprep.subr.mxu0 0.0
  %1306 = vmatpush1.msra.mxu0 %v1285
  %1307 = vmatprep.subr.mxu0 0.0
  %1308 = vmatpush1.msra.mxu0 %v1286
  %1309 = vmatprep.subr.mxu0 0.0
  %1310 = vmatpush1.msra.mxu0 %v1287
  %1311 = vmatprep.subr.mxu0 0.0
  %1312 = vmatpush1.msra.mxu0 %v1288
  %1313 = vmatprep.subr.mxu0 0.0
  %1314 = vmatpush1.msra.mxu0 %v1289
  %1315 = vmatprep.subr.mxu0 0.0
  %1316 = vmatpush1.msra.mxu0 %v1290
  %1317 = vmatprep.subr.mxu0 0.0
  %1318 = vmatpush1.msra.mxu0 %v1291
  %1319 = vmatprep.subr.mxu0 0.0
  %1320 = vmatpush1.msra.mxu0 %v1292
  %1321 = vmatprep.subr.mxu0 0.0
  %1322 = vmatpush1.msra.mxu0 %v1293
  %1323 = vmatprep.subr.mxu0 0.0
  %1324 = vmatpush1.msra.mxu0 %v1294
  %1325 = vmatprep.subr.mxu0 0.0
  %1326 = vmatpush1.msra.mxu0 %v1295
  %1327 = vmatprep.subr.mxu0 0.0
  %1328 = vmatpush1.msra.mxu0 %v1296
  %1329 = vmatprep.subr.mxu0 0.0
  %1330 = vmatpush1.msra.mxu0 0.0
  %1331 = vmatprep.subr.mxu0 0.0
  %1332 = vmatpush1.msra.mxu0 0.0
  %1333 = vmatprep.subr.mxu0 0.0
  %1334 = vmatpush1.msra.mxu0 0.0
  %1335 = vmatprep.subr.mxu0 0.0
  %1336 = vmatpush1.msra.mxu0 0.0
  %1337 = vmatprep.subr.mxu0 0.0
  %1338 = vmatpush1.msra.mxu0 0.0
  %1339 = vmatprep.subr.mxu0 0.0
  %1340 = vmatpush1.msra.mxu0 0.0
  %1341 = vmatprep.subr.mxu0 0.0
  %1342 = vmatpush1.msra.mxu0 0.0
  %1343 = vmatprep.subr.mxu0 0.0
  %1344 = vmatpush1.msra.mxu0 0.0
  %1345 = vmatprep.subr.mxu0 0.0
  %1346 = vmatpush1.msra.mxu0 0.0
  %1347 = vmatprep.subr.mxu0 0.0
  %1348 = vmatpush1.msra.mxu0 0.0
  %1349 = vmatprep.subr.mxu0 0.0
  %1350 = vmatpush1.msra.mxu0 0.0
  %1351 = vmatprep.subr.mxu0 0.0
  %1352 = vmatpush1.msra.mxu0 0.0
  %1353 = vmatprep.subr.mxu0 0.0
  %1354 = vmatpush1.msra.mxu0 0.0
  %1355 = vmatprep.subr.mxu0 0.0
  %1356 = vmatpush1.msra.mxu0 0.0
  %1357 = vmatprep.subr.mxu0 0.0
  %1358 = vmatpush1.msra.mxu0 0.0
  %1359 = vmatprep.subr.mxu0 0.0
  %1360 = vmatpush1.msra.mxu0 0.0
  %1361 = vmatprep.mubr.f32.mxu0 0.0
  %1362 = vmatmul.mubr.f32.gmra.mrb[0].mxu0 %v1034
  %v1363 = vpop.f32.mrb[0].mxu0
  %v1364 = vadd.f32 0.0, %v1363
  %v1365 = vpop.f32.mrb[0].mxu0
  %1366 = vdwg.mxu0
  %v1367 = vadd.f32 %v1280, %v1364
  %v1368 = vxor.u32 %v1367, 2147483648
  %v1369 = vmul.f32 %v1368, 1.442695
  %v1370 = vpow.pop %v1369
  %v1371 = vadd.f32 %v1370, 1.0
  %v1372 = vrcp.pop %v1371
  %v1373 = vmul.f32 1.0, %v1372
  %v1374 = vtanh.pop %v1367
  %v1375 = vsel %vm214, %v1373, %v1374
  %1376 = vrot.lane.b32.xlu0 %v1375, 96
  %v1377 = vpop.permute.xlu0 %1376
  %1378 = vrot.lane.b32.xlu0 %v1375, 64
  %v1379 = vpop.permute.xlu0 %1378
  %1380 = vrot.lane.b32.xlu0 %v1375, 32
  %v1381 = vpop.permute.xlu0 %1380
  %v1382 = vmul.f32 %v1377, %v1032
  %v1383 = vmul.f32 %v1375, %v1381
  %v1384 = vadd.f32 %v1382, %v1383
  %v1385 = vtanh.pop %v1384
  %v1386 = vmul.f32 %v1379, %v1385
  %v1387 = vld [vmem:[%s6] sm:$0xff]
  %v1388 = vld [vmem:[%s6 + $0x8] sm:$0xff]
  %v1389 = vld [vmem:[%s6 + $0x10] sm:$0xff]
  %v1390 = vld [vmem:[%s6 + $0x18] sm:$0xff]
  %v1391 = vld [vmem:[%s6 + $0x20] sm:$0xff]
  %v1392 = vld [vmem:[%s6 + $0x28] sm:$0xff]
  %v1393 = vld [vmem:[%s6 + $0x30] sm:$0xff]
  %v1394 = vld [vmem:[%s6 + $0x38] sm:$0xff]
  %v1395 = vld [vmem:[%s6 + $0x40] sm:$0xff]
  %v1396 = vld [vmem:[%s6 + $0x48] sm:$0xff]
  %v1397 = vld [vmem:[%s6 + $0x50] sm:$0xff]
  %v1398 = vld [vmem:[%s6 + $0x58] sm:$0xff]
  %v1399 = vld [vmem:[%s6 + $0x60] sm:$0xff]
  %v1400 = vld [vmem:[%s6 + $0x68] sm:$0xff]
  %v1401 = vld [vmem:[%s6 + $0x70] sm:$0xff]
  %v1402 = vld [vmem:[%s6 + $0x78] sm:$0xff]
  %v1403 = vld [vmem:[%s6 + $0x80] sm:$0xff]
  %v1404 = vld [vmem:[%s6 + $0x88] sm:$0xff]
  %v1405 = vld [vmem:[%s6 + $0x90] sm:$0xff]
  %v1406 = vld [vmem:[%s6 + $0x98] sm:$0xff]
  %v1407 = vld [vmem:[%s6 + $0xa0] sm:$0xff]
  %v1408 = vld [vmem:[%s6 + $0xa8] sm:$0xff]
  %v1409 = vld [vmem:[%s6 + $0xb0] sm:$0xff]
  %v1410 = vld [vmem:[%s6 + $0xb8] sm:$0xff]
  %v1411 = vld [vmem:[%s6 + $0xc0] sm:$0xff]
  %v1412 = vld [vmem:[%s6 + $0xc8] sm:$0xff]
  %v1413 = vld [vmem:[%s6 + $0xd0] sm:$0xff]
  %v1414 = vld [vmem:[%s6 + $0xd8] sm:$0xff]
  %v1415 = vld [vmem:[%s6 + $0xe0] sm:$0xff]
  %v1416 = vld [vmem:[%s6 + $0xe8] sm:$0xff]
  %v1417 = vld [vmem:[%s6 + $0xf0] sm:$0xff]
  %v1418 = vld [vmem:[%s6 + $0xf8] sm:$0xff]
  %1419 = vmatprep.subr.mxu0 0.0
  %1420 = vmatpush1.msra.mxu0 %v1387
  %1421 = vmatprep.subr.mxu0 0.0
  %1422 = vmatpush1.msra.mxu0 %v1388
  %1423 = vmatprep.subr.mxu0 0.0
  %1424 = vmatpush1.msra.mxu0 %v1389
  %1425 = vmatprep.subr.mxu0 0.0
  %1426 = vmatpush1.msra.mxu0 %v1390
  %1427 = vmatprep.subr.mxu0 0.0
  %1428 = vmatpush1.msra.mxu0 %v1391
  %1429 = vmatprep.subr.mxu0 0.0
  %1430 = vmatpush1.msra.mxu0 %v1392
  %1431 = vmatprep.subr.mxu0 0.0
  %1432 = vmatpush1.msra.mxu0 %v1393
  %1433 = vmatprep.subr.mxu0 0.0
  %1434 = vmatpush1.msra.mxu0 %v1394
  %1435 = vmatprep.subr.mxu0 0.0
  %1436 = vmatpush1.msra.mxu0 %v1395
  %1437 = vmatprep.subr.mxu0 0.0
  %1438 = vmatpush1.msra.mxu0 %v1396
  %1439 = vmatprep.subr.mxu0 0.0
  %1440 = vmatpush1.msra.mxu0 %v1397
  %1441 = vmatprep.subr.mxu0 0.0
  %1442 = vmatpush1.msra.mxu0 %v1398
  %1443 = vmatprep.subr.mxu0 0.0
  %1444 = vmatpush1.msra.mxu0 %v1399
  %1445 = vmatprep.subr.mxu0 0.0
  %1446 = vmatpush1.msra.mxu0 %v1400
  %1447 = vmatprep.subr.mxu0 0.0
  %1448 = vmatpush1.msra.mxu0 %v1401
  %1449 = vmatprep.subr.mxu0 0.0
  %1450 = vmatpush1.msra.mxu0 %v1402
  %1451 = vmatprep.subr.mxu0 0.0
  %1452 = vmatpush1.msra.mxu0 %v1403
  %1453 = vmatprep.subr.mxu0 0.0
  %1454 = vmatpush1.msra.mxu0 %v1404
  %1455 = vmatprep.subr.mxu0 0.0
  %1456 = vmatpush1.msra.mxu0 %v1405
  %1457 = vmatprep.subr.mxu0 0.0
  %1458 = vmatpush1.msra.mxu0 %v1406
  %1459 = vmatprep.subr.mxu0 0.0
  %1460 = vmatpush1.msra.mxu0 %v1407
  %1461 = vmatprep.subr.mxu0 0.0
  %1462 = vmatpush1.msra.mxu0 %v1408
  %1463 = vmatprep.subr.mxu0 0.0
  %1464 = vmatpush1.msra.mxu0 %v1409
  %1465 = vmatprep.subr.mxu0 0.0
  %1466 = vmatpush1.msra.mxu0 %v1410
  %1467 = vmatprep.subr.mxu0 0.0
  %1468 = vmatpush1.msra.mxu0 %v1411
  %1469 = vmatprep.subr.mxu0 0.0
  %1470 = vmatpush1.msra.mxu0 %v1412
  %1471 = vmatprep.subr.mxu0 0.0
  %1472 = vmatpush1.msra.mxu0 %v1413
  %1473 = vmatprep.subr.mxu0 0.0
  %1474 = vmatpush1.msra.mxu0 %v1414
  %1475 = vmatprep.subr.mxu0 0.0
  %1476 = vmatpush1.msra.mxu0 %v1415
  %1477 = vmatprep.subr.mxu0 0.0
  %1478 = vmatpush1.msra.mxu0 %v1416
  %1479 = vmatprep.subr.mxu0 0.0
  %1480 = vmatpush1.msra.mxu0 %v1417
  %1481 = vmatprep.subr.mxu0 0.0
  %1482 = vmatpush1.msra.mxu0 %v1418
  %1483 = vmatprep.mubr.f32.mxu0 %v1155
  %1484 = vmatmul.mubr.f32.gmra.mrb[0].mxu0 %v1386
  %v1485 = vpop.f32.mrb[0].mxu0
  %v1486 = vadd.f32 %v203, %v1485
  %v1487 = vpop.f32.mrb[0].mxu0
  %1488 = vdwg.mxu0
  %v1489 = vxor.u32 %v1486, 2147483648
  %v1490 = vmul.f32 %v1489, 1.442695
  %v1491 = vpow.pop %v1490
  %v1492 = vadd.f32 %v1491, 1.0
  %v1493 = vrcp.pop %v1492
  %v1494 = vmul.f32 1.0, %v1493
  %v1495 = vtanh.pop %v1486
  %v1496 = vsel %vm214, %v1494, %v1495
  %1497 = vrot.lane.b32.xlu0 %v1496, 96
  %v1498 = vpop.permute.xlu0 %1497
  %1499 = vrot.lane.b32.xlu0 %v1496, 64
  %v1500 = vpop.permute.xlu0 %1499
  %1501 = vrot.lane.b32.xlu0 %v1496, 32
  %v1502 = vpop.permute.xlu0 %1501
  %v1503 = vmul.f32 %v1498, %v1153
  %v1504 = vmul.f32 %v1496, %v1502
  %v1505 = vadd.f32 %v1503, %v1504
  %v1506 = vtanh.pop %v1505
  %v1507 = vmul.f32 %v1500, %v1506
  %v1508 = vld [vmem:[%s8] sm:$0xff]
  %v1509 = vld [vmem:[%s8 + $0x8] sm:$0xff]
  %v1510 = vld [vmem:[%s8 + $0x10] sm:$0xff]
  %v1511 = vld [vmem:[%s8 + $0x18] sm:$0xff]
  %v1512 = vld [vmem:[%s8 + $0x20] sm:$0xff]
  %v1513 = vld [vmem:[%s8 + $0x28] sm:$0xff]
  %v1514 = vld [vmem:[%s8 + $0x30] sm:$0xff]
  %v1515 = vld [vmem:[%s8 + $0x38] sm:$0xff]
  %v1516 = vld [vmem:[%s8 + $0x40] sm:$0xff]
  %v1517 = vld [vmem:[%s8 + $0x48] sm:$0xff]
  %v1518 = vld [vmem:[%s8 + $0x50] sm:$0xff]
  %v1519 = vld [vmem:[%s8 + $0x58] sm:$0xff]
  %v1520 = vld [vmem:[%s8 + $0x60] sm:$0xff]
  %v1521 = vld [vmem:[%s8 + $0x68] sm:$0xff]
  %v1522 = vld [vmem:[%s8 + $0x70] sm:$0xff]
  %v1523 = vld [vmem:[%s8 + $0x78] sm:$0xff]
  %v1524 = vld [vmem:[%s8 + $0x80] sm:$0xff]
  %v1525 = vld [vmem:[%s8 + $0x88] sm:$0xff]
  %v1526 = vld [vmem:[%s8 + $0x90] sm:$0xff]
  %v1527 = vld [vmem:[%s8 + $0x98] sm:$0xff]
  %v1528 = vld [vmem:[%s8 + $0xa0] sm:$0xff]
  %v1529 = vld [vmem:[%s8 + $0xa8] sm:$0xff]
  %v1530 = vld [vmem:[%s8 + $0xb0] sm:$0xff]
  %v1531 = vld [vmem:[%s8 + $0xb8] sm:$0xff]
  %v1532 = vld [vmem:[%s8 + $0xc0] sm:$0xff]
  %v1533 = vld [vmem:[%s8 + $0xc8] sm:$0xff]
  %v1534 = vld [vmem:[%s8 + $0xd0] sm:$0xff]
  %v1535 = vld [vmem:[%s8 + $0xd8] sm:$0xff]
  %v1536 = vld [vmem:[%s8 + $0xe0] sm:$0xff]
  %v1537 = vld [vmem:[%s8 + $0xe8] sm:$0xff]
  %v1538 = vld [vmem:[%s8 + $0xf0] sm:$0xff]
  %v1539 = vld [vmem:[%s8 + $0xf8] sm:$0xff]
  %1540 = vmatprep.subr.mxu0 0.0
  %1541 = vmatpush1.msra.mxu0 %v1508
  %1542 = vmatprep.subr.mxu0 0.0
  %1543 = vmatpush1.msra.mxu0 %v1509
  %1544 = vmatprep.subr.mxu0 0.0
  %1545 = vmatpush1.msra.mxu0 %v1510
  %1546 = vmatprep.subr.mxu0 0.0
  %1547 = vmatpush1.msra.mxu0 %v1511
  %1548 = vmatprep.subr.mxu0 0.0
  %1549 = vmatpush1.msra.mxu0 %v1512
  %1550 = vmatprep.subr.mxu0 0.0
  %1551 = vmatpush1.msra.mxu0 %v1513
  %1552 = vmatprep.subr.mxu0 0.0
  %1553 = vmatpush1.msra.mxu0 %v1514
  %1554 = vmatprep.subr.mxu0 0.0
  %1555 = vmatpush1.msra.mxu0 %v1515
  %1556 = vmatprep.subr.mxu0 0.0
  %1557 = vmatpush1.msra.mxu0 %v1516
  %1558 = vmatprep.subr.mxu0 0.0
  %1559 = vmatpush1.msra.mxu0 %v1517
  %1560 = vmatprep.subr.mxu0 0.0
  %1561 = vmatpush1.msra.mxu0 %v1518
  %1562 = vmatprep.subr.mxu0 0.0
  %1563 = vmatpush1.msra.mxu0 %v1519
  %1564 = vmatprep.subr.mxu0 0.0
  %1565 = vmatpush1.msra.mxu0 %v1520
  %1566 = vmatprep.subr.mxu0 0.0
  %1567 = vmatpush1.msra.mxu0 %v1521
  %1568 = vmatprep.subr.mxu0 0.0
  %1569 = vmatpush1.msra.mxu0 %v1522
  %1570 = vmatprep.subr.mxu0 0.0
  %1571 = vmatpush1.msra.mxu0 %v1523
  %1572 = vmatprep.subr.mxu0 0.0
  %1573 = vmatpush1.msra.mxu0 %v1524
  %1574 = vmatprep.subr.mxu0 0.0
  %1575 = vmatpush1.msra.mxu0 %v1525
  %1576 = vmatprep.subr.mxu0 0.0
  %1577 = vmatpush1.msra.mxu0 %v1526
  %1578 = vmatprep.subr.mxu0 0.0
  %1579 = vmatpush1.msra.mxu0 %v1527
  %1580 = vmatprep.subr.mxu0 0.0
  %1581 = vmatpush1.msra.mxu0 %v1528
  %1582 = vmatprep.subr.mxu0 0.0
  %1583 = vmatpush1.msra.mxu0 %v1529
  %1584 = vmatprep.subr.mxu0 0.0
  %1585 = vmatpush1.msra.mxu0 %v1530
  %1586 = vmatprep.subr.mxu0 0.0
  %1587 = vmatpush1.msra.mxu0 %v1531
  %1588 = vmatprep.subr.mxu0 0.0
  %1589 = vmatpush1.msra.mxu0 %v1532
  %1590 = vmatprep.subr.mxu0 0.0
  %1591 = vmatpush1.msra.mxu0 %v1533
  %1592 = vmatprep.subr.mxu0 0.0
  %1593 = vmatpush1.msra.mxu0 %v1534
  %1594 = vmatprep.subr.mxu0 0.0
  %1595 = vmatpush1.msra.mxu0 %v1535
  %1596 = vmatprep.subr.mxu0 0.0
  %1597 = vmatpush1.msra.mxu0 %v1536
  %1598 = vmatprep.subr.mxu0 0.0
  %1599 = vmatpush1.msra.mxu0 %v1537
  %1600 = vmatprep.subr.mxu0 0.0
  %1601 = vmatpush1.msra.mxu0 %v1538
  %1602 = vmatprep.subr.mxu0 0.0
  %1603 = vmatpush1.msra.mxu0 %v1539
  %1604 = vmatprep.mubr.f32.mxu0 %v1276
  %1605 = vmatmul.mubr.f32.gmra.mrb[0].mxu0 %v1507
  %v1606 = vpop.f32.mrb[0].mxu0
  %v1607 = vadd.f32 %v210, %v1606
  %v1608 = vpop.f32.mrb[0].mxu0
  %1609 = vdwg.mxu0
  %v1610 = vxor.u32 %v1607, 2147483648
  %v1611 = vmul.f32 %v1610, 1.442695
  %v1612 = vpow.pop %v1611
  %v1613 = vadd.f32 %v1612, 1.0
  %v1614 = vrcp.pop %v1613
  %v1615 = vmul.f32 1.0, %v1614
  %v1616 = vtanh.pop %v1607
  %v1617 = vsel %vm214, %v1615, %v1616
  %1618 = vrot.lane.b32.xlu0 %v1617, 96
  %v1619 = vpop.permute.xlu0 %1618
  %1620 = vrot.lane.b32.xlu0 %v1617, 64
  %v1621 = vpop.permute.xlu0 %1620
  %1622 = vrot.lane.b32.xlu0 %v1617, 32
  %v1623 = vpop.permute.xlu0 %1622
  %v1624 = vmul.f32 %v1619, %v1274
  %v1625 = vmul.f32 %v1617, %v1623
  %v1626 = vadd.f32 %v1624, %v1625
  %v1627 = vtanh.pop %v1626
  %v1628 = vmul.f32 %v1621, %v1627
  %s1629 = scalar_lea.vmem %s10, 24
  %1630 = vst [vmem:[%s1629] sm:$0xff] %v1628
  %s1631 = scalar_lea.vmem [#allocation2], 32
  %v1632 = vld [vmem:[%s1631] sm:$0xff]
  %v1633 = vld [vmem:[%s4] sm:$0xff]
  %v1634 = vld [vmem:[%s4 + $0x8] sm:$0xff]
  %v1635 = vld [vmem:[%s4 + $0x10] sm:$0xff]
  %v1636 = vld [vmem:[%s4 + $0x18] sm:$0xff]
  %v1637 = vld [vmem:[%s4 + $0x20] sm:$0xff]
  %v1638 = vld [vmem:[%s4 + $0x28] sm:$0xff]
  %v1639 = vld [vmem:[%s4 + $0x30] sm:$0xff]
  %v1640 = vld [vmem:[%s4 + $0x38] sm:$0xff]
  %v1641 = vld [vmem:[%s4 + $0x40] sm:$0xff]
  %v1642 = vld [vmem:[%s4 + $0x48] sm:$0xff]
  %v1643 = vld [vmem:[%s4 + $0x50] sm:$0xff]
  %v1644 = vld [vmem:[%s4 + $0x58] sm:$0xff]
  %v1645 = vld [vmem:[%s4 + $0x60] sm:$0xff]
  %v1646 = vld [vmem:[%s4 + $0x68] sm:$0xff]
  %v1647 = vld [vmem:[%s4 + $0x70] sm:$0xff]
  %v1648 = vld [vmem:[%s4 + $0x78] sm:$0xff]
  %1649 = vmatprep.subr.mxu0 0.0
  %1650 = vmatpush1.msra.mxu0 %v1633
  %1651 = vmatprep.subr.mxu0 0.0
  %1652 = vmatpush1.msra.mxu0 %v1634
  %1653 = vmatprep.subr.mxu0 0.0
  %1654 = vmatpush1.msra.mxu0 %v1635
  %1655 = vmatprep.subr.mxu0 0.0
  %1656 = vmatpush1.msra.mxu0 %v1636
  %1657 = vmatprep.subr.mxu0 0.0
  %1658 = vmatpush1.msra.mxu0 %v1637
  %1659 = vmatprep.subr.mxu0 0.0
  %1660 = vmatpush1.msra.mxu0 %v1638
  %1661 = vmatprep.subr.mxu0 0.0
  %1662 = vmatpush1.msra.mxu0 %v1639
  %1663 = vmatprep.subr.mxu0 0.0
  %1664 = vmatpush1.msra.mxu0 %v1640
  %1665 = vmatprep.subr.mxu0 0.0
  %1666 = vmatpush1.msra.mxu0 %v1641
  %1667 = vmatprep.subr.mxu0 0.0
  %1668 = vmatpush1.msra.mxu0 %v1642
  %1669 = vmatprep.subr.mxu0 0.0
  %1670 = vmatpush1.msra.mxu0 %v1643
  %1671 = vmatprep.subr.mxu0 0.0
  %1672 = vmatpush1.msra.mxu0 %v1644
  %1673 = vmatprep.subr.mxu0 0.0
  %1674 = vmatpush1.msra.mxu0 %v1645
  %1675 = vmatprep.subr.mxu0 0.0
  %1676 = vmatpush1.msra.mxu0 %v1646
  %1677 = vmatprep.subr.mxu0 0.0
  %1678 = vmatpush1.msra.mxu0 %v1647
  %1679 = vmatprep.subr.mxu0 0.0
  %1680 = vmatpush1.msra.mxu0 %v1648
  %1681 = vmatprep.subr.mxu0 0.0
  %1682 = vmatpush1.msra.mxu0 0.0
  %1683 = vmatprep.subr.mxu0 0.0
  %1684 = vmatpush1.msra.mxu0 0.0
  %1685 = vmatprep.subr.mxu0 0.0
  %1686 = vmatpush1.msra.mxu0 0.0
  %1687 = vmatprep.subr.mxu0 0.0
  %1688 = vmatpush1.msra.mxu0 0.0
  %1689 = vmatprep.subr.mxu0 0.0
  %1690 = vmatpush1.msra.mxu0 0.0
  %1691 = vmatprep.subr.mxu0 0.0
  %1692 = vmatpush1.msra.mxu0 0.0
  %1693 = vmatprep.subr.mxu0 0.0
  %1694 = vmatpush1.msra.mxu0 0.0
  %1695 = vmatprep.subr.mxu0 0.0
  %1696 = vmatpush1.msra.mxu0 0.0
  %1697 = vmatprep.subr.mxu0 0.0
  %1698 = vmatpush1.msra.mxu0 0.0
  %1699 = vmatprep.subr.mxu0 0.0
  %1700 = vmatpush1.msra.mxu0 0.0
  %1701 = vmatprep.subr.mxu0 0.0
  %1702 = vmatpush1.msra.mxu0 0.0
  %1703 = vmatprep.subr.mxu0 0.0
  %1704 = vmatpush1.msra.mxu0 0.0
  %1705 = vmatprep.subr.mxu0 0.0
  %1706 = vmatpush1.msra.mxu0 0.0
  %1707 = vmatprep.subr.mxu0 0.0
  %1708 = vmatpush1.msra.mxu0 0.0
  %1709 = vmatprep.subr.mxu0 0.0
  %1710 = vmatpush1.msra.mxu0 0.0
  %1711 = vmatprep.subr.mxu0 0.0
  %1712 = vmatpush1.msra.mxu0 0.0
  %1713 = vmatprep.mubr.f32.mxu0 0.0
  %1714 = vmatmul.mubr.f32.gmra.mrb[0].mxu0 %v1386
  %v1715 = vpop.f32.mrb[0].mxu0
  %v1716 = vadd.f32 0.0, %v1715
  %v1717 = vpop.f32.mrb[0].mxu0
  %1718 = vdwg.mxu0
  %v1719 = vadd.f32 %v1632, %v1716
  %v1720 = vxor.u32 %v1719, 2147483648
  %v1721 = vmul.f32 %v1720, 1.442695
  %v1722 = vpow.pop %v1721
  %v1723 = vadd.f32 %v1722, 1.0
  %v1724 = vrcp.pop %v1723
  %v1725 = vmul.f32 1.0, %v1724
  %v1726 = vtanh.pop %v1719
  %v1727 = vsel %vm214, %v1725, %v1726
  %1728 = vrot.lane.b32.xlu0 %v1727, 96
  %v1729 = vpop.permute.xlu0 %1728
  %1730 = vrot.lane.b32.xlu0 %v1727, 64
  %v1731 = vpop.permute.xlu0 %1730
  %1732 = vrot.lane.b32.xlu0 %v1727, 32
  %v1733 = vpop.permute.xlu0 %1732
  %v1734 = vmul.f32 %v1729, %v1384
  %v1735 = vmul.f32 %v1727, %v1733
  %v1736 = vadd.f32 %v1734, %v1735
  %v1737 = vtanh.pop %v1736
  %v1738 = vmul.f32 %v1731, %v1737
  %v1739 = vld [vmem:[%s6] sm:$0xff]
  %v1740 = vld [vmem:[%s6 + $0x8] sm:$0xff]
  %v1741 = vld [vmem:[%s6 + $0x10] sm:$0xff]
  %v1742 = vld [vmem:[%s6 + $0x18] sm:$0xff]
  %v1743 = vld [vmem:[%s6 + $0x20] sm:$0xff]
  %v1744 = vld [vmem:[%s6 + $0x28] sm:$0xff]
  %v1745 = vld [vmem:[%s6 + $0x30] sm:$0xff]
  %v1746 = vld [vmem:[%s6 + $0x38] sm:$0xff]
  %v1747 = vld [vmem:[%s6 + $0x40] sm:$0xff]
  %v1748 = vld [vmem:[%s6 + $0x48] sm:$0xff]
  %v1749 = vld [vmem:[%s6 + $0x50] sm:$0xff]
  %v1750 = vld [vmem:[%s6 + $0x58] sm:$0xff]
  %v1751 = vld [vmem:[%s6 + $0x60] sm:$0xff]
  %v1752 = vld [vmem:[%s6 + $0x68] sm:$0xff]
  %v1753 = vld [vmem:[%s6 + $0x70] sm:$0xff]
  %v1754 = vld [vmem:[%s6 + $0x78] sm:$0xff]
  %v1755 = vld [vmem:[%s6 + $0x80] sm:$0xff]
  %v1756 = vld [vmem:[%s6 + $0x88] sm:$0xff]
  %v1757 = vld [vmem:[%s6 + $0x90] sm:$0xff]
  %v1758 = vld [vmem:[%s6 + $0x98] sm:$0xff]
  %v1759 = vld [vmem:[%s6 + $0xa0] sm:$0xff]
  %v1760 = vld [vmem:[%s6 + $0xa8] sm:$0xff]
  %v1761 = vld [vmem:[%s6 + $0xb0] sm:$0xff]
  %v1762 = vld [vmem:[%s6 + $0xb8] sm:$0xff]
  %v1763 = vld [vmem:[%s6 + $0xc0] sm:$0xff]
  %v1764 = vld [vmem:[%s6 + $0xc8] sm:$0xff]
  %v1765 = vld [vmem:[%s6 + $0xd0] sm:$0xff]
  %v1766 = vld [vmem:[%s6 + $0xd8] sm:$0xff]
  %v1767 = vld [vmem:[%s6 + $0xe0] sm:$0xff]
  %v1768 = vld [vmem:[%s6 + $0xe8] sm:$0xff]
  %v1769 = vld [vmem:[%s6 + $0xf0] sm:$0xff]
  %v1770 = vld [vmem:[%s6 + $0xf8] sm:$0xff]
  %1771 = vmatprep.subr.mxu0 0.0
  %1772 = vmatpush1.msra.mxu0 %v1739
  %1773 = vmatprep.subr.mxu0 0.0
  %1774 = vmatpush1.msra.mxu0 %v1740
  %1775 = vmatprep.subr.mxu0 0.0
  %1776 = vmatpush1.msra.mxu0 %v1741
  %1777 = vmatprep.subr.mxu0 0.0
  %1778 = vmatpush1.msra.mxu0 %v1742
  %1779 = vmatprep.subr.mxu0 0.0
  %1780 = vmatpush1.msra.mxu0 %v1743
  %1781 = vmatprep.subr.mxu0 0.0
  %1782 = vmatpush1.msra.mxu0 %v1744
  %1783 = vmatprep.subr.mxu0 0.0
  %1784 = vmatpush1.msra.mxu0 %v1745
  %1785 = vmatprep.subr.mxu0 0.0
  %1786 = vmatpush1.msra.mxu0 %v1746
  %1787 = vmatprep.subr.mxu0 0.0
  %1788 = vmatpush1.msra.mxu0 %v1747
  %1789 = vmatprep.subr.mxu0 0.0
  %1790 = vmatpush1.msra.mxu0 %v1748
  %1791 = vmatprep.subr.mxu0 0.0
  %1792 = vmatpush1.msra.mxu0 %v1749
  %1793 = vmatprep.subr.mxu0 0.0
  %1794 = vmatpush1.msra.mxu0 %v1750
  %1795 = vmatprep.subr.mxu0 0.0
  %1796 = vmatpush1.msra.mxu0 %v1751
  %1797 = vmatprep.subr.mxu0 0.0
  %1798 = vmatpush1.msra.mxu0 %v1752
  %1799 = vmatprep.subr.mxu0 0.0
  %1800 = vmatpush1.msra.mxu0 %v1753
  %1801 = vmatprep.subr.mxu0 0.0
  %1802 = vmatpush1.msra.mxu0 %v1754
  %1803 = vmatprep.subr.mxu0 0.0
  %1804 = vmatpush1.msra.mxu0 %v1755
  %1805 = vmatprep.subr.mxu0 0.0
  %1806 = vmatpush1.msra.mxu0 %v1756
  %1807 = vmatprep.subr.mxu0 0.0
  %1808 = vmatpush1.msra.mxu0 %v1757
  %1809 = vmatprep.subr.mxu0 0.0
  %1810 = vmatpush1.msra.mxu0 %v1758
  %1811 = vmatprep.subr.mxu0 0.0
  %1812 = vmatpush1.msra.mxu0 %v1759
  %1813 = vmatprep.subr.mxu0 0.0
  %1814 = vmatpush1.msra.mxu0 %v1760
  %1815 = vmatprep.subr.mxu0 0.0
  %1816 = vmatpush1.msra.mxu0 %v1761
  %1817 = vmatprep.subr.mxu0 0.0
  %1818 = vmatpush1.msra.mxu0 %v1762
  %1819 = vmatprep.subr.mxu0 0.0
  %1820 = vmatpush1.msra.mxu0 %v1763
  %1821 = vmatprep.subr.mxu0 0.0
  %1822 = vmatpush1.msra.mxu0 %v1764
  %1823 = vmatprep.subr.mxu0 0.0
  %1824 = vmatpush1.msra.mxu0 %v1765
  %1825 = vmatprep.subr.mxu0 0.0
  %1826 = vmatpush1.msra.mxu0 %v1766
  %1827 = vmatprep.subr.mxu0 0.0
  %1828 = vmatpush1.msra.mxu0 %v1767
  %1829 = vmatprep.subr.mxu0 0.0
  %1830 = vmatpush1.msra.mxu0 %v1768
  %1831 = vmatprep.subr.mxu0 0.0
  %1832 = vmatpush1.msra.mxu0 %v1769
  %1833 = vmatprep.subr.mxu0 0.0
  %1834 = vmatpush1.msra.mxu0 %v1770
  %1835 = vmatprep.mubr.f32.mxu0 %v1507
  %1836 = vmatmul.mubr.f32.gmra.mrb[0].mxu0 %v1738
  %v1837 = vpop.f32.mrb[0].mxu0
  %v1838 = vadd.f32 %v203, %v1837
  %v1839 = vpop.f32.mrb[0].mxu0
  %1840 = vdwg.mxu0
  %v1841 = vxor.u32 %v1838, 2147483648
  %v1842 = vmul.f32 %v1841, 1.442695
  %v1843 = vpow.pop %v1842
  %v1844 = vadd.f32 %v1843, 1.0
  %v1845 = vrcp.pop %v1844
  %v1846 = vmul.f32 1.0, %v1845
  %v1847 = vtanh.pop %v1838
  %v1848 = vsel %vm214, %v1846, %v1847
  %1849 = vrot.lane.b32.xlu0 %v1848, 96
  %v1850 = vpop.permute.xlu0 %1849
  %1851 = vrot.lane.b32.xlu0 %v1848, 64
  %v1852 = vpop.permute.xlu0 %1851
  %1853 = vrot.lane.b32.xlu0 %v1848, 32
  %v1854 = vpop.permute.xlu0 %1853
  %v1855 = vmul.f32 %v1850, %v1505
  %v1856 = vmul.f32 %v1848, %v1854
  %v1857 = vadd.f32 %v1855, %v1856
  %v1858 = vtanh.pop %v1857
  %v1859 = vmul.f32 %v1852, %v1858
  %v1860 = vld [vmem:[%s8] sm:$0xff]
  %v1861 = vld [vmem:[%s8 + $0x8] sm:$0xff]
  %v1862 = vld [vmem:[%s8 + $0x10] sm:$0xff]
  %v1863 = vld [vmem:[%s8 + $0x18] sm:$0xff]
  %v1864 = vld [vmem:[%s8 + $0x20] sm:$0xff]
  %v1865 = vld [vmem:[%s8 + $0x28] sm:$0xff]
  %v1866 = vld [vmem:[%s8 + $0x30] sm:$0xff]
  %v1867 = vld [vmem:[%s8 + $0x38] sm:$0xff]
  %v1868 = vld [vmem:[%s8 + $0x40] sm:$0xff]
  %v1869 = vld [vmem:[%s8 + $0x48] sm:$0xff]
  %v1870 = vld [vmem:[%s8 + $0x50] sm:$0xff]
  %v1871 = vld [vmem:[%s8 + $0x58] sm:$0xff]
  %v1872 = vld [vmem:[%s8 + $0x60] sm:$0xff]
  %v1873 = vld [vmem:[%s8 + $0x68] sm:$0xff]
  %v1874 = vld [vmem:[%s8 + $0x70] sm:$0xff]
  %v1875 = vld [vmem:[%s8 + $0x78] sm:$0xff]
  %v1876 = vld [vmem:[%s8 + $0x80] sm:$0xff]
  %v1877 = vld [vmem:[%s8 + $0x88] sm:$0xff]
  %v1878 = vld [vmem:[%s8 + $0x90] sm:$0xff]
  %v1879 = vld [vmem:[%s8 + $0x98] sm:$0xff]
  %v1880 = vld [vmem:[%s8 + $0xa0] sm:$0xff]
  %v1881 = vld [vmem:[%s8 + $0xa8] sm:$0xff]
  %v1882 = vld [vmem:[%s8 + $0xb0] sm:$0xff]
  %v1883 = vld [vmem:[%s8 + $0xb8] sm:$0xff]
  %v1884 = vld [vmem:[%s8 + $0xc0] sm:$0xff]
  %v1885 = vld [vmem:[%s8 + $0xc8] sm:$0xff]
  %v1886 = vld [vmem:[%s8 + $0xd0] sm:$0xff]
  %v1887 = vld [vmem:[%s8 + $0xd8] sm:$0xff]
  %v1888 = vld [vmem:[%s8 + $0xe0] sm:$0xff]
  %v1889 = vld [vmem:[%s8 + $0xe8] sm:$0xff]
  %v1890 = vld [vmem:[%s8 + $0xf0] sm:$0xff]
  %v1891 = vld [vmem:[%s8 + $0xf8] sm:$0xff]
  %1892 = vmatprep.subr.mxu0 0.0
  %1893 = vmatpush1.msra.mxu0 %v1860
  %1894 = vmatprep.subr.mxu0 0.0
  %1895 = vmatpush1.msra.mxu0 %v1861
  %1896 = vmatprep.subr.mxu0 0.0
  %1897 = vmatpush1.msra.mxu0 %v1862
  %1898 = vmatprep.subr.mxu0 0.0
  %1899 = vmatpush1.msra.mxu0 %v1863
  %1900 = vmatprep.subr.mxu0 0.0
  %1901 = vmatpush1.msra.mxu0 %v1864
  %1902 = vmatprep.subr.mxu0 0.0
  %1903 = vmatpush1.msra.mxu0 %v1865
  %1904 = vmatprep.subr.mxu0 0.0
  %1905 = vmatpush1.msra.mxu0 %v1866
  %1906 = vmatprep.subr.mxu0 0.0
  %1907 = vmatpush1.msra.mxu0 %v1867
  %1908 = vmatprep.subr.mxu0 0.0
  %1909 = vmatpush1.msra.mxu0 %v1868
  %1910 = vmatprep.subr.mxu0 0.0
  %1911 = vmatpush1.msra.mxu0 %v1869
  %1912 = vmatprep.subr.mxu0 0.0
  %1913 = vmatpush1.msra.mxu0 %v1870
  %1914 = vmatprep.subr.mxu0 0.0
  %1915 = vmatpush1.msra.mxu0 %v1871
  %1916 = vmatprep.subr.mxu0 0.0
  %1917 = vmatpush1.msra.mxu0 %v1872
  %1918 = vmatprep.subr.mxu0 0.0
  %1919 = vmatpush1.msra.mxu0 %v1873
  %1920 = vmatprep.subr.mxu0 0.0
  %1921 = vmatpush1.msra.mxu0 %v1874
  %1922 = vmatprep.subr.mxu0 0.0
  %1923 = vmatpush1.msra.mxu0 %v1875
  %1924 = vmatprep.subr.mxu0 0.0
  %1925 = vmatpush1.msra.mxu0 %v1876
  %1926 = vmatprep.subr.mxu0 0.0
  %1927 = vmatpush1.msra.mxu0 %v1877
  %1928 = vmatprep.subr.mxu0 0.0
  %1929 = vmatpush1.msra.mxu0 %v1878
  %1930 = vmatprep.subr.mxu0 0.0
  %1931 = vmatpush1.msra.mxu0 %v1879
  %1932 = vmatprep.subr.mxu0 0.0
  %1933 = vmatpush1.msra.mxu0 %v1880
  %1934 = vmatprep.subr.mxu0 0.0
  %1935 = vmatpush1.msra.mxu0 %v1881
  %1936 = vmatprep.subr.mxu0 0.0
  %1937 = vmatpush1.msra.mxu0 %v1882
  %1938 = vmatprep.subr.mxu0 0.0
  %1939 = vmatpush1.msra.mxu0 %v1883
  %1940 = vmatprep.subr.mxu0 0.0
  %1941 = vmatpush1.msra.mxu0 %v1884
  %1942 = vmatprep.subr.mxu0 0.0
  %1943 = vmatpush1.msra.mxu0 %v1885
  %1944 = vmatprep.subr.mxu0 0.0
  %1945 = vmatpush1.msra.mxu0 %v1886
  %1946 = vmatprep.subr.mxu0 0.0
  %1947 = vmatpush1.msra.mxu0 %v1887
  %1948 = vmatprep.subr.mxu0 0.0
  %1949 = vmatpush1.msra.mxu0 %v1888
  %1950 = vmatprep.subr.mxu0 0.0
  %1951 = vmatpush1.msra.mxu0 %v1889
  %1952 = vmatprep.subr.mxu0 0.0
  %1953 = vmatpush1.msra.mxu0 %v1890
  %1954 = vmatprep.subr.mxu0 0.0
  %1955 = vmatpush1.msra.mxu0 %v1891
  %1956 = vmatprep.mubr.f32.mxu0 %v1628
  %1957 = vmatmul.mubr.f32.gmra.mrb[0].mxu0 %v1859
  %v1958 = vpop.f32.mrb[0].mxu0
  %v1959 = vadd.f32 %v210, %v1958
  %v1960 = vpop.f32.mrb[0].mxu0
  %1961 = vdwg.mxu0
  %v1962 = vxor.u32 %v1959, 2147483648
  %v1963 = vmul.f32 %v1962, 1.442695
  %v1964 = vpow.pop %v1963
  %v1965 = vadd.f32 %v1964, 1.0
  %v1966 = vrcp.pop %v1965
  %v1967 = vmul.f32 1.0, %v1966
  %v1968 = vtanh.pop %v1959
  %v1969 = vsel %vm214, %v1967, %v1968
  %1970 = vrot.lane.b32.xlu0 %v1969, 96
  %v1971 = vpop.permute.xlu0 %1970
  %1972 = vrot.lane.b32.xlu0 %v1969, 64
  %v1973 = vpop.permute.xlu0 %1972
  %1974 = vrot.lane.b32.xlu0 %v1969, 32
  %v1975 = vpop.permute.xlu0 %1974
  %v1976 = vmul.f32 %v1971, %v1626
  %v1977 = vmul.f32 %v1969, %v1975
  %v1978 = vadd.f32 %v1976, %v1977
  %v1979 = vtanh.pop %v1978
  %v1980 = vmul.f32 %v1973, %v1979
  %s1981 = scalar_lea.vmem %s10, 32
  %1982 = vst [vmem:[%s1981] sm:$0xff] %v1980
  %s1983 = scalar_lea.vmem [#allocation2], 40
  %v1984 = vld [vmem:[%s1983] sm:$0xff]
  %v1985 = vld [vmem:[%s4] sm:$0xff]
  %v1986 = vld [vmem:[%s4 + $0x8] sm:$0xff]
  %v1987 = vld [vmem:[%s4 + $0x10] sm:$0xff]
  %v1988 = vld [vmem:[%s4 + $0x18] sm:$0xff]
  %v1989 = vld [vmem:[%s4 + $0x20] sm:$0xff]
  %v1990 = vld [vmem:[%s4 + $0x28] sm:$0xff]
  %v1991 = vld [vmem:[%s4 + $0x30] sm:$0xff]
  %v1992 = vld [vmem:[%s4 + $0x38] sm:$0xff]
  %v1993 = vld [vmem:[%s4 + $0x40] sm:$0xff]
  %v1994 = vld [vmem:[%s4 + $0x48] sm:$0xff]
  %v1995 = vld [vmem:[%s4 + $0x50] sm:$0xff]
  %v1996 = vld [vmem:[%s4 + $0x58] sm:$0xff]
  %v1997 = vld [vmem:[%s4 + $0x60] sm:$0xff]
  %v1998 = vld [vmem:[%s4 + $0x68] sm:$0xff]
  %v1999 = vld [vmem:[%s4 + $0x70] sm:$0xff]
  %v2000 = vld [vmem:[%s4 + $0x78] sm:$0xff]
  %2001 = vmatprep.subr.mxu0 0.0
  %2002 = vmatpush1.msra.mxu0 %v1985
  %2003 = vmatprep.subr.mxu0 0.0
  %2004 = vmatpush1.msra.mxu0 %v1986
  %2005 = vmatprep.subr.mxu0 0.0
  %2006 = vmatpush1.msra.mxu0 %v1987
  %2007 = vmatprep.subr.mxu0 0.0
  %2008 = vmatpush1.msra.mxu0 %v1988
  %2009 = vmatprep.subr.mxu0 0.0
  %2010 = vmatpush1.msra.mxu0 %v1989
  %2011 = vmatprep.subr.mxu0 0.0
  %2012 = vmatpush1.msra.mxu0 %v1990
  %2013 = vmatprep.subr.mxu0 0.0
  %2014 = vmatpush1.msra.mxu0 %v1991
  %2015 = vmatprep.subr.mxu0 0.0
  %2016 = vmatpush1.msra.mxu0 %v1992
  %2017 = vmatprep.subr.mxu0 0.0
  %2018 = vmatpush1.msra.mxu0 %v1993
  %2019 = vmatprep.subr.mxu0 0.0
  %2020 = vmatpush1.msra.mxu0 %v1994
  %2021 = vmatprep.subr.mxu0 0.0
  %2022 = vmatpush1.msra.mxu0 %v1995
  %2023 = vmatprep.subr.mxu0 0.0
  %2024 = vmatpush1.msra.mxu0 %v1996
  %2025 = vmatprep.subr.mxu0 0.0
  %2026 = vmatpush1.msra.mxu0 %v1997
  %2027 = vmatprep.subr.mxu0 0.0
  %2028 = vmatpush1.msra.mxu0 %v1998
  %2029 = vmatprep.subr.mxu0 0.0
  %2030 = vmatpush1.msra.mxu0 %v1999
  %2031 = vmatprep.subr.mxu0 0.0
  %2032 = vmatpush1.msra.mxu0 %v2000
  %2033 = vmatprep.subr.mxu0 0.0
  %2034 = vmatpush1.msra.mxu0 0.0
  %2035 = vmatprep.subr.mxu0 0.0
  %2036 = vmatpush1.msra.mxu0 0.0
  %2037 = vmatprep.subr.mxu0 0.0
  %2038 = vmatpush1.msra.mxu0 0.0
  %2039 = vmatprep.subr.mxu0 0.0
  %2040 = vmatpush1.msra.mxu0 0.0
  %2041 = vmatprep.subr.mxu0 0.0
  %2042 = vmatpush1.msra.mxu0 0.0
  %2043 = vmatprep.subr.mxu0 0.0
  %2044 = vmatpush1.msra.mxu0 0.0
  %2045 = vmatprep.subr.mxu0 0.0
  %2046 = vmatpush1.msra.mxu0 0.0
  %2047 = vmatprep.subr.mxu0 0.0
  %2048 = vmatpush1.msra.mxu0 0.0
  %2049 = vmatprep.subr.mxu0 0.0
  %2050 = vmatpush1.msra.mxu0 0.0
  %2051 = vmatprep.subr.mxu0 0.0
  %2052 = vmatpush1.msra.mxu0 0.0
  %2053 = vmatprep.subr.mxu0 0.0
  %2054 = vmatpush1.msra.mxu0 0.0
  %2055 = vmatprep.subr.mxu0 0.0
  %2056 = vmatpush1.msra.mxu0 0.0
  %2057 = vmatprep.subr.mxu0 0.0
  %2058 = vmatpush1.msra.mxu0 0.0
  %2059 = vmatprep.subr.mxu0 0.0
  %2060 = vmatpush1.msra.mxu0 0.0
  %2061 = vmatprep.subr.mxu0 0.0
  %2062 = vmatpush1.msra.mxu0 0.0
  %2063 = vmatprep.subr.mxu0 0.0
  %2064 = vmatpush1.msra.mxu0 0.0
  %2065 = vmatprep.mubr.f32.mxu0 0.0
  %2066 = vmatmul.mubr.f32.gmra.mrb[0].mxu0 %v1738
  %v2067 = vpop.f32.mrb[0].mxu0
  %v2068 = vadd.f32 0.0, %v2067
  %v2069 = vpop.f32.mrb[0].mxu0
  %2070 = vdwg.mxu0
  %v2071 = vadd.f32 %v1984, %v2068
  %v2072 = vxor.u32 %v2071, 2147483648
  %v2073 = vmul.f32 %v2072, 1.442695
  %v2074 = vpow.pop %v2073
  %v2075 = vadd.f32 %v2074, 1.0
  %v2076 = vrcp.pop %v2075
  %v2077 = vmul.f32 1.0, %v2076
  %v2078 = vtanh.pop %v2071
  %v2079 = vsel %vm214, %v2077, %v2078
  %2080 = vrot.lane.b32.xlu0 %v2079, 96
  %v2081 = vpop.permute.xlu0 %2080
  %2082 = vrot.lane.b32.xlu0 %v2079, 64
  %v2083 = vpop.permute.xlu0 %2082
  %2084 = vrot.lane.b32.xlu0 %v2079, 32
  %v2085 = vpop.permute.xlu0 %2084
  %v2086 = vmul.f32 %v2081, %v1736
  %v2087 = vmul.f32 %v2079, %v2085
  %v2088 = vadd.f32 %v2086, %v2087
  %v2089 = vtanh.pop %v2088
  %v2090 = vmul.f32 %v2083, %v2089
  %v2091 = vld [vmem:[%s6] sm:$0xff]
  %v2092 = vld [vmem:[%s6 + $0x8] sm:$0xff]
  %v2093 = vld [vmem:[%s6 + $0x10] sm:$0xff]
  %v2094 = vld [vmem:[%s6 + $0x18] sm:$0xff]
  %v2095 = vld [vmem:[%s6 + $0x20] sm:$0xff]
  %v2096 = vld [vmem:[%s6 + $0x28] sm:$0xff]
  %v2097 = vld [vmem:[%s6 + $0x30] sm:$0xff]
  %v2098 = vld [vmem:[%s6 + $0x38] sm:$0xff]
  %v2099 = vld [vmem:[%s6 + $0x40] sm:$0xff]
  %v2100 = vld [vmem:[%s6 + $0x48] sm:$0xff]
  %v2101 = vld [vmem:[%s6 + $0x50] sm:$0xff]
  %v2102 = vld [vmem:[%s6 + $0x58] sm:$0xff]
  %v2103 = vld [vmem:[%s6 + $0x60] sm:$0xff]
  %v2104 = vld [vmem:[%s6 + $0x68] sm:$0xff]
  %v2105 = vld [vmem:[%s6 + $0x70] sm:$0xff]
  %v2106 = vld [vmem:[%s6 + $0x78] sm:$0xff]
  %v2107 = vld [vmem:[%s6 + $0x80] sm:$0xff]
  %v2108 = vld [vmem:[%s6 + $0x88] sm:$0xff]
  %v2109 = vld [vmem:[%s6 + $0x90] sm:$0xff]
  %v2110 = vld [vmem:[%s6 + $0x98] sm:$0xff]
  %v2111 = vld [vmem:[%s6 + $0xa0] sm:$0xff]
  %v2112 = vld [vmem:[%s6 + $0xa8] sm:$0xff]
  %v2113 = vld [vmem:[%s6 + $0xb0] sm:$0xff]
  %v2114 = vld [vmem:[%s6 + $0xb8] sm:$0xff]
  %v2115 = vld [vmem:[%s6 + $0xc0] sm:$0xff]
  %v2116 = vld [vmem:[%s6 + $0xc8] sm:$0xff]
  %v2117 = vld [vmem:[%s6 + $0xd0] sm:$0xff]
  %v2118 = vld [vmem:[%s6 + $0xd8] sm:$0xff]
  %v2119 = vld [vmem:[%s6 + $0xe0] sm:$0xff]
  %v2120 = vld [vmem:[%s6 + $0xe8] sm:$0xff]
  %v2121 = vld [vmem:[%s6 + $0xf0] sm:$0xff]
  %v2122 = vld [vmem:[%s6 + $0xf8] sm:$0xff]
  %2123 = vmatprep.subr.mxu0 0.0
  %2124 = vmatpush1.msra.mxu0 %v2091
  %2125 = vmatprep.subr.mxu0 0.0
  %2126 = vmatpush1.msra.mxu0 %v2092
  %2127 = vmatprep.subr.mxu0 0.0
  %2128 = vmatpush1.msra.mxu0 %v2093
  %2129 = vmatprep.subr.mxu0 0.0
  %2130 = vmatpush1.msra.mxu0 %v2094
  %2131 = vmatprep.subr.mxu0 0.0
  %2132 = vmatpush1.msra.mxu0 %v2095
  %2133 = vmatprep.subr.mxu0 0.0
  %2134 = vmatpush1.msra.mxu0 %v2096
  %2135 = vmatprep.subr.mxu0 0.0
  %2136 = vmatpush1.msra.mxu0 %v2097
  %2137 = vmatprep.subr.mxu0 0.0
  %2138 = vmatpush1.msra.mxu0 %v2098
  %2139 = vmatprep.subr.mxu0 0.0
  %2140 = vmatpush1.msra.mxu0 %v2099
  %2141 = vmatprep.subr.mxu0 0.0
  %2142 = vmatpush1.msra.mxu0 %v2100
  %2143 = vmatprep.subr.mxu0 0.0
  %2144 = vmatpush1.msra.mxu0 %v2101
  %2145 = vmatprep.subr.mxu0 0.0
  %2146 = vmatpush1.msra.mxu0 %v2102
  %2147 = vmatprep.subr.mxu0 0.0
  %2148 = vmatpush1.msra.mxu0 %v2103
  %2149 = vmatprep.subr.mxu0 0.0
  %2150 = vmatpush1.msra.mxu0 %v2104
  %2151 = vmatprep.subr.mxu0 0.0
  %2152 = vmatpush1.msra.mxu0 %v2105
  %2153 = vmatprep.subr.mxu0 0.0
  %2154 = vmatpush1.msra.mxu0 %v2106
  %2155 = vmatprep.subr.mxu0 0.0
  %2156 = vmatpush1.msra.mxu0 %v2107
  %2157 = vmatprep.subr.mxu0 0.0
  %2158 = vmatpush1.msra.mxu0 %v2108
  %2159 = vmatprep.subr.mxu0 0.0
  %2160 = vmatpush1.msra.mxu0 %v2109
  %2161 = vmatprep.subr.mxu0 0.0
  %2162 = vmatpush1.msra.mxu0 %v2110
  %2163 = vmatprep.subr.mxu0 0.0
  %2164 = vmatpush1.msra.mxu0 %v2111
  %2165 = vmatprep.subr.mxu0 0.0
  %2166 = vmatpush1.msra.mxu0 %v2112
  %2167 = vmatprep.subr.mxu0 0.0
  %2168 = vmatpush1.msra.mxu0 %v2113
  %2169 = vmatprep.subr.mxu0 0.0
  %2170 = vmatpush1.msra.mxu0 %v2114
  %2171 = vmatprep.subr.mxu0 0.0
  %2172 = vmatpush1.msra.mxu0 %v2115
  %2173 = vmatprep.subr.mxu0 0.0
  %2174 = vmatpush1.msra.mxu0 %v2116
  %2175 = vmatprep.subr.mxu0 0.0
  %2176 = vmatpush1.msra.mxu0 %v2117
  %2177 = vmatprep.subr.mxu0 0.0
  %2178 = vmatpush1.msra.mxu0 %v2118
  %2179 = vmatprep.subr.mxu0 0.0
  %2180 = vmatpush1.msra.mxu0 %v2119
  %2181 = vmatprep.subr.mxu0 0.0
  %2182 = vmatpush1.msra.mxu0 %v2120
  %2183 = vmatprep.subr.mxu0 0.0
  %2184 = vmatpush1.msra.mxu0 %v2121
  %2185 = vmatprep.subr.mxu0 0.0
  %2186 = vmatpush1.msra.mxu0 %v2122
  %2187 = vmatprep.mubr.f32.mxu0 %v1859
  %2188 = vmatmul.mubr.f32.gmra.mrb[0].mxu0 %v2090
  %v2189 = vpop.f32.mrb[0].mxu0
  %v2190 = vadd.f32 %v203, %v2189
  %v2191 = vpop.f32.mrb[0].mxu0
  %2192 = vdwg.mxu0
  %v2193 = vxor.u32 %v2190, 2147483648
  %v2194 = vmul.f32 %v2193, 1.442695
  %v2195 = vpow.pop %v2194
  %v2196 = vadd.f32 %v2195, 1.0
  %v2197 = vrcp.pop %v2196
  %v2198 = vmul.f32 1.0, %v2197
  %v2199 = vtanh.pop %v2190
  %v2200 = vsel %vm214, %v2198, %v2199
  %2201 = vrot.lane.b32.xlu0 %v2200, 96
  %v2202 = vpop.permute.xlu0 %2201
  %2203 = vrot.lane.b32.xlu0 %v2200, 64
  %v2204 = vpop.permute.xlu0 %2203
  %2205 = vrot.lane.b32.xlu0 %v2200, 32
  %v2206 = vpop.permute.xlu0 %2205
  %v2207 = vmul.f32 %v2202, %v1857
  %v2208 = vmul.f32 %v2200, %v2206
  %v2209 = vadd.f32 %v2207, %v2208
  %v2210 = vtanh.pop %v2209
  %v2211 = vmul.f32 %v2204, %v2210
  %v2212 = vld [vmem:[%s8] sm:$0xff]
  %v2213 = vld [vmem:[%s8 + $0x8] sm:$0xff]
  %v2214 = vld [vmem:[%s8 + $0x10] sm:$0xff]
  %v2215 = vld [vmem:[%s8 + $0x18] sm:$0xff]
  %v2216 = vld [vmem:[%s8 + $0x20] sm:$0xff]
  %v2217 = vld [vmem:[%s8 + $0x28] sm:$0xff]
  %v2218 = vld [vmem:[%s8 + $0x30] sm:$0xff]
  %v2219 = vld [vmem:[%s8 + $0x38] sm:$0xff]
  %v2220 = vld [vmem:[%s8 + $0x40] sm:$0xff]
  %v2221 = vld [vmem:[%s8 + $0x48] sm:$0xff]
  %v2222 = vld [vmem:[%s8 + $0x50] sm:$0xff]
  %v2223 = vld [vmem:[%s8 + $0x58] sm:$0xff]
  %v2224 = vld [vmem:[%s8 + $0x60] sm:$0xff]
  %v2225 = vld [vmem:[%s8 + $0x68] sm:$0xff]
  %v2226 = vld [vmem:[%s8 + $0x70] sm:$0xff]
  %v2227 = vld [vmem:[%s8 + $0x78] sm:$0xff]
  %v2228 = vld [vmem:[%s8 + $0x80] sm:$0xff]
  %v2229 = vld [vmem:[%s8 + $0x88] sm:$0xff]
  %v2230 = vld [vmem:[%s8 + $0x90] sm:$0xff]
  %v2231 = vld [vmem:[%s8 + $0x98] sm:$0xff]
  %v2232 = vld [vmem:[%s8 + $0xa0] sm:$0xff]
  %v2233 = vld [vmem:[%s8 + $0xa8] sm:$0xff]
  %v2234 = vld [vmem:[%s8 + $0xb0] sm:$0xff]
  %v2235 = vld [vmem:[%s8 + $0xb8] sm:$0xff]
  %v2236 = vld [vmem:[%s8 + $0xc0] sm:$0xff]
  %v2237 = vld [vmem:[%s8 + $0xc8] sm:$0xff]
  %v2238 = vld [vmem:[%s8 + $0xd0] sm:$0xff]
  %v2239 = vld [vmem:[%s8 + $0xd8] sm:$0xff]
  %v2240 = vld [vmem:[%s8 + $0xe0] sm:$0xff]
  %v2241 = vld [vmem:[%s8 + $0xe8] sm:$0xff]
  %v2242 = vld [vmem:[%s8 + $0xf0] sm:$0xff]
  %v2243 = vld [vmem:[%s8 + $0xf8] sm:$0xff]
  %2244 = vmatprep.subr.mxu0 0.0
  %2245 = vmatpush1.msra.mxu0 %v2212
  %2246 = vmatprep.subr.mxu0 0.0
  %2247 = vmatpush1.msra.mxu0 %v2213
  %2248 = vmatprep.subr.mxu0 0.0
  %2249 = vmatpush1.msra.mxu0 %v2214
  %2250 = vmatprep.subr.mxu0 0.0
  %2251 = vmatpush1.msra.mxu0 %v2215
  %2252 = vmatprep.subr.mxu0 0.0
  %2253 = vmatpush1.msra.mxu0 %v2216
  %2254 = vmatprep.subr.mxu0 0.0
  %2255 = vmatpush1.msra.mxu0 %v2217
  %2256 = vmatprep.subr.mxu0 0.0
  %2257 = vmatpush1.msra.mxu0 %v2218
  %2258 = vmatprep.subr.mxu0 0.0
  %2259 = vmatpush1.msra.mxu0 %v2219
  %2260 = vmatprep.subr.mxu0 0.0
  %2261 = vmatpush1.msra.mxu0 %v2220
  %2262 = vmatprep.subr.mxu0 0.0
  %2263 = vmatpush1.msra.mxu0 %v2221
  %2264 = vmatprep.subr.mxu0 0.0
  %2265 = vmatpush1.msra.mxu0 %v2222
  %2266 = vmatprep.subr.mxu0 0.0
  %2267 = vmatpush1.msra.mxu0 %v2223
  %2268 = vmatprep.subr.mxu0 0.0
  %2269 = vmatpush1.msra.mxu0 %v2224
  %2270 = vmatprep.subr.mxu0 0.0
  %2271 = vmatpush1.msra.mxu0 %v2225
  %2272 = vmatprep.subr.mxu0 0.0
  %2273 = vmatpush1.msra.mxu0 %v2226
  %2274 = vmatprep.subr.mxu0 0.0
  %2275 = vmatpush1.msra.mxu0 %v2227
  %2276 = vmatprep.subr.mxu0 0.0
  %2277 = vmatpush1.msra.mxu0 %v2228
  %2278 = vmatprep.subr.mxu0 0.0
  %2279 = vmatpush1.msra.mxu0 %v2229
  %2280 = vmatprep.subr.mxu0 0.0
  %2281 = vmatpush1.msra.mxu0 %v2230
  %2282 = vmatprep.subr.mxu0 0.0
  %2283 = vmatpush1.msra.mxu0 %v2231
  %2284 = vmatprep.subr.mxu0 0.0
  %2285 = vmatpush1.msra.mxu0 %v2232
  %2286 = vmatprep.subr.mxu0 0.0
  %2287 = vmatpush1.msra.mxu0 %v2233
  %2288 = vmatprep.subr.mxu0 0.0
  %2289 = vmatpush1.msra.mxu0 %v2234
  %2290 = vmatprep.subr.mxu0 0.0
  %2291 = vmatpush1.msra.mxu0 %v2235
  %2292 = vmatprep.subr.mxu0 0.0
  %2293 = vmatpush1.msra.mxu0 %v2236
  %2294 = vmatprep.subr.mxu0 0.0
  %2295 = vmatpush1.msra.mxu0 %v2237
  %2296 = vmatprep.subr.mxu0 0.0
  %2297 = vmatpush1.msra.mxu0 %v2238
  %2298 = vmatprep.subr.mxu0 0.0
  %2299 = vmatpush1.msra.mxu0 %v2239
  %2300 = vmatprep.subr.mxu0 0.0
  %2301 = vmatpush1.msra.mxu0 %v2240
  %2302 = vmatprep.subr.mxu0 0.0
  %2303 = vmatpush1.msra.mxu0 %v2241
  %2304 = vmatprep.subr.mxu0 0.0
  %2305 = vmatpush1.msra.mxu0 %v2242
  %2306 = vmatprep.subr.mxu0 0.0
  %2307 = vmatpush1.msra.mxu0 %v2243
  %2308 = vmatprep.mubr.f32.mxu0 %v1980
  %2309 = vmatmul.mubr.f32.gmra.mrb[0].mxu0 %v2211
  %v2310 = vpop.f32.mrb[0].mxu0
  %v2311 = vadd.f32 %v210, %v2310
  %v2312 = vpop.f32.mrb[0].mxu0
  %2313 = vdwg.mxu0
  %v2314 = vxor.u32 %v2311, 2147483648
  %v2315 = vmul.f32 %v2314, 1.442695
  %v2316 = vpow.pop %v2315
  %v2317 = vadd.f32 %v2316, 1.0
  %v2318 = vrcp.pop %v2317
  %v2319 = vmul.f32 1.0, %v2318
  %v2320 = vtanh.pop %v2311
  %v2321 = vsel %vm214, %v2319, %v2320
  %2322 = vrot.lane.b32.xlu0 %v2321, 96
  %v2323 = vpop.permute.xlu0 %2322
  %2324 = vrot.lane.b32.xlu0 %v2321, 64
  %v2325 = vpop.permute.xlu0 %2324
  %2326 = vrot.lane.b32.xlu0 %v2321, 32
  %v2327 = vpop.permute.xlu0 %2326
  %v2328 = vmul.f32 %v2323, %v1978
  %v2329 = vmul.f32 %v2321, %v2327
  %v2330 = vadd.f32 %v2328, %v2329
  %v2331 = vtanh.pop %v2330
  %v2332 = vmul.f32 %v2325, %v2331
  %s2333 = scalar_lea.vmem %s10, 40
  %2334 = vst [vmem:[%s2333] sm:$0xff] %v2332
  %s2335 = scalar_lea.vmem [#allocation2], 48
  %v2336 = vld [vmem:[%s2335] sm:$0xff]
  %v2337 = vld [vmem:[%s4] sm:$0xff]
  %v2338 = vld [vmem:[%s4 + $0x8] sm:$0xff]
  %v2339 = vld [vmem:[%s4 + $0x10] sm:$0xff]
  %v2340 = vld [vmem:[%s4 + $0x18] sm:$0xff]
  %v2341 = vld [vmem:[%s4 + $0x20] sm:$0xff]
  %v2342 = vld [vmem:[%s4 + $0x28] sm:$0xff]
  %v2343 = vld [vmem:[%s4 + $0x30] sm:$0xff]
  %v2344 = vld [vmem:[%s4 + $0x38] sm:$0xff]
  %v2345 = vld [vmem:[%s4 + $0x40] sm:$0xff]
  %v2346 = vld [vmem:[%s4 + $0x48] sm:$0xff]
  %v2347 = vld [vmem:[%s4 + $0x50] sm:$0xff]
  %v2348 = vld [vmem:[%s4 + $0x58] sm:$0xff]
  %v2349 = vld [vmem:[%s4 + $0x60] sm:$0xff]
  %v2350 = vld [vmem:[%s4 + $0x68] sm:$0xff]
  %v2351 = vld [vmem:[%s4 + $0x70] sm:$0xff]
  %v2352 = vld [vmem:[%s4 + $0x78] sm:$0xff]
  %2353 = vmatprep.subr.mxu0 0.0
  %2354 = vmatpush1.msra.mxu0 %v2337
  %2355 = vmatprep.subr.mxu0 0.0
  %2356 = vmatpush1.msra.mxu0 %v2338
  %2357 = vmatprep.subr.mxu0 0.0
  %2358 = vmatpush1.msra.mxu0 %v2339
  %2359 = vmatprep.subr.mxu0 0.0
  %2360 = vmatpush1.msra.mxu0 %v2340
  %2361 = vmatprep.subr.mxu0 0.0
  %2362 = vmatpush1.msra.mxu0 %v2341
  %2363 = vmatprep.subr.mxu0 0.0
  %2364 = vmatpush1.msra.mxu0 %v2342
  %2365 = vmatprep.subr.mxu0 0.0
  %2366 = vmatpush1.msra.mxu0 %v2343
  %2367 = vmatprep.subr.mxu0 0.0
  %2368 = vmatpush1.msra.mxu0 %v2344
  %2369 = vmatprep.subr.mxu0 0.0
  %2370 = vmatpush1.msra.mxu0 %v2345
  %2371 = vmatprep.subr.mxu0 0.0
  %2372 = vmatpush1.msra.mxu0 %v2346
  %2373 = vmatprep.subr.mxu0 0.0
  %2374 = vmatpush1.msra.mxu0 %v2347
  %2375 = vmatprep.subr.mxu0 0.0
  %2376 = vmatpush1.msra.mxu0 %v2348
  %2377 = vmatprep.subr.mxu0 0.0
  %2378 = vmatpush1.msra.mxu0 %v2349
  %2379 = vmatprep.subr.mxu0 0.0
  %2380 = vmatpush1.msra.mxu0 %v2350
  %2381 = vmatprep.subr.mxu0 0.0
  %2382 = vmatpush1.msra.mxu0 %v2351
  %2383 = vmatprep.subr.mxu0 0.0
  %2384 = vmatpush1.msra.mxu0 %v2352
  %2385 = vmatprep.subr.mxu0 0.0
  %2386 = vmatpush1.msra.mxu0 0.0
  %2387 = vmatprep.subr.mxu0 0.0
  %2388 = vmatpush1.msra.mxu0 0.0
  %2389 = vmatprep.subr.mxu0 0.0
  %2390 = vmatpush1.msra.mxu0 0.0
  %2391 = vmatprep.subr.mxu0 0.0
  %2392 = vmatpush1.msra.mxu0 0.0
  %2393 = vmatprep.subr.mxu0 0.0
  %2394 = vmatpush1.msra.mxu0 0.0
  %2395 = vmatprep.subr.mxu0 0.0
  %2396 = vmatpush1.msra.mxu0 0.0
  %2397 = vmatprep.subr.mxu0 0.0
  %2398 = vmatpush1.msra.mxu0 0.0
  %2399 = vmatprep.subr.mxu0 0.0
  %2400 = vmatpush1.msra.mxu0 0.0
  %2401 = vmatprep.subr.mxu0 0.0
  %2402 = vmatpush1.msra.mxu0 0.0
  %2403 = vmatprep.subr.mxu0 0.0
  %2404 = vmatpush1.msra.mxu0 0.0
  %2405 = vmatprep.subr.mxu0 0.0
  %2406 = vmatpush1.msra.mxu0 0.0
  %2407 = vmatprep.subr.mxu0 0.0
  %2408 = vmatpush1.msra.mxu0 0.0
  %2409 = vmatprep.subr.mxu0 0.0
  %2410 = vmatpush1.msra.mxu0 0.0
  %2411 = vmatprep.subr.mxu0 0.0
  %2412 = vmatpush1.msra.mxu0 0.0
  %2413 = vmatprep.subr.mxu0 0.0
  %2414 = vmatpush1.msra.mxu0 0.0
  %2415 = vmatprep.subr.mxu0 0.0
  %2416 = vmatpush1.msra.mxu0 0.0
  %2417 = vmatprep.mubr.f32.mxu0 0.0
  %2418 = vmatmul.mubr.f32.gmra.mrb[0].mxu0 %v2090
  %v2419 = vpop.f32.mrb[0].mxu0
  %v2420 = vadd.f32 0.0, %v2419
  %v2421 = vpop.f32.mrb[0].mxu0
  %2422 = vdwg.mxu0
  %v2423 = vadd.f32 %v2336, %v2420
  %v2424 = vxor.u32 %v2423, 2147483648
  %v2425 = vmul.f32 %v2424, 1.442695
  %v2426 = vpow.pop %v2425
  %v2427 = vadd.f32 %v2426, 1.0
  %v2428 = vrcp.pop %v2427
  %v2429 = vmul.f32 1.0, %v2428
  %v2430 = vtanh.pop %v2423
  %v2431 = vsel %vm214, %v2429, %v2430
  %2432 = vrot.lane.b32.xlu0 %v2431, 96
  %v2433 = vpop.permute.xlu0 %2432
  %2434 = vrot.lane.b32.xlu0 %v2431, 64
  %v2435 = vpop.permute.xlu0 %2434
  %2436 = vrot.lane.b32.xlu0 %v2431, 32
  %v2437 = vpop.permute.xlu0 %2436
  %v2438 = vmul.f32 %v2433, %v2088
  %v2439 = vmul.f32 %v2431, %v2437
  %v2440 = vadd.f32 %v2438, %v2439
  %v2441 = vtanh.pop %v2440
  %v2442 = vmul.f32 %v2435, %v2441
  %v2443 = vld [vmem:[%s6] sm:$0xff]
  %v2444 = vld [vmem:[%s6 + $0x8] sm:$0xff]
  %v2445 = vld [vmem:[%s6 + $0x10] sm:$0xff]
  %v2446 = vld [vmem:[%s6 + $0x18] sm:$0xff]
  %v2447 = vld [vmem:[%s6 + $0x20] sm:$0xff]
  %v2448 = vld [vmem:[%s6 + $0x28] sm:$0xff]
  %v2449 = vld [vmem:[%s6 + $0x30] sm:$0xff]
  %v2450 = vld [vmem:[%s6 + $0x38] sm:$0xff]
  %v2451 = vld [vmem:[%s6 + $0x40] sm:$0xff]
  %v2452 = vld [vmem:[%s6 + $0x48] sm:$0xff]
  %v2453 = vld [vmem:[%s6 + $0x50] sm:$0xff]
  %v2454 = vld [vmem:[%s6 + $0x58] sm:$0xff]
  %v2455 = vld [vmem:[%s6 + $0x60] sm:$0xff]
  %v2456 = vld [vmem:[%s6 + $0x68] sm:$0xff]
  %v2457 = vld [vmem:[%s6 + $0x70] sm:$0xff]
  %v2458 = vld [vmem:[%s6 + $0x78] sm:$0xff]
  %v2459 = vld [vmem:[%s6 + $0x80] sm:$0xff]
  %v2460 = vld [vmem:[%s6 + $0x88] sm:$0xff]
  %v2461 = vld [vmem:[%s6 + $0x90] sm:$0xff]
  %v2462 = vld [vmem:[%s6 + $0x98] sm:$0xff]
  %v2463 = vld [vmem:[%s6 + $0xa0] sm:$0xff]
  %v2464 = vld [vmem:[%s6 + $0xa8] sm:$0xff]
  %v2465 = vld [vmem:[%s6 + $0xb0] sm:$0xff]
  %v2466 = vld [vmem:[%s6 + $0xb8] sm:$0xff]
  %v2467 = vld [vmem:[%s6 + $0xc0] sm:$0xff]
  %v2468 = vld [vmem:[%s6 + $0xc8] sm:$0xff]
  %v2469 = vld [vmem:[%s6 + $0xd0] sm:$0xff]
  %v2470 = vld [vmem:[%s6 + $0xd8] sm:$0xff]
  %v2471 = vld [vmem:[%s6 + $0xe0] sm:$0xff]
  %v2472 = vld [vmem:[%s6 + $0xe8] sm:$0xff]
  %v2473 = vld [vmem:[%s6 + $0xf0] sm:$0xff]
  %v2474 = vld [vmem:[%s6 + $0xf8] sm:$0xff]
  %2475 = vmatprep.subr.mxu0 0.0
  %2476 = vmatpush1.msra.mxu0 %v2443
  %2477 = vmatprep.subr.mxu0 0.0
  %2478 = vmatpush1.msra.mxu0 %v2444
  %2479 = vmatprep.subr.mxu0 0.0
  %2480 = vmatpush1.msra.mxu0 %v2445
  %2481 = vmatprep.subr.mxu0 0.0
  %2482 = vmatpush1.msra.mxu0 %v2446
  %2483 = vmatprep.subr.mxu0 0.0
  %2484 = vmatpush1.msra.mxu0 %v2447
  %2485 = vmatprep.subr.mxu0 0.0
  %2486 = vmatpush1.msra.mxu0 %v2448
  %2487 = vmatprep.subr.mxu0 0.0
  %2488 = vmatpush1.msra.mxu0 %v2449
  %2489 = vmatprep.subr.mxu0 0.0
  %2490 = vmatpush1.msra.mxu0 %v2450
  %2491 = vmatprep.subr.mxu0 0.0
  %2492 = vmatpush1.msra.mxu0 %v2451
  %2493 = vmatprep.subr.mxu0 0.0
  %2494 = vmatpush1.msra.mxu0 %v2452
  %2495 = vmatprep.subr.mxu0 0.0
  %2496 = vmatpush1.msra.mxu0 %v2453
  %2497 = vmatprep.subr.mxu0 0.0
  %2498 = vmatpush1.msra.mxu0 %v2454
  %2499 = vmatprep.subr.mxu0 0.0
  %2500 = vmatpush1.msra.mxu0 %v2455
  %2501 = vmatprep.subr.mxu0 0.0
  %2502 = vmatpush1.msra.mxu0 %v2456
  %2503 = vmatprep.subr.mxu0 0.0
  %2504 = vmatpush1.msra.mxu0 %v2457
  %2505 = vmatprep.subr.mxu0 0.0
  %2506 = vmatpush1.msra.mxu0 %v2458
  %2507 = vmatprep.subr.mxu0 0.0
  %2508 = vmatpush1.msra.mxu0 %v2459
  %2509 = vmatprep.subr.mxu0 0.0
  %2510 = vmatpush1.msra.mxu0 %v2460
  %2511 = vmatprep.subr.mxu0 0.0
  %2512 = vmatpush1.msra.mxu0 %v2461
  %2513 = vmatprep.subr.mxu0 0.0
  %2514 = vmatpush1.msra.mxu0 %v2462
  %2515 = vmatprep.subr.mxu0 0.0
  %2516 = vmatpush1.msra.mxu0 %v2463
  %2517 = vmatprep.subr.mxu0 0.0
  %2518 = vmatpush1.msra.mxu0 %v2464
  %2519 = vmatprep.subr.mxu0 0.0
  %2520 = vmatpush1.msra.mxu0 %v2465
  %2521 = vmatprep.subr.mxu0 0.0
  %2522 = vmatpush1.msra.mxu0 %v2466
  %2523 = vmatprep.subr.mxu0 0.0
  %2524 = vmatpush1.msra.mxu0 %v2467
  %2525 = vmatprep.subr.mxu0 0.0
  %2526 = vmatpush1.msra.mxu0 %v2468
  %2527 = vmatprep.subr.mxu0 0.0
  %2528 = vmatpush1.msra.mxu0 %v2469
  %2529 = vmatprep.subr.mxu0 0.0
  %2530 = vmatpush1.msra.mxu0 %v2470
  %2531 = vmatprep.subr.mxu0 0.0
  %2532 = vmatpush1.msra.mxu0 %v2471
  %2533 = vmatprep.subr.mxu0 0.0
  %2534 = vmatpush1.msra.mxu0 %v2472
  %2535 = vmatprep.subr.mxu0 0.0
  %2536 = vmatpush1.msra.mxu0 %v2473
  %2537 = vmatprep.subr.mxu0 0.0
  %2538 = vmatpush1.msra.mxu0 %v2474
  %2539 = vmatprep.mubr.f32.mxu0 %v2211
  %2540 = vmatmul.mubr.f32.gmra.mrb[0].mxu0 %v2442
  %v2541 = vpop.f32.mrb[0].mxu0
  %v2542 = vadd.f32 %v203, %v2541
  %v2543 = vpop.f32.mrb[0].mxu0
  %2544 = vdwg.mxu0
  %v2545 = vxor.u32 %v2542, 2147483648
  %v2546 = vmul.f32 %v2545, 1.442695
  %v2547 = vpow.pop %v2546
  %v2548 = vadd.f32 %v2547, 1.0
  %v2549 = vrcp.pop %v2548
  %v2550 = vmul.f32 1.0, %v2549
  %v2551 = vtanh.pop %v2542
  %v2552 = vsel %vm214, %v2550, %v2551
  %2553 = vrot.lane.b32.xlu0 %v2552, 96
  %v2554 = vpop.permute.xlu0 %2553
  %2555 = vrot.lane.b32.xlu0 %v2552, 64
  %v2556 = vpop.permute.xlu0 %2555
  %2557 = vrot.lane.b32.xlu0 %v2552, 32
  %v2558 = vpop.permute.xlu0 %2557
  %v2559 = vmul.f32 %v2554, %v2209
  %v2560 = vmul.f32 %v2552, %v2558
  %v2561 = vadd.f32 %v2559, %v2560
  %v2562 = vtanh.pop %v2561
  %v2563 = vmul.f32 %v2556, %v2562
  %v2564 = vld [vmem:[%s8] sm:$0xff]
  %v2565 = vld [vmem:[%s8 + $0x8] sm:$0xff]
  %v2566 = vld [vmem:[%s8 + $0x10] sm:$0xff]
  %v2567 = vld [vmem:[%s8 + $0x18] sm:$0xff]
  %v2568 = vld [vmem:[%s8 + $0x20] sm:$0xff]
  %v2569 = vld [vmem:[%s8 + $0x28] sm:$0xff]
  %v2570 = vld [vmem:[%s8 + $0x30] sm:$0xff]
  %v2571 = vld [vmem:[%s8 + $0x38] sm:$0xff]
  %v2572 = vld [vmem:[%s8 + $0x40] sm:$0xff]
  %v2573 = vld [vmem:[%s8 + $0x48] sm:$0xff]
  %v2574 = vld [vmem:[%s8 + $0x50] sm:$0xff]
  %v2575 = vld [vmem:[%s8 + $0x58] sm:$0xff]
  %v2576 = vld [vmem:[%s8 + $0x60] sm:$0xff]
  %v2577 = vld [vmem:[%s8 + $0x68] sm:$0xff]
  %v2578 = vld [vmem:[%s8 + $0x70] sm:$0xff]
  %v2579 = vld [vmem:[%s8 + $0x78] sm:$0xff]
  %v2580 = vld [vmem:[%s8 + $0x80] sm:$0xff]
  %v2581 = vld [vmem:[%s8 + $0x88] sm:$0xff]
  %v2582 = vld [vmem:[%s8 + $0x90] sm:$0xff]
  %v2583 = vld [vmem:[%s8 + $0x98] sm:$0xff]
  %v2584 = vld [vmem:[%s8 + $0xa0] sm:$0xff]
  %v2585 = vld [vmem:[%s8 + $0xa8] sm:$0xff]
  %v2586 = vld [vmem:[%s8 + $0xb0] sm:$0xff]
  %v2587 = vld [vmem:[%s8 + $0xb8] sm:$0xff]
  %v2588 = vld [vmem:[%s8 + $0xc0] sm:$0xff]
  %v2589 = vld [vmem:[%s8 + $0xc8] sm:$0xff]
  %v2590 = vld [vmem:[%s8 + $0xd0] sm:$0xff]
  %v2591 = vld [vmem:[%s8 + $0xd8] sm:$0xff]
  %v2592 = vld [vmem:[%s8 + $0xe0] sm:$0xff]
  %v2593 = vld [vmem:[%s8 + $0xe8] sm:$0xff]
  %v2594 = vld [vmem:[%s8 + $0xf0] sm:$0xff]
  %v2595 = vld [vmem:[%s8 + $0xf8] sm:$0xff]
  %2596 = vmatprep.subr.mxu0 0.0
  %2597 = vmatpush1.msra.mxu0 %v2564
  %2598 = vmatprep.subr.mxu0 0.0
  %2599 = vmatpush1.msra.mxu0 %v2565
  %2600 = vmatprep.subr.mxu0 0.0
  %2601 = vmatpush1.msra.mxu0 %v2566
  %2602 = vmatprep.subr.mxu0 0.0
  %2603 = vmatpush1.msra.mxu0 %v2567
  %2604 = vmatprep.subr.mxu0 0.0
  %2605 = vmatpush1.msra.mxu0 %v2568
  %2606 = vmatprep.subr.mxu0 0.0
  %2607 = vmatpush1.msra.mxu0 %v2569
  %2608 = vmatprep.subr.mxu0 0.0
  %2609 = vmatpush1.msra.mxu0 %v2570
  %2610 = vmatprep.subr.mxu0 0.0
  %2611 = vmatpush1.msra.mxu0 %v2571
  %2612 = vmatprep.subr.mxu0 0.0
  %2613 = vmatpush1.msra.mxu0 %v2572
  %2614 = vmatprep.subr.mxu0 0.0
  %2615 = vmatpush1.msra.mxu0 %v2573
  %2616 = vmatprep.subr.mxu0 0.0
  %2617 = vmatpush1.msra.mxu0 %v2574
  %2618 = vmatprep.subr.mxu0 0.0
  %2619 = vmatpush1.msra.mxu0 %v2575
  %2620 = vmatprep.subr.mxu0 0.0
  %2621 = vmatpush1.msra.mxu0 %v2576
  %2622 = vmatprep.subr.mxu0 0.0
  %2623 = vmatpush1.msra.mxu0 %v2577
  %2624 = vmatprep.subr.mxu0 0.0
  %2625 = vmatpush1.msra.mxu0 %v2578
  %2626 = vmatprep.subr.mxu0 0.0
  %2627 = vmatpush1.msra.mxu0 %v2579
  %2628 = vmatprep.subr.mxu0 0.0
  %2629 = vmatpush1.msra.mxu0 %v2580
  %2630 = vmatprep.subr.mxu0 0.0
  %2631 = vmatpush1.msra.mxu0 %v2581
  %2632 = vmatprep.subr.mxu0 0.0
  %2633 = vmatpush1.msra.mxu0 %v2582
  %2634 = vmatprep.subr.mxu0 0.0
  %2635 = vmatpush1.msra.mxu0 %v2583
  %2636 = vmatprep.subr.mxu0 0.0
  %2637 = vmatpush1.msra.mxu0 %v2584
  %2638 = vmatprep.subr.mxu0 0.0
  %2639 = vmatpush1.msra.mxu0 %v2585
  %2640 = vmatprep.subr.mxu0 0.0
  %2641 = vmatpush1.msra.mxu0 %v2586
  %2642 = vmatprep.subr.mxu0 0.0
  %2643 = vmatpush1.msra.mxu0 %v2587
  %2644 = vmatprep.subr.mxu0 0.0
  %2645 = vmatpush1.msra.mxu0 %v2588
  %2646 = vmatprep.subr.mxu0 0.0
  %2647 = vmatpush1.msra.mxu0 %v2589
  %2648 = vmatprep.subr.mxu0 0.0
  %2649 = vmatpush1.msra.mxu0 %v2590
  %2650 = vmatprep.subr.mxu0 0.0
  %2651 = vmatpush1.msra.mxu0 %v2591
  %2652 = vmatprep.subr.mxu0 0.0
  %2653 = vmatpush1.msra.mxu0 %v2592
  %2654 = vmatprep.subr.mxu0 0.0
  %2655 = vmatpush1.msra.mxu0 %v2593
  %2656 = vmatprep.subr.mxu0 0.0
  %2657 = vmatpush1.msra.mxu0 %v2594
  %2658 = vmatprep.subr.mxu0 0.0
  %2659 = vmatpush1.msra.mxu0 %v2595
  %2660 = vmatprep.mubr.f32.mxu0 %v2332
  %2661 = vmatmul.mubr.f32.gmra.mrb[0].mxu0 %v2563
  %v2662 = vpop.f32.mrb[0].mxu0
  %v2663 = vadd.f32 %v210, %v2662
  %v2664 = vpop.f32.mrb[0].mxu0
  %2665 = vdwg.mxu0
  %v2666 = vxor.u32 %v2663, 2147483648
  %v2667 = vmul.f32 %v2666, 1.442695
  %v2668 = vpow.pop %v2667
  %v2669 = vadd.f32 %v2668, 1.0
  %v2670 = vrcp.pop %v2669
  %v2671 = vmul.f32 1.0, %v2670
  %v2672 = vtanh.pop %v2663
  %v2673 = vsel %vm214, %v2671, %v2672
  %2674 = vrot.lane.b32.xlu0 %v2673, 96
  %v2675 = vpop.permute.xlu0 %2674
  %2676 = vrot.lane.b32.xlu0 %v2673, 64
  %v2677 = vpop.permute.xlu0 %2676
  %2678 = vrot.lane.b32.xlu0 %v2673, 32
  %v2679 = vpop.permute.xlu0 %2678
  %v2680 = vmul.f32 %v2675, %v2330
  %v2681 = vmul.f32 %v2673, %v2679
  %v2682 = vadd.f32 %v2680, %v2681
  %v2683 = vtanh.pop %v2682
  %v2684 = vmul.f32 %v2677, %v2683
  %s2685 = scalar_lea.vmem %s10, 48
  %2686 = vst [vmem:[%s2685] sm:$0xff] %v2684
  %s2687 = scalar_lea.vmem [#allocation2], 56
  %v2688 = vld [vmem:[%s2687] sm:$0xff]
  %v2689 = vld [vmem:[%s4] sm:$0xff]
  %v2690 = vld [vmem:[%s4 + $0x8] sm:$0xff]
  %v2691 = vld [vmem:[%s4 + $0x10] sm:$0xff]
  %v2692 = vld [vmem:[%s4 + $0x18] sm:$0xff]
  %v2693 = vld [vmem:[%s4 + $0x20] sm:$0xff]
  %v2694 = vld [vmem:[%s4 + $0x28] sm:$0xff]
  %v2695 = vld [vmem:[%s4 + $0x30] sm:$0xff]
  %v2696 = vld [vmem:[%s4 + $0x38] sm:$0xff]
  %v2697 = vld [vmem:[%s4 + $0x40] sm:$0xff]
  %v2698 = vld [vmem:[%s4 + $0x48] sm:$0xff]
  %v2699 = vld [vmem:[%s4 + $0x50] sm:$0xff]
  %v2700 = vld [vmem:[%s4 + $0x58] sm:$0xff]
  %v2701 = vld [vmem:[%s4 + $0x60] sm:$0xff]
  %v2702 = vld [vmem:[%s4 + $0x68] sm:$0xff]
  %v2703 = vld [vmem:[%s4 + $0x70] sm:$0xff]
  %v2704 = vld [vmem:[%s4 + $0x78] sm:$0xff]
  %2705 = vmatprep.subr.mxu0 0.0
  %2706 = vmatpush1.msra.mxu0 %v2689
  %2707 = vmatprep.subr.mxu0 0.0
  %2708 = vmatpush1.msra.mxu0 %v2690
  %2709 = vmatprep.subr.mxu0 0.0
  %2710 = vmatpush1.msra.mxu0 %v2691
  %2711 = vmatprep.subr.mxu0 0.0
  %2712 = vmatpush1.msra.mxu0 %v2692
  %2713 = vmatprep.subr.mxu0 0.0
  %2714 = vmatpush1.msra.mxu0 %v2693
  %2715 = vmatprep.subr.mxu0 0.0
  %2716 = vmatpush1.msra.mxu0 %v2694
  %2717 = vmatprep.subr.mxu0 0.0
  %2718 = vmatpush1.msra.mxu0 %v2695
  %2719 = vmatprep.subr.mxu0 0.0
  %2720 = vmatpush1.msra.mxu0 %v2696
  %2721 = vmatprep.subr.mxu0 0.0
  %2722 = vmatpush1.msra.mxu0 %v2697
  %2723 = vmatprep.subr.mxu0 0.0
  %2724 = vmatpush1.msra.mxu0 %v2698
  %2725 = vmatprep.subr.mxu0 0.0
  %2726 = vmatpush1.msra.mxu0 %v2699
  %2727 = vmatprep.subr.mxu0 0.0
  %2728 = vmatpush1.msra.mxu0 %v2700
  %2729 = vmatprep.subr.mxu0 0.0
  %2730 = vmatpush1.msra.mxu0 %v2701
  %2731 = vmatprep.subr.mxu0 0.0
  %2732 = vmatpush1.msra.mxu0 %v2702
  %2733 = vmatprep.subr.mxu0 0.0
  %2734 = vmatpush1.msra.mxu0 %v2703
  %2735 = vmatprep.subr.mxu0 0.0
  %2736 = vmatpush1.msra.mxu0 %v2704
  %2737 = vmatprep.subr.mxu0 0.0
  %2738 = vmatpush1.msra.mxu0 0.0
  %2739 = vmatprep.subr.mxu0 0.0
  %2740 = vmatpush1.msra.mxu0 0.0
  %2741 = vmatprep.subr.mxu0 0.0
  %2742 = vmatpush1.msra.mxu0 0.0
  %2743 = vmatprep.subr.mxu0 0.0
  %2744 = vmatpush1.msra.mxu0 0.0
  %2745 = vmatprep.subr.mxu0 0.0
  %2746 = vmatpush1.msra.mxu0 0.0
  %2747 = vmatprep.subr.mxu0 0.0
  %2748 = vmatpush1.msra.mxu0 0.0
  %2749 = vmatprep.subr.mxu0 0.0
  %2750 = vmatpush1.msra.mxu0 0.0
  %2751 = vmatprep.subr.mxu0 0.0
  %2752 = vmatpush1.msra.mxu0 0.0
  %2753 = vmatprep.subr.mxu0 0.0
  %2754 = vmatpush1.msra.mxu0 0.0
  %2755 = vmatprep.subr.mxu0 0.0
  %2756 = vmatpush1.msra.mxu0 0.0
  %2757 = vmatprep.subr.mxu0 0.0
  %2758 = vmatpush1.msra.mxu0 0.0
  %2759 = vmatprep.subr.mxu0 0.0
  %2760 = vmatpush1.msra.mxu0 0.0
  %2761 = vmatprep.subr.mxu0 0.0
  %2762 = vmatpush1.msra.mxu0 0.0
  %2763 = vmatprep.subr.mxu0 0.0
  %2764 = vmatpush1.msra.mxu0 0.0
  %2765 = vmatprep.subr.mxu0 0.0
  %2766 = vmatpush1.msra.mxu0 0.0
  %2767 = vmatprep.subr.mxu0 0.0
  %2768 = vmatpush1.msra.mxu0 0.0
  %2769 = vmatprep.mubr.f32.mxu0 0.0
  %2770 = vmatmul.mubr.f32.gmra.mrb[0].mxu0 %v2442
  %v2771 = vpop.f32.mrb[0].mxu0
  %v2772 = vadd.f32 0.0, %v2771
  %v2773 = vpop.f32.mrb[0].mxu0
  %2774 = vdwg.mxu0
  %v2775 = vadd.f32 %v2688, %v2772
  %v2776 = vxor.u32 %v2775, 2147483648
  %v2777 = vmul.f32 %v2776, 1.442695
  %v2778 = vpow.pop %v2777
  %v2779 = vadd.f32 %v2778, 1.0
  %v2780 = vrcp.pop %v2779
  %v2781 = vmul.f32 1.0, %v2780
  %v2782 = vtanh.pop %v2775
  %v2783 = vsel %vm214, %v2781, %v2782
  %2784 = vrot.lane.b32.xlu0 %v2783, 96
  %v2785 = vpop.permute.xlu0 %2784
  %2786 = vrot.lane.b32.xlu0 %v2783, 64
  %v2787 = vpop.permute.xlu0 %2786
  %2788 = vrot.lane.b32.xlu0 %v2783, 32
  %v2789 = vpop.permute.xlu0 %2788
  %v2790 = vmul.f32 %v2785, %v2440
  %v2791 = vmul.f32 %v2783, %v2789
  %v2792 = vadd.f32 %v2790, %v2791
  %v2793 = vtanh.pop %v2792
  %v2794 = vmul.f32 %v2787, %v2793
  %v2795 = vld [vmem:[%s6] sm:$0xff]
  %v2796 = vld [vmem:[%s6 + $0x8] sm:$0xff]
  %v2797 = vld [vmem:[%s6 + $0x10] sm:$0xff]
  %v2798 = vld [vmem:[%s6 + $0x18] sm:$0xff]
  %v2799 = vld [vmem:[%s6 + $0x20] sm:$0xff]
  %v2800 = vld [vmem:[%s6 + $0x28] sm:$0xff]
  %v2801 = vld [vmem:[%s6 + $0x30] sm:$0xff]
  %v2802 = vld [vmem:[%s6 + $0x38] sm:$0xff]
  %v2803 = vld [vmem:[%s6 + $0x40] sm:$0xff]
  %v2804 = vld [vmem:[%s6 + $0x48] sm:$0xff]
  %v2805 = vld [vmem:[%s6 + $0x50] sm:$0xff]
  %v2806 = vld [vmem:[%s6 + $0x58] sm:$0xff]
  %v2807 = vld [vmem:[%s6 + $0x60] sm:$0xff]
  %v2808 = vld [vmem:[%s6 + $0x68] sm:$0xff]
  %v2809 = vld [vmem:[%s6 + $0x70] sm:$0xff]
  %v2810 = vld [vmem:[%s6 + $0x78] sm:$0xff]
  %v2811 = vld [vmem:[%s6 + $0x80] sm:$0xff]
  %v2812 = vld [vmem:[%s6 + $0x88] sm:$0xff]
  %v2813 = vld [vmem:[%s6 + $0x90] sm:$0xff]
  %v2814 = vld [vmem:[%s6 + $0x98] sm:$0xff]
  %v2815 = vld [vmem:[%s6 + $0xa0] sm:$0xff]
  %v2816 = vld [vmem:[%s6 + $0xa8] sm:$0xff]
  %v2817 = vld [vmem:[%s6 + $0xb0] sm:$0xff]
  %v2818 = vld [vmem:[%s6 + $0xb8] sm:$0xff]
  %v2819 = vld [vmem:[%s6 + $0xc0] sm:$0xff]
  %v2820 = vld [vmem:[%s6 + $0xc8] sm:$0xff]
  %v2821 = vld [vmem:[%s6 + $0xd0] sm:$0xff]
  %v2822 = vld [vmem:[%s6 + $0xd8] sm:$0xff]
  %v2823 = vld [vmem:[%s6 + $0xe0] sm:$0xff]
  %v2824 = vld [vmem:[%s6 + $0xe8] sm:$0xff]
  %v2825 = vld [vmem:[%s6 + $0xf0] sm:$0xff]
  %v2826 = vld [vmem:[%s6 + $0xf8] sm:$0xff]
  %2827 = vmatprep.subr.mxu0 0.0
  %2828 = vmatpush1.msra.mxu0 %v2795
  %2829 = vmatprep.subr.mxu0 0.0
  %2830 = vmatpush1.msra.mxu0 %v2796
  %2831 = vmatprep.subr.mxu0 0.0
  %2832 = vmatpush1.msra.mxu0 %v2797
  %2833 = vmatprep.subr.mxu0 0.0
  %2834 = vmatpush1.msra.mxu0 %v2798
  %2835 = vmatprep.subr.mxu0 0.0
  %2836 = vmatpush1.msra.mxu0 %v2799
  %2837 = vmatprep.subr.mxu0 0.0
  %2838 = vmatpush1.msra.mxu0 %v2800
  %2839 = vmatprep.subr.mxu0 0.0
  %2840 = vmatpush1.msra.mxu0 %v2801
  %2841 = vmatprep.subr.mxu0 0.0
  %2842 = vmatpush1.msra.mxu0 %v2802
  %2843 = vmatprep.subr.mxu0 0.0
  %2844 = vmatpush1.msra.mxu0 %v2803
  %2845 = vmatprep.subr.mxu0 0.0
  %2846 = vmatpush1.msra.mxu0 %v2804
  %2847 = vmatprep.subr.mxu0 0.0
  %2848 = vmatpush1.msra.mxu0 %v2805
  %2849 = vmatprep.subr.mxu0 0.0
  %2850 = vmatpush1.msra.mxu0 %v2806
  %2851 = vmatprep.subr.mxu0 0.0
  %2852 = vmatpush1.msra.mxu0 %v2807
  %2853 = vmatprep.subr.mxu0 0.0
  %2854 = vmatpush1.msra.mxu0 %v2808
  %2855 = vmatprep.subr.mxu0 0.0
  %2856 = vmatpush1.msra.mxu0 %v2809
  %2857 = vmatprep.subr.mxu0 0.0
  %2858 = vmatpush1.msra.mxu0 %v2810
  %2859 = vmatprep.subr.mxu0 0.0
  %2860 = vmatpush1.msra.mxu0 %v2811
  %2861 = vmatprep.subr.mxu0 0.0
  %2862 = vmatpush1.msra.mxu0 %v2812
  %2863 = vmatprep.subr.mxu0 0.0
  %2864 = vmatpush1.msra.mxu0 %v2813
  %2865 = vmatprep.subr.mxu0 0.0
  %2866 = vmatpush1.msra.mxu0 %v2814
  %2867 = vmatprep.subr.mxu0 0.0
  %2868 = vmatpush1.msra.mxu0 %v2815
  %2869 = vmatprep.subr.mxu0 0.0
  %2870 = vmatpush1.msra.mxu0 %v2816
  %2871 = vmatprep.subr.mxu0 0.0
  %2872 = vmatpush1.msra.mxu0 %v2817
  %2873 = vmatprep.subr.mxu0 0.0
  %2874 = vmatpush1.msra.mxu0 %v2818
  %2875 = vmatprep.subr.mxu0 0.0
  %2876 = vmatpush1.msra.mxu0 %v2819
  %2877 = vmatprep.subr.mxu0 0.0
  %2878 = vmatpush1.msra.mxu0 %v2820
  %2879 = vmatprep.subr.mxu0 0.0
  %2880 = vmatpush1.msra.mxu0 %v2821
  %2881 = vmatprep.subr.mxu0 0.0
  %2882 = vmatpush1.msra.mxu0 %v2822
  %2883 = vmatprep.subr.mxu0 0.0
  %2884 = vmatpush1.msra.mxu0 %v2823
  %2885 = vmatprep.subr.mxu0 0.0
  %2886 = vmatpush1.msra.mxu0 %v2824
  %2887 = vmatprep.subr.mxu0 0.0
  %2888 = vmatpush1.msra.mxu0 %v2825
  %2889 = vmatprep.subr.mxu0 0.0
  %2890 = vmatpush1.msra.mxu0 %v2826
  %2891 = vmatprep.mubr.f32.mxu0 %v2563
  %2892 = vmatmul.mubr.f32.gmra.mrb[0].mxu0 %v2794
  %v2893 = vpop.f32.mrb[0].mxu0
  %v2894 = vadd.f32 %v203, %v2893
  %v2895 = vpop.f32.mrb[0].mxu0
  %2896 = vdwg.mxu0
  %v2897 = vxor.u32 %v2894, 2147483648
  %v2898 = vmul.f32 %v2897, 1.442695
  %v2899 = vpow.pop %v2898
  %v2900 = vadd.f32 %v2899, 1.0
  %v2901 = vrcp.pop %v2900
  %v2902 = vmul.f32 1.0, %v2901
  %v2903 = vtanh.pop %v2894
  %v2904 = vsel %vm214, %v2902, %v2903
  %2905 = vrot.lane.b32.xlu0 %v2904, 96
  %v2906 = vpop.permute.xlu0 %2905
  %2907 = vrot.lane.b32.xlu0 %v2904, 64
  %v2908 = vpop.permute.xlu0 %2907
  %2909 = vrot.lane.b32.xlu0 %v2904, 32
  %v2910 = vpop.permute.xlu0 %2909
  %v2911 = vmul.f32 %v2906, %v2561
  %v2912 = vmul.f32 %v2904, %v2910
  %v2913 = vadd.f32 %v2911, %v2912
  %v2914 = vtanh.pop %v2913
  %v2915 = vmul.f32 %v2908, %v2914
  %v2916 = vld [vmem:[%s8] sm:$0xff]
  %v2917 = vld [vmem:[%s8 + $0x8] sm:$0xff]
  %v2918 = vld [vmem:[%s8 + $0x10] sm:$0xff]
  %v2919 = vld [vmem:[%s8 + $0x18] sm:$0xff]
  %v2920 = vld [vmem:[%s8 + $0x20] sm:$0xff]
  %v2921 = vld [vmem:[%s8 + $0x28] sm:$0xff]
  %v2922 = vld [vmem:[%s8 + $0x30] sm:$0xff]
  %v2923 = vld [vmem:[%s8 + $0x38] sm:$0xff]
  %v2924 = vld [vmem:[%s8 + $0x40] sm:$0xff]
  %v2925 = vld [vmem:[%s8 + $0x48] sm:$0xff]
  %v2926 = vld [vmem:[%s8 + $0x50] sm:$0xff]
  %v2927 = vld [vmem:[%s8 + $0x58] sm:$0xff]
  %v2928 = vld [vmem:[%s8 + $0x60] sm:$0xff]
  %v2929 = vld [vmem:[%s8 + $0x68] sm:$0xff]
  %v2930 = vld [vmem:[%s8 + $0x70] sm:$0xff]
  %v2931 = vld [vmem:[%s8 + $0x78] sm:$0xff]
  %v2932 = vld [vmem:[%s8 + $0x80] sm:$0xff]
  %v2933 = vld [vmem:[%s8 + $0x88] sm:$0xff]
  %v2934 = vld [vmem:[%s8 + $0x90] sm:$0xff]
  %v2935 = vld [vmem:[%s8 + $0x98] sm:$0xff]
  %v2936 = vld [vmem:[%s8 + $0xa0] sm:$0xff]
  %v2937 = vld [vmem:[%s8 + $0xa8] sm:$0xff]
  %v2938 = vld [vmem:[%s8 + $0xb0] sm:$0xff]
  %v2939 = vld [vmem:[%s8 + $0xb8] sm:$0xff]
  %v2940 = vld [vmem:[%s8 + $0xc0] sm:$0xff]
  %v2941 = vld [vmem:[%s8 + $0xc8] sm:$0xff]
  %v2942 = vld [vmem:[%s8 + $0xd0] sm:$0xff]
  %v2943 = vld [vmem:[%s8 + $0xd8] sm:$0xff]
  %v2944 = vld [vmem:[%s8 + $0xe0] sm:$0xff]
  %v2945 = vld [vmem:[%s8 + $0xe8] sm:$0xff]
  %v2946 = vld [vmem:[%s8 + $0xf0] sm:$0xff]
  %v2947 = vld [vmem:[%s8 + $0xf8] sm:$0xff]
  %2948 = vmatprep.subr.mxu0 0.0
  %2949 = vmatpush1.msra.mxu0 %v2916
  %2950 = vmatprep.subr.mxu0 0.0
  %2951 = vmatpush1.msra.mxu0 %v2917
  %2952 = vmatprep.subr.mxu0 0.0
  %2953 = vmatpush1.msra.mxu0 %v2918
  %2954 = vmatprep.subr.mxu0 0.0
  %2955 = vmatpush1.msra.mxu0 %v2919
  %2956 = vmatprep.subr.mxu0 0.0
  %2957 = vmatpush1.msra.mxu0 %v2920
  %2958 = vmatprep.subr.mxu0 0.0
  %2959 = vmatpush1.msra.mxu0 %v2921
  %2960 = vmatprep.subr.mxu0 0.0
  %2961 = vmatpush1.msra.mxu0 %v2922
  %2962 = vmatprep.subr.mxu0 0.0
  %2963 = vmatpush1.msra.mxu0 %v2923
  %2964 = vmatprep.subr.mxu0 0.0
  %2965 = vmatpush1.msra.mxu0 %v2924
  %2966 = vmatprep.subr.mxu0 0.0
  %2967 = vmatpush1.msra.mxu0 %v2925
  %2968 = vmatprep.subr.mxu0 0.0
  %2969 = vmatpush1.msra.mxu0 %v2926
  %2970 = vmatprep.subr.mxu0 0.0
  %2971 = vmatpush1.msra.mxu0 %v2927
  %2972 = vmatprep.subr.mxu0 0.0
  %2973 = vmatpush1.msra.mxu0 %v2928
  %2974 = vmatprep.subr.mxu0 0.0
  %2975 = vmatpush1.msra.mxu0 %v2929
  %2976 = vmatprep.subr.mxu0 0.0
  %2977 = vmatpush1.msra.mxu0 %v2930
  %2978 = vmatprep.subr.mxu0 0.0
  %2979 = vmatpush1.msra.mxu0 %v2931
  %2980 = vmatprep.subr.mxu0 0.0
  %2981 = vmatpush1.msra.mxu0 %v2932
  %2982 = vmatprep.subr.mxu0 0.0
  %2983 = vmatpush1.msra.mxu0 %v2933
  %2984 = vmatprep.subr.mxu0 0.0
  %2985 = vmatpush1.msra.mxu0 %v2934
  %2986 = vmatprep.subr.mxu0 0.0
  %2987 = vmatpush1.msra.mxu0 %v2935
  %2988 = vmatprep.subr.mxu0 0.0
  %2989 = vmatpush1.msra.mxu0 %v2936
  %2990 = vmatprep.subr.mxu0 0.0
  %2991 = vmatpush1.msra.mxu0 %v2937
  %2992 = vmatprep.subr.mxu0 0.0
  %2993 = vmatpush1.msra.mxu0 %v2938
  %2994 = vmatprep.subr.mxu0 0.0
  %2995 = vmatpush1.msra.mxu0 %v2939
  %2996 = vmatprep.subr.mxu0 0.0
  %2997 = vmatpush1.msra.mxu0 %v2940
  %2998 = vmatprep.subr.mxu0 0.0
  %2999 = vmatpush1.msra.mxu0 %v2941
  %3000 = vmatprep.subr.mxu0 0.0
  %3001 = vmatpush1.msra.mxu0 %v2942
  %3002 = vmatprep.subr.mxu0 0.0
  %3003 = vmatpush1.msra.mxu0 %v2943
  %3004 = vmatprep.subr.mxu0 0.0
  %3005 = vmatpush1.msra.mxu0 %v2944
  %3006 = vmatprep.subr.mxu0 0.0
  %3007 = vmatpush1.msra.mxu0 %v2945
  %3008 = vmatprep.subr.mxu0 0.0
  %3009 = vmatpush1.msra.mxu0 %v2946
  %3010 = vmatprep.subr.mxu0 0.0
  %3011 = vmatpush1.msra.mxu0 %v2947
  %3012 = vmatprep.mubr.f32.mxu0 %v2684
  %3013 = vmatmul.mubr.f32.gmra.mrb[0].mxu0 %v2915
  %v3014 = vpop.f32.mrb[0].mxu0
  %v3015 = vadd.f32 %v210, %v3014
  %v3016 = vpop.f32.mrb[0].mxu0
  %3017 = vdwg.mxu0
  %v3018 = vxor.u32 %v3015, 2147483648
  %v3019 = vmul.f32 %v3018, 1.442695
  %v3020 = vpow.pop %v3019
  %v3021 = vadd.f32 %v3020, 1.0
  %v3022 = vrcp.pop %v3021
  %v3023 = vmul.f32 1.0, %v3022
  %v3024 = vtanh.pop %v3015
  %v3025 = vsel %vm214, %v3023, %v3024
  %3026 = vrot.lane.b32.xlu0 %v3025, 96
  %v3027 = vpop.permute.xlu0 %3026
  %3028 = vrot.lane.b32.xlu0 %v3025, 64
  %v3029 = vpop.permute.xlu0 %3028
  %3030 = vrot.lane.b32.xlu0 %v3025, 32
  %v3031 = vpop.permute.xlu0 %3030
  %v3032 = vmul.f32 %v3027, %v2682
  %v3033 = vmul.f32 %v3025, %v3031
  %v3034 = vadd.f32 %v3032, %v3033
  %v3035 = vtanh.pop %v3034
  %v3036 = vmul.f32 %v3029, %v3035
  %s3037 = scalar_lea.vmem %s10, 56
  %3038 = vst [vmem:[%s3037] sm:$0xff] %v3036
  %p3039 = scmp.ne.s32.totalorder 0, 0
  // Predicated region
  $region46: #{text_lstm_forward.1} parent=0 // pred_check
    %p3040 = pneg %p3039
  $region47: #{text_lstm_forward.1} parent=0 // pred_check_branch
    %3042 = sbr.rel (%p3040) target = $region49
  $region48: #{text_lstm_forward.1} parent=0 // pred_region
    %3043 = vst [vmem:[#allocation3] sm:$0xff] %v2794
    %3044 = vst [vmem:[#allocation4] sm:$0xff] %v2792
    %3045 = vst [vmem:[%s216] sm:$0xff] %v2915
    %3046 = vst [vmem:[%s221] sm:$0xff] %v2913
    %3047 = vst [vmem:[%s218] sm:$0xff] %v3036
    %3048 = vst [vmem:[%s223] sm:$0xff] %v3034
  $region49: #{text_lstm_forward.1} parent=0 // pred_fallthru
    _
  // Predicated region
  $region50: #{text_lstm_forward.1} parent=0 // pred_check
    %p3049 = pneg %p38
  $region51: #{text_lstm_forward.1} parent=0 // pred_check_branch
    %3051 = sbr.rel (%p3049) target = $region53
  $region52: #{text_lstm_forward.1} parent=0 // pred_region
    %3052 = vst [vmem:[%s11] sm:$0xff] %v2794
    %3053 = vst [vmem:[%s12] sm:$0xff] %v2792
    %s3054 = scalar_lea.vmem %s11, 8
    %3055 = vst [vmem:[%s3054] sm:$0xff] %v2915
    %s3056 = scalar_lea.vmem %s12, 8
    %3057 = vst [vmem:[%s3056] sm:$0xff] %v2913
    %s3058 = scalar_lea.vmem %s11, 16
    %3059 = vst [vmem:[%s3058] sm:$0xff] %v3036
    %s3060 = scalar_lea.vmem %s12, 16
    %3061 = vst [vmem:[%s3060] sm:$0xff] %v3034
  $region53: #{text_lstm_forward.1} parent=0 // pred_fallthru
    _
  // Predicated region
  $region54: #{text_lstm_forward.1} parent=0 // pred_check
    _
  $region55: #{text_lstm_forward.1} parent=0 // pred_check_branch
    %3063 = sbr.rel (0) target = $region57
  $region56: #{text_lstm_forward.1} parent=0 // pred_region
    _
  $region57: #{text_lstm_forward.1} parent=0 // pred_fallthru
    _
  // Predicated region
  $region58: #{text_lstm_forward.1} parent=0 // pred_check
    _
  $region59: #{text_lstm_forward.1} parent=0 // pred_check_branch
    %3065 = sbr.rel (0) target = $region61
  $region60: #{text_lstm_forward.1} parent=0 // pred_region
    _
  $region61: #{text_lstm_forward.1} parent=0 // pred_fallthru
    _
  // Predicated region
  $region62: #{text_lstm_forward.1} parent=0 // pred_check
    _
  $region63: #{text_lstm_forward.1} parent=0 // pred_check_branch
    %3067 = sbr.rel (0) target = $region65
  $region64: #{text_lstm_forward.1} parent=0 // pred_region
    _
  $region65: #{text_lstm_forward.1} parent=0 // pred_fallthru
    _
  // Predicated region
  $region66: #{text_lstm_forward.1} parent=0 // pred_check
    _
  $region67: #{text_lstm_forward.1} parent=0 // pred_check_branch
    %3069 = sbr.rel (0) target = $region69
  $region68: #{text_lstm_forward.1} parent=0 // pred_region
    _
  $region69: #{text_lstm_forward.1} parent=0 // pred_fallthru
    _
  // Predicated region
  $region70: #{text_lstm_forward.1} parent=0 // pred_check
    _
  $region71: #{text_lstm_forward.1} parent=0 // pred_check_branch
    %3071 = sbr.rel (0) target = $region73
  $region72: #{text_lstm_forward.1} parent=0 // pred_region
    _
  $region73: #{text_lstm_forward.1} parent=0 // pred_fallthru
    _
  // Predicated region
  $region74: #{text_lstm_forward.1} parent=0 // pred_check
    _
  $region75: #{text_lstm_forward.1} parent=0 // pred_check_branch
    %3073 = sbr.rel (0) target = $region77
  $region76: #{text_lstm_forward.1} parent=0 // pred_region
    _
  $region77: #{text_lstm_forward.1} parent=0 // pred_fallthru
    _

</llo_original>
